<compile_context>
chip_gen: v5e
topology: v5e:2x2
jax: 0.10.0
libtpu: 0.0.40
codegen_flags: <defaults>
</compile_context>

<pallas_src>
import functools
import math

import jax
import jax.numpy as jnp
from jax.experimental import pallas as pl
from jax.experimental.pallas import tpu as pltpu

LN_EPS = 1e-5
L2_EPS = 1e-12


# ----------------------------------------------------------------------------
# Kernel: one transformer block per grid step; embed at l==0, head at l==last.
# ----------------------------------------------------------------------------
def _network_layer_kernel(
    # resident inputs (constant block index)
    x_ref, embed_w_ref, embed_b_ref,
    # per-layer streamed inputs (block index = layer id)
    ln1_g_ref, ln1_b_ref,
    q_w_ref, q_b_ref, k_w_ref, k_b_ref, v_w_ref, v_b_ref,
    proj_w_ref, proj_b_ref,
    ln2_g_ref, ln2_b_ref, fc1_w_ref, fc1_b_ref, fc2_w_ref, fc2_b_ref,
    # final-LN + head inputs (resident)
    lnf_g_ref, lnf_b_ref,
    h1_w_ref, h1_b_ref, h2_w_ref, h2_b_ref, h3_w_ref, h3_b_ref, hlast_w_ref,
    # output
    o_ref,
    # scratch: residual stream, persists across grid steps
    h_scratch,
    *, num_heads,
):
    l = pl.program_id(0)
    cdt = q_w_ref.dtype  # MXU compute dtype (bf16 weights)

    def layer_norm(v, g, b):
        mu = jnp.mean(v, axis=-1, keepdims=True)
        d = v - mu
        var = jnp.mean(d * d, axis=-1, keepdims=True)
        return d * jax.lax.rsqrt(var + LN_EPS) * g + b

    def mm(a, w):
        # MXU matmul: bf16 operands, f32 accumulation.
        return jnp.dot(a.astype(w.dtype), w, preferred_element_type=jnp.float32)

    def gelu(v):
        # TODO(synk): PyTorch nn.GELU default is exact erf; tanh approximation used here.
        return jax.nn.gelu(v, approximate=True)

    # ---- step 0: node-embedding linear seeds the residual stream ----
    @pl.when(l == 0)
    def _():
        h_scratch[...] = mm(x_ref[...], embed_w_ref[...]) + embed_b_ref[...]

    # ---- one pre-LN transformer block per grid step ----
    h = h_scratch[...]

    # Multi-head self-attention.  1/sqrt(dh) is pre-folded into q_w/q_b on the host;
    # the head-concat is folded into the per-head row block of the projection matrix.
    hn = layer_norm(h, ln1_g_ref[0], ln1_b_ref[0])
    attn = None
    for hd in range(num_heads):
        qh = mm(hn, q_w_ref[0, hd]) + q_b_ref[0, hd]        # (N, dh), no lane slicing
        kh = mm(hn, k_w_ref[0, hd]) + k_b_ref[0, hd]
        vh = mm(hn, v_w_ref[0, hd]) + v_b_ref[0, hd]
        s = jax.lax.dot_general(                            # q @ k^T without transpose
            qh.astype(cdt), kh.astype(cdt), (((1,), (1,)), ((), ())),
            preferred_element_type=jnp.float32)
        m = jnp.max(s, axis=-1, keepdims=True)
        p = jnp.exp(s - m)
        p = p * pl.reciprocal(jnp.sum(p, axis=-1, keepdims=True), approx=True)
        oh = jnp.dot(p.astype(cdt), vh.astype(cdt), preferred_element_type=jnp.float32)
        c = mm(oh, proj_w_ref[0, hd])                       # (N, dim) per-head proj
        attn = c if attn is None else attn + c
    h = h + attn + proj_b_ref[0]                            # residual (VPU add)

    # MLP (pre-LN)
    hn = layer_norm(h, ln2_g_ref[0], ln2_b_ref[0])
    mid = gelu(mm(hn, fc1_w_ref[0]) + fc1_b_ref[0])
    h = h + mm(mid, fc2_w_ref[0]) + fc2_b_ref[0]
    h_scratch[...] = h

    # ---- last step: final LayerNorm + DINO head ----
    @pl.when(l == pl.num_programs(0) - 1)
    def _():
        hf = layer_norm(h_scratch[...], lnf_g_ref[...], lnf_b_ref[...])
        hf = gelu(mm(hf, h1_w_ref[...]) + h1_b_ref[...])
        hf = gelu(mm(hf, h2_w_ref[...]) + h2_b_ref[...])
        hf = mm(hf, h3_w_ref[...]) + h3_b_ref[...]
        sumsq = jnp.sum(hf * hf, axis=-1, keepdims=True)
        hn2 = hf * jax.lax.rsqrt(jnp.maximum(sumsq, L2_EPS * L2_EPS))  # F.normalize(p=2)
        o_ref[...] = mm(hn2, hlast_w_ref[...]).astype(o_ref.dtype)


# ----------------------------------------------------------------------------
# Wrapper: layer-axis grid, streamed per-layer weights, resident residual scratch.
# ----------------------------------------------------------------------------
def network_forward(kparams, cfg, x, edge_index=None, edge_attr=None):
    del edge_index, edge_attr  # TODO(synk): Encoder source not provided; edges unused.
    N = x.shape[0]
    dim = cfg["encoder"]["dim"]
    num_heads = cfg["encoder"]["n_heads"]
    n_layers = int(kparams["q_w"].shape[0])
    out_dim = kparams["hlast_w"].shape[1]

    def full_spec(a):
        nd = a.ndim
        return pl.BlockSpec(a.shape, lambda l, _nd=nd: (0,) * _nd)

    def layer_spec(a):
        nd = a.ndim
        return pl.BlockSpec((1,) + a.shape[1:], lambda l, _nd=nd: (l,) + (0,) * (_nd - 1))

    inputs, specs = [], []
    for a in (x, kparams["embed_w"], kparams["embed_b"]):
        inputs.append(a)
        specs.append(full_spec(a))
    for name in ("ln1_g", "ln1_b", "q_w", "q_b", "k_w", "k_b", "v_w", "v_b",
                 "proj_w", "proj_b", "ln2_g", "ln2_b",
                 "fc1_w", "fc1_b", "fc2_w", "fc2_b"):
        a = kparams[name]
        inputs.append(a)
        specs.append(layer_spec(a))
    for name in ("lnf_g", "lnf_b", "h1_w", "h1_b", "h2_w", "h2_b",
                 "h3_w", "h3_b", "hlast_w"):
        a = kparams[name]
        inputs.append(a)
        specs.append(full_spec(a))

    kernel = functools.partial(_network_layer_kernel, num_heads=num_heads)
    return pl.pallas_call(
        kernel,
        out_shape=jax.ShapeDtypeStruct((N, out_dim), jnp.float32),
        grid=(n_layers,),
        in_specs=specs,
        out_specs=pl.BlockSpec((N, out_dim), lambda l: (0, 0)),
        scratch_shapes=[pltpu.VMEM((N, dim), jnp.float32)],
        compiler_params=pltpu.CompilerParams(
            dimension_semantics=("arbitrary",),
            vmem_limit_bytes=64 * 1024 * 1024,
        ),
    )(*inputs)


# ----------------------------------------------------------------------------
# Parameter construction (canonical f32) and host-side kernel-layout prep.
# ----------------------------------------------------------------------------
def _dense_init(key, fan_in, fan_out):
    w = jax.random.normal(key, (fan_in, fan_out), jnp.float32) * 0.02
    b = jnp.zeros((1, fan_out), jnp.float32)
    return w, b


def init_params(key, cfg):
    dim = cfg["encoder"]["dim"]
    L = cfg["encoder"]["n_layers"]
    mlp_hidden = dim * cfg["encoder"]["mlp_ratio"]
    in_feats = cfg["in_features"]
    hd = cfg["head"]
    p = {}

    key, k = jax.random.split(key)
    p["embed_w"], p["embed_b"] = _dense_init(k, in_feats, dim)

    qkv_w, qkv_b, proj_w, proj_b = [], [], [], []
    fc1_w, fc1_b, fc2_w, fc2_b = [], [], [], []
    for _ in range(L):
        key, k1, k2, k3, k4 = jax.random.split(key, 5)
        w, b = _dense_init(k1, dim, 3 * dim); qkv_w.append(w); qkv_b.append(b)
        w, b = _dense_init(k2, dim, dim); proj_w.append(w); proj_b.append(b)
        w, b = _dense_init(k3, dim, mlp_hidden); fc1_w.append(w); fc1_b.append(b)
        w, b = _dense_init(k4, mlp_hidden, dim); fc2_w.append(w); fc2_b.append(b)
    p["qkv_w"], p["qkv_b"] = jnp.stack(qkv_w), jnp.stack(qkv_b)
    p["proj_w"], p["proj_b"] = jnp.stack(proj_w), jnp.stack(proj_b)
    p["fc1_w"], p["fc1_b"] = jnp.stack(fc1_w), jnp.stack(fc1_b)
    p["fc2_w"], p["fc2_b"] = jnp.stack(fc2_w), jnp.stack(fc2_b)
    p["ln1_g"] = jnp.ones((L, 1, dim), jnp.float32)
    p["ln1_b"] = jnp.zeros((L, 1, dim), jnp.float32)
    p["ln2_g"] = jnp.ones((L, 1, dim), jnp.float32)
    p["ln2_b"] = jnp.zeros((L, 1, dim), jnp.float32)
    p["lnf_g"] = jnp.ones((1, dim), jnp.float32)
    p["lnf_b"] = jnp.zeros((1, dim), jnp.float32)

    key, k1, k2, k3, k4 = jax.random.split(key, 5)
    p["head_l1_w"], p["head_l1_b"] = _dense_init(k1, dim, hd["hidden_dim"])
    p["head_l2_w"], p["head_l2_b"] = _dense_init(k2, hd["hidden_dim"], hd["hidden_dim"])
    p["head_l3_w"], p["head_l3_b"] = _dense_init(k3, hd["hidden_dim"], hd["bottleneck_dim"])
    # weight_norm(Linear(bottleneck, out_dim, bias=False)) with weight_g filled to 1
    v = jax.random.normal(k4, (hd["bottleneck_dim"], hd["out_dim"]), jnp.float32) * 0.02
    p["head_last_w"] = v / jnp.linalg.norm(v, axis=0, keepdims=True)
    return p


def prepare_kernel_params(params, cfg, weight_dtype=jnp.bfloat16):
    """Host-side one-time transform: per-head QKV/proj split, scale folding, bf16 cast."""
    dim = cfg["encoder"]["dim"]
    H = cfg["encoder"]["n_heads"]
    dh = dim // H
    L = params["qkv_w"].shape[0]
    scale = 1.0 / math.sqrt(dh)

    # qkv columns are ordered [3, heads, dh] (timm-style fused qkv).
    qkv_w = params["qkv_w"].reshape(L, dim, 3, H, dh).transpose(2, 0, 3, 1, 4)  # (3,L,H,dim,dh)
    qkv_b = params["qkv_b"].reshape(L, 3, H, dh).transpose(1, 0, 2, 3)[:, :, :, None, :]  # (3,L,H,1,dh)
    q_w, k_w, v_w = qkv_w[0] * scale, qkv_w[1], qkv_w[2]   # fold 1/sqrt(dh) into q
    q_b, k_b, v_b = qkv_b[0] * scale, qkv_b[1], qkv_b[2]
    proj_w = params["proj_w"].reshape(L, H, dh, dim)        # per-head row block of proj

    wd = weight_dtype
    return {
        "embed_w": params["embed_w"].astype(wd), "embed_b": params["embed_b"],
        "ln1_g": params["ln1_g"], "ln1_b": params["ln1_b"],
        "q_w": q_w.astype(wd), "q_b": q_b,
        "k_w": k_w.astype(wd), "k_b": k_b,
        "v_w": v_w.astype(wd), "v_b": v_b,
        "proj_w": proj_w.astype(wd), "proj_b": params["proj_b"],
        "ln2_g": params["ln2_g"], "ln2_b": params["ln2_b"],
        "fc1_w": params["fc1_w"].astype(wd), "fc1_b": params["fc1_b"],
        "fc2_w": params["fc2_w"].astype(wd), "fc2_b": params["fc2_b"],
        "lnf_g": params["lnf_g"], "lnf_b": params["lnf_b"],
        "h1_w": params["head_l1_w"].astype(wd), "h1_b": params["head_l1_b"],
        "h2_w": params["head_l2_w"].astype(wd), "h2_b": params["head_l2_b"],
        "h3_w": params["head_l3_w"].astype(wd), "h3_b": params["head_l3_b"],
        "hlast_w": params["head_last_w"].astype(wd),
    }


# ----------------------------------------------------------------------------
# Pure-JAX f32 reference (same math as the PyTorch module; used as sanity check)
# ----------------------------------------------------------------------------
def network_reference(params, cfg, x):
    num_heads = cfg["encoder"]["n_heads"]

    def ln(v, g, b, eps=LN_EPS):
        mu = jnp.mean(v, -1, keepdims=True)
        var = jnp.mean((v - mu) ** 2, -1, keepdims=True)
        return (v - mu) / jnp.sqrt(var + eps) * g + b

    def lin(v, w, b, act=False):
        y = v @ w + b
        return jax.nn.gelu(y, approximate=True) if act else y

    h = lin(x, params["embed_w"], params["embed_b"])
    N, dim = h.shape
    dh = dim // num_heads
    for l in range(params["qkv_w"].shape[0]):
        hn = ln(h, params["ln1_g"][l], params["ln1_b"][l])
        qkv = lin(hn, params["qkv_w"][l], params["qkv_b"][l])
        qkv = qkv.reshape(N, 3, num_heads, dh).transpose(1, 2, 0, 3)
        q, k, v = qkv[0], qkv[1], qkv[2]
        s = jnp.einsum("hqd,hkd->hqk", q, k) / math.sqrt(dh)
        p = jax.nn.softmax(s, axis=-1)
        attn = jnp.einsum("hqk,hkd->hqd", p, v).transpose(1, 0, 2).reshape(N, dim)
        h = h + lin(attn, params["proj_w"][l], params["proj_b"][l])
        hn = ln(h, params["ln2_g"][l], params["ln2_b"][l])
        h = h + lin(lin(hn, params["fc1_w"][l], params["fc1_b"][l], act=True),
                    params["fc2_w"][l], params["fc2_b"][l])
    h = ln(h, params["lnf_g"], params["lnf_b"])
    h = lin(h, params["head_l1_w"], params["head_l1_b"], act=True)
    h = lin(h, params["head_l2_w"], params["head_l2_b"], act=True)
    h = lin(h, params["head_l3_w"], params["head_l3_b"])
    hn = h / jnp.maximum(jnp.linalg.norm(h, axis=-1, keepdims=True), 1e-12)
    return hn @ params["head_last_w"]


# ----------------------------------------------------------------------------
# Main
# ----------------------------------------------------------------------------
if __name__ == "__main__":
    config = {
        "in_features": 16,
        "encoder": {"dim": 32, "n_layers": 2, "n_heads": 4, "mlp_ratio": 4,
                    "drop_rate": 0.0, "attn_drop_rate": 0.0},
        "head": {"out_dim": 64, "hidden_dim": 64, "bottleneck_dim": 16,
                 "n_layers": 3, "use_bn": False, "norm_last_layer": True},
    }

    key = jax.random.PRNGKey(0)
    key, kx, ke, ka, kp = jax.random.split(key, 5)

    N, F = 8, config["in_features"]
    x = jax.random.normal(kx, (N, F), jnp.float32)
    E = 16
    edge_index = jax.random.randint(ke, (2, E), 0, N, jnp.int32)
    edge_attr = jax.random.normal(ka, (E, 4), jnp.float32)

    params = init_params(kp, config)                     # canonical f32 (reference layout)
    kparams = prepare_kernel_params(params, config)      # per-head split, scaled, bf16

    fwd = jax.jit(lambda xx: network_forward(kparams, config, xx, edge_index, edge_attr))
    out = jax.block_until_ready(fwd(x))

    ref = network_reference(params, config, x)
    assert out.shape == (N, config["head"]["out_dim"]), out.shape
    assert bool(jnp.all(jnp.isfinite(out)))
    err = float(jnp.max(jnp.abs(out - ref)))
    assert err < 5e-2, err
    print("KERNEL_OK")
</pallas_src>

<mosaic_0001>
module attributes {stable_mosaic.version = 11 : i64} {
  func.func @_network_layer_kernel(%arg0: i32, %arg1: memref<8x16xf32, #tpu.memory_space<vmem>>, %arg2: memref<16x32xbf16, #tpu.memory_space<vmem>>, %arg3: memref<1x32xf32, #tpu.memory_space<vmem>>, %arg4: memref<1x1x32xf32, #tpu.memory_space<vmem>>, %arg5: memref<1x1x32xf32, #tpu.memory_space<vmem>>, %arg6: memref<1x4x32x8xbf16, #tpu.memory_space<vmem>>, %arg7: memref<1x4x1x8xf32, #tpu.memory_space<vmem>>, %arg8: memref<1x4x32x8xbf16, #tpu.memory_space<vmem>>, %arg9: memref<1x4x1x8xf32, #tpu.memory_space<vmem>>, %arg10: memref<1x4x32x8xbf16, #tpu.memory_space<vmem>>, %arg11: memref<1x4x1x8xf32, #tpu.memory_space<vmem>>, %arg12: memref<1x4x8x32xbf16, #tpu.memory_space<vmem>>, %arg13: memref<1x1x32xf32, #tpu.memory_space<vmem>>, %arg14: memref<1x1x32xf32, #tpu.memory_space<vmem>>, %arg15: memref<1x1x32xf32, #tpu.memory_space<vmem>>, %arg16: memref<1x32x128xbf16, #tpu.memory_space<vmem>>, %arg17: memref<1x1x128xf32, #tpu.memory_space<vmem>>, %arg18: memref<1x128x32xbf16, #tpu.memory_space<vmem>>, %arg19: memref<1x1x32xf32, #tpu.memory_space<vmem>>, %arg20: memref<1x32xf32, #tpu.memory_space<vmem>>, %arg21: memref<1x32xf32, #tpu.memory_space<vmem>>, %arg22: memref<32x64xbf16, #tpu.memory_space<vmem>>, %arg23: memref<1x64xf32, #tpu.memory_space<vmem>>, %arg24: memref<64x64xbf16, #tpu.memory_space<vmem>>, %arg25: memref<1x64xf32, #tpu.memory_space<vmem>>, %arg26: memref<64x16xbf16, #tpu.memory_space<vmem>>, %arg27: memref<1x16xf32, #tpu.memory_space<vmem>>, %arg28: memref<16x64xbf16, #tpu.memory_space<vmem>>, %arg29: memref<8x64xf32, #tpu.memory_space<vmem>>, %arg30: memref<8x32xf32, #tpu.memory_space<vmem>>) attributes {dimension_semantics = [#tpu.dimension_semantics<arbitrary>], iteration_bounds = array<i64: 2>, scalar_prefetch = 0 : i64, scratch_operands = 1 : i64, tpu.core_type = #tpu.core_type<tc>, window_params = [{pipeline_mode = #tpu.pipeline_mode<synchronous>, transform_indices = @transform_0, window_bounds = array<i64: 8, 16>}, {pipeline_mode = #tpu.pipeline_mode<synchronous>, transform_indices = @transform_1, window_bounds = array<i64: 16, 32>}, {pipeline_mode = #tpu.pipeline_mode<synchronous>, transform_indices = @transform_2, window_bounds = array<i64: 1, 32>}, {transform_indices = @transform_3, window_bounds = array<i64: 1, 1, 32>}, {transform_indices = @transform_4, window_bounds = array<i64: 1, 1, 32>}, {transform_indices = @transform_5, window_bounds = array<i64: 1, 4, 32, 8>}, {transform_indices = @transform_6, window_bounds = array<i64: 1, 4, 1, 8>}, {transform_indices = @transform_7, window_bounds = array<i64: 1, 4, 32, 8>}, {transform_indices = @transform_8, window_bounds = array<i64: 1, 4, 1, 8>}, {transform_indices = @transform_9, window_bounds = array<i64: 1, 4, 32, 8>}, {transform_indices = @transform_10, window_bounds = array<i64: 1, 4, 1, 8>}, {transform_indices = @transform_11, window_bounds = array<i64: 1, 4, 8, 32>}, {transform_indices = @transform_12, window_bounds = array<i64: 1, 1, 32>}, {transform_indices = @transform_13, window_bounds = array<i64: 1, 1, 32>}, {transform_indices = @transform_14, window_bounds = array<i64: 1, 1, 32>}, {transform_indices = @transform_15, window_bounds = array<i64: 1, 32, 128>}, {transform_indices = @transform_16, window_bounds = array<i64: 1, 1, 128>}, {transform_indices = @transform_17, window_bounds = array<i64: 1, 128, 32>}, {transform_indices = @transform_18, window_bounds = array<i64: 1, 1, 32>}, {pipeline_mode = #tpu.pipeline_mode<synchronous>, transform_indices = @transform_19, window_bounds = array<i64: 1, 32>}, {pipeline_mode = #tpu.pipeline_mode<synchronous>, transform_indices = @transform_20, window_bounds = array<i64: 1, 32>}, {pipeline_mode = #tpu.pipeline_mode<synchronous>, transform_indices = @transform_21, window_bounds = array<i64: 32, 64>}, {pipeline_mode = #tpu.pipeline_mode<synchronous>, transform_indices = @transform_22, window_bounds = array<i64: 1, 64>}, {pipeline_mode = #tpu.pipeline_mode<synchronous>, transform_indices = @transform_23, window_bounds = array<i64: 64, 64>}, {pipeline_mode = #tpu.pipeline_mode<synchronous>, transform_indices = @transform_24, window_bounds = array<i64: 1, 64>}, {pipeline_mode = #tpu.pipeline_mode<synchronous>, transform_indices = @transform_25, window_bounds = array<i64: 64, 16>}, {pipeline_mode = #tpu.pipeline_mode<synchronous>, transform_indices = @transform_26, window_bounds = array<i64: 1, 16>}, {pipeline_mode = #tpu.pipeline_mode<synchronous>, transform_indices = @transform_27, window_bounds = array<i64: 16, 64>}, {pipeline_mode = #tpu.pipeline_mode<synchronous>, transform_indices = @transform_28, window_bounds = array<i64: 8, 64>}]} {
    %c0_i32 = arith.constant 0 : i32
    %0 = arith.cmpi eq, %arg0, %c0_i32 : i32
    %1 = arith.extui %0 : i1 to i32
    %c0_i32_0 = arith.constant 0 : i32
    %2 = arith.cmpi ne, %1, %c0_i32_0 : i32
    scf.if %2 {
      %c0_188 = arith.constant 0 : index
      %c0_189 = arith.constant 0 : index
      %270 = vector.load %arg1[%c0_188, %c0_189] : memref<8x16xf32, #tpu.memory_space<vmem>>, vector<8x16xf32>
      %c0_190 = arith.constant 0 : index
      %c0_191 = arith.constant 0 : index
      %271 = vector.load %arg2[%c0_190, %c0_191] : memref<16x32xbf16, #tpu.memory_space<vmem>>, vector<16x32xbf16>
      %272 = arith.truncf %270 : vector<8x16xf32> to vector<8x16xbf16>
      %cst_192 = arith.constant dense<0.000000e+00> : vector<8x32xf32>
      %273 = tpu.matmul %272, %271, %cst_192 {dimension_numbers = #tpu.dot_dimension_numbers<[1], [0], [0], [1], [0, 0, 1, 1], [], []>} : vector<8x16xbf16>, vector<16x32xbf16>, vector<8x32xf32> -> vector<8x32xf32>
      %c0_193 = arith.constant 0 : index
      %c0_194 = arith.constant 0 : index
      %274 = vector.load %arg3[%c0_193, %c0_194] : memref<1x32xf32, #tpu.memory_space<vmem>>, vector<1x32xf32>
      %275 = vector.broadcast %274 : vector<1x32xf32> to vector<8x32xf32>
      %276 = arith.addf %273, %275 : vector<8x32xf32>
      %c0_195 = arith.constant 0 : index
      %c0_196 = arith.constant 0 : index
      %277 = vector.load %arg30[%c0_195, %c0_196] : memref<8x32xf32, #tpu.memory_space<vmem>>, vector<8x32xf32>
      tpu.vector_store %arg30[%c0_195, %c0_196], %276 {strides = array<i32>} : memref<8x32xf32, #tpu.memory_space<vmem>>, vector<8x32xf32>,
    } else {
    }
    %c0 = arith.constant 0 : index
    %c0_1 = arith.constant 0 : index
    %3 = vector.load %arg30[%c0, %c0_1] : memref<8x32xf32, #tpu.memory_space<vmem>>, vector<8x32xf32>
    %c0_2 = arith.constant 0 : index
    %c0_3 = arith.constant 0 : index
    %c0_4 = arith.constant 0 : index
    %4 = vector.load %arg4[%c0_2, %c0_3, %c0_4] : memref<1x1x32xf32, #tpu.memory_space<vmem>>, vector<1x1x32xf32>
    %5 = vector.shape_cast %4 : vector<1x1x32xf32> to vector<1x32xf32>
    %c0_5 = arith.constant 0 : index
    %c0_6 = arith.constant 0 : index
    %c0_7 = arith.constant 0 : index
    %6 = vector.load %arg5[%c0_5, %c0_6, %c0_7] : memref<1x1x32xf32, #tpu.memory_space<vmem>>, vector<1x1x32xf32>
    %7 = vector.shape_cast %6 : vector<1x1x32xf32> to vector<1x32xf32>
    %cst = arith.constant dense<0.000000e+00> : vector<8xf32>
    %8 = vector.multi_reduction <add>, %3, %cst [1] : vector<8x32xf32> to vector<8xf32>
    %9 = vector.shape_cast %8 : vector<8xf32> to vector<8x1xf32>
    %cst_8 = arith.constant 3.200000e+01 : f32
    %10 = vector.broadcast %cst_8 : f32 to vector<8x1xf32>
    %11 = arith.divf %9, %10 : vector<8x1xf32>
    %12 = vector.broadcast %11 : vector<8x1xf32> to vector<8x32xf32>
    %13 = arith.subf %3, %12 : vector<8x32xf32>
    %14 = arith.mulf %13, %13 : vector<8x32xf32>
    %cst_9 = arith.constant dense<0.000000e+00> : vector<8xf32>
    %15 = vector.multi_reduction <add>, %14, %cst_9 [1] : vector<8x32xf32> to vector<8xf32>
    %16 = vector.shape_cast %15 : vector<8xf32> to vector<8x1xf32>
    %cst_10 = arith.constant 3.200000e+01 : f32
    %17 = vector.broadcast %cst_10 : f32 to vector<8x1xf32>
    %18 = arith.divf %16, %17 : vector<8x1xf32>
    %cst_11 = arith.constant 9.99999974E-6 : f32
    %19 = vector.broadcast %cst_11 : f32 to vector<8x1xf32>
    %20 = arith.addf %18, %19 : vector<8x1xf32>
    %21 = math.rsqrt %20 : vector<8x1xf32>
    %22 = vector.broadcast %21 : vector<8x1xf32> to vector<8x32xf32>
    %23 = arith.mulf %13, %22 : vector<8x32xf32>
    %24 = vector.broadcast %5 : vector<1x32xf32> to vector<8x32xf32>
    %25 = arith.mulf %23, %24 : vector<8x32xf32>
    %26 = vector.broadcast %7 : vector<1x32xf32> to vector<8x32xf32>
    %27 = arith.addf %25, %26 : vector<8x32xf32>
    %c0_12 = arith.constant 0 : index
    %c0_13 = arith.constant 0 : index
    %c0_14 = arith.constant 0 : index
    %c0_15 = arith.constant 0 : index
    %28 = vector.load %arg6[%c0_12, %c0_13, %c0_14, %c0_15] : memref<1x4x32x8xbf16, #tpu.memory_space<vmem>>, vector<1x1x32x8xbf16>
    %29 = vector.shape_cast %28 : vector<1x1x32x8xbf16> to vector<32x8xbf16>
    %30 = arith.truncf %27 : vector<8x32xf32> to vector<8x32xbf16>
    %cst_16 = arith.constant dense<0.000000e+00> : vector<8x8xf32>
    %31 = tpu.matmul %30, %29, %cst_16 {dimension_numbers = #tpu.dot_dimension_numbers<[1], [0], [0], [1], [0, 0, 1, 1], [], []>} : vector<8x32xbf16>, vector<32x8xbf16>, vector<8x8xf32> -> vector<8x8xf32>
    %c0_17 = arith.constant 0 : index
    %c0_18 = arith.constant 0 : index
    %c0_19 = arith.constant 0 : index
    %c0_20 = arith.constant 0 : index
    %32 = vector.load %arg7[%c0_17, %c0_18, %c0_19, %c0_20] : memref<1x4x1x8xf32, #tpu.memory_space<vmem>>, vector<1x1x1x8xf32>
    %33 = vector.shape_cast %32 : vector<1x1x1x8xf32> to vector<1x8xf32>
    %34 = vector.broadcast %33 : vector<1x8xf32> to vector<8x8xf32>
    %35 = arith.addf %31, %34 : vector<8x8xf32>
    %c0_21 = arith.constant 0 : index
    %c0_22 = arith.constant 0 : index
    %c0_23 = arith.constant 0 : index
    %c0_24 = arith.constant 0 : index
    %36 = vector.load %arg8[%c0_21, %c0_22, %c0_23, %c0_24] : memref<1x4x32x8xbf16, #tpu.memory_space<vmem>>, vector<1x1x32x8xbf16>
    %37 = vector.shape_cast %36 : vector<1x1x32x8xbf16> to vector<32x8xbf16>
    %38 = arith.truncf %27 : vector<8x32xf32> to vector<8x32xbf16>
    %cst_25 = arith.constant dense<0.000000e+00> : vector<8x8xf32>
    %39 = tpu.matmul %38, %37, %cst_25 {dimension_numbers = #tpu.dot_dimension_numbers<[1], [0], [0], [1], [0, 0, 1, 1], [], []>} : vector<8x32xbf16>, vector<32x8xbf16>, vector<8x8xf32> -> vector<8x8xf32>
    %c0_26 = arith.constant 0 : index
    %c0_27 = arith.constant 0 : index
    %c0_28 = arith.constant 0 : index
    %c0_29 = arith.constant 0 : index
    %40 = vector.load %arg9[%c0_26, %c0_27, %c0_28, %c0_29] : memref<1x4x1x8xf32, #tpu.memory_space<vmem>>, vector<1x1x1x8xf32>
    %41 = vector.shape_cast %40 : vector<1x1x1x8xf32> to vector<1x8xf32>
    %42 = vector.broadcast %41 : vector<1x8xf32> to vector<8x8xf32>
    %43 = arith.addf %39, %42 : vector<8x8xf32>
    %c0_30 = arith.constant 0 : index
    %c0_31 = arith.constant 0 : index
    %c0_32 = arith.constant 0 : index
    %c0_33 = arith.constant 0 : index
    %44 = vector.load %arg10[%c0_30, %c0_31, %c0_32, %c0_33] : memref<1x4x32x8xbf16, #tpu.memory_space<vmem>>, vector<1x1x32x8xbf16>
    %45 = vector.shape_cast %44 : vector<1x1x32x8xbf16> to vector<32x8xbf16>
    %46 = arith.truncf %27 : vector<8x32xf32> to vector<8x32xbf16>
    %cst_34 = arith.constant dense<0.000000e+00> : vector<8x8xf32>
    %47 = tpu.matmul %46, %45, %cst_34 {dimension_numbers = #tpu.dot_dimension_numbers<[1], [0], [0], [1], [0, 0, 1, 1], [], []>} : vector<8x32xbf16>, vector<32x8xbf16>, vector<8x8xf32> -> vector<8x8xf32>
    %c0_35 = arith.constant 0 : index
    %c0_36 = arith.constant 0 : index
    %c0_37 = arith.constant 0 : index
    %c0_38 = arith.constant 0 : index
    %48 = vector.load %arg11[%c0_35, %c0_36, %c0_37, %c0_38] : memref<1x4x1x8xf32, #tpu.memory_space<vmem>>, vector<1x1x1x8xf32>
    %49 = vector.shape_cast %48 : vector<1x1x1x8xf32> to vector<1x8xf32>
    %50 = vector.broadcast %49 : vector<1x8xf32> to vector<8x8xf32>
    %51 = arith.addf %47, %50 : vector<8x8xf32>
    %52 = arith.truncf %35 : vector<8x8xf32> to vector<8x8xbf16>
    %53 = arith.truncf %43 : vector<8x8xf32> to vector<8x8xbf16>
    %cst_39 = arith.constant dense<0.000000e+00> : vector<8x8xf32>
    %54 = tpu.matmul %52, %53, %cst_39 {dimension_numbers = #tpu.dot_dimension_numbers<[1], [1], [0], [0], [0, 0, 1, 0], [], []>} : vector<8x8xbf16>, vector<8x8xbf16>, vector<8x8xf32> -> vector<8x8xf32>
    %cst_40 = arith.constant dense<0xFF800000> : vector<8xf32>
    %55 = vector.multi_reduction <maximumf>, %54, %cst_40 [1] : vector<8x8xf32> to vector<8xf32>
    %56 = vector.shape_cast %55 : vector<8xf32> to vector<8x1xf32>
    %57 = vector.broadcast %56 : vector<8x1xf32> to vector<8x8xf32>
    %58 = arith.subf %54, %57 : vector<8x8xf32>
    %59 = math.exp %58 : vector<8x8xf32>
    %cst_41 = arith.constant dense<0.000000e+00> : vector<8xf32>
    %60 = vector.multi_reduction <add>, %59, %cst_41 [1] : vector<8x8xf32> to vector<8xf32>
    %61 = vector.shape_cast %60 : vector<8xf32> to vector<8x1xf32>
    %62 = tpu.reciprocal %61 {approx = true} : vector<8x1xf32> -> vector<8x1xf32>
    %63 = vector.broadcast %62 : vector<8x1xf32> to vector<8x8xf32>
    %64 = arith.mulf %59, %63 : vector<8x8xf32>
    %65 = arith.truncf %64 : vector<8x8xf32> to vector<8x8xbf16>
    %66 = arith.truncf %51 : vector<8x8xf32> to vector<8x8xbf16>
    %cst_42 = arith.constant dense<0.000000e+00> : vector<8x8xf32>
    %67 = tpu.matmul %65, %66, %cst_42 {dimension_numbers = #tpu.dot_dimension_numbers<[1], [0], [0], [1], [0, 0, 1, 1], [], []>} : vector<8x8xbf16>, vector<8x8xbf16>, vector<8x8xf32> -> vector<8x8xf32>
    %c0_43 = arith.constant 0 : index
    %c0_44 = arith.constant 0 : index
    %c0_45 = arith.constant 0 : index
    %c0_46 = arith.constant 0 : index
    %68 = vector.load %arg12[%c0_43, %c0_44, %c0_45, %c0_46] : memref<1x4x8x32xbf16, #tpu.memory_space<vmem>>, vector<1x1x8x32xbf16>
    %69 = vector.shape_cast %68 : vector<1x1x8x32xbf16> to vector<8x32xbf16>
    %70 = arith.truncf %67 : vector<8x8xf32> to vector<8x8xbf16>
    %cst_47 = arith.constant dense<0.000000e+00> : vector<8x32xf32>
    %71 = tpu.matmul %70, %69, %cst_47 {dimension_numbers = #tpu.dot_dimension_numbers<[1], [0], [0], [1], [0, 0, 1, 1], [], []>} : vector<8x8xbf16>, vector<8x32xbf16>, vector<8x32xf32> -> vector<8x32xf32>
    %c0_48 = arith.constant 0 : index
    %c1 = arith.constant 1 : index
    %c0_49 = arith.constant 0 : index
    %c0_50 = arith.constant 0 : index
    %72 = vector.load %arg6[%c0_48, %c1, %c0_49, %c0_50] : memref<1x4x32x8xbf16, #tpu.memory_space<vmem>>, vector<1x1x32x8xbf16>
    %73 = vector.shape_cast %72 : vector<1x1x32x8xbf16> to vector<32x8xbf16>
    %74 = arith.truncf %27 : vector<8x32xf32> to vector<8x32xbf16>
    %cst_51 = arith.constant dense<0.000000e+00> : vector<8x8xf32>
    %75 = tpu.matmul %74, %73, %cst_51 {dimension_numbers = #tpu.dot_dimension_numbers<[1], [0], [0], [1], [0, 0, 1, 1], [], []>} : vector<8x32xbf16>, vector<32x8xbf16>, vector<8x8xf32> -> vector<8x8xf32>
    %c0_52 = arith.constant 0 : index
    %c1_53 = arith.constant 1 : index
    %c0_54 = arith.constant 0 : index
    %c0_55 = arith.constant 0 : index
    %76 = vector.load %arg7[%c0_52, %c1_53, %c0_54, %c0_55] : memref<1x4x1x8xf32, #tpu.memory_space<vmem>>, vector<1x1x1x8xf32>
    %77 = vector.shape_cast %76 : vector<1x1x1x8xf32> to vector<1x8xf32>
    %78 = vector.broadcast %77 : vector<1x8xf32> to vector<8x8xf32>
    %79 = arith.addf %75, %78 : vector<8x8xf32>
    %c0_56 = arith.constant 0 : index
    %c1_57 = arith.constant 1 : index
    %c0_58 = arith.constant 0 : index
    %c0_59 = arith.constant 0 : index
    %80 = vector.load %arg8[%c0_56, %c1_57, %c0_58, %c0_59] : memref<1x4x32x8xbf16, #tpu.memory_space<vmem>>, vector<1x1x32x8xbf16>
    %81 = vector.shape_cast %80 : vector<1x1x32x8xbf16> to vector<32x8xbf16>
    %82 = arith.truncf %27 : vector<8x32xf32> to vector<8x32xbf16>
    %cst_60 = arith.constant dense<0.000000e+00> : vector<8x8xf32>
    %83 = tpu.matmul %82, %81, %cst_60 {dimension_numbers = #tpu.dot_dimension_numbers<[1], [0], [0], [1], [0, 0, 1, 1], [], []>} : vector<8x32xbf16>, vector<32x8xbf16>, vector<8x8xf32> -> vector<8x8xf32>
    %c0_61 = arith.constant 0 : index
    %c1_62 = arith.constant 1 : index
    %c0_63 = arith.constant 0 : index
    %c0_64 = arith.constant 0 : index
    %84 = vector.load %arg9[%c0_61, %c1_62, %c0_63, %c0_64] : memref<1x4x1x8xf32, #tpu.memory_space<vmem>>, vector<1x1x1x8xf32>
    %85 = vector.shape_cast %84 : vector<1x1x1x8xf32> to vector<1x8xf32>
    %86 = vector.broadcast %85 : vector<1x8xf32> to vector<8x8xf32>
    %87 = arith.addf %83, %86 : vector<8x8xf32>
    %c0_65 = arith.constant 0 : index
    %c1_66 = arith.constant 1 : index
    %c0_67 = arith.constant 0 : index
    %c0_68 = arith.constant 0 : index
    %88 = vector.load %arg10[%c0_65, %c1_66, %c0_67, %c0_68] : memref<1x4x32x8xbf16, #tpu.memory_space<vmem>>, vector<1x1x32x8xbf16>
    %89 = vector.shape_cast %88 : vector<1x1x32x8xbf16> to vector<32x8xbf16>
    %90 = arith.truncf %27 : vector<8x32xf32> to vector<8x32xbf16>
    %cst_69 = arith.constant dense<0.000000e+00> : vector<8x8xf32>
    %91 = tpu.matmul %90, %89, %cst_69 {dimension_numbers = #tpu.dot_dimension_numbers<[1], [0], [0], [1], [0, 0, 1, 1], [], []>} : vector<8x32xbf16>, vector<32x8xbf16>, vector<8x8xf32> -> vector<8x8xf32>
    %c0_70 = arith.constant 0 : index
    %c1_71 = arith.constant 1 : index
    %c0_72 = arith.constant 0 : index
    %c0_73 = arith.constant 0 : index
    %92 = vector.load %arg11[%c0_70, %c1_71, %c0_72, %c0_73] : memref<1x4x1x8xf32, #tpu.memory_space<vmem>>, vector<1x1x1x8xf32>
    %93 = vector.shape_cast %92 : vector<1x1x1x8xf32> to vector<1x8xf32>
    %94 = vector.broadcast %93 : vector<1x8xf32> to vector<8x8xf32>
    %95 = arith.addf %91, %94 : vector<8x8xf32>
    %96 = arith.truncf %79 : vector<8x8xf32> to vector<8x8xbf16>
    %97 = arith.truncf %87 : vector<8x8xf32> to vector<8x8xbf16>
    %cst_74 = arith.constant dense<0.000000e+00> : vector<8x8xf32>
    %98 = tpu.matmul %96, %97, %cst_74 {dimension_numbers = #tpu.dot_dimension_numbers<[1], [1], [0], [0], [0, 0, 1, 0], [], []>} : vector<8x8xbf16>, vector<8x8xbf16>, vector<8x8xf32> -> vector<8x8xf32>
    %cst_75 = arith.constant dense<0xFF800000> : vector<8xf32>
    %99 = vector.multi_reduction <maximumf>, %98, %cst_75 [1] : vector<8x8xf32> to vector<8xf32>
    %100 = vector.shape_cast %99 : vector<8xf32> to vector<8x1xf32>
    %101 = vector.broadcast %100 : vector<8x1xf32> to vector<8x8xf32>
    %102 = arith.subf %98, %101 : vector<8x8xf32>
    %103 = math.exp %102 : vector<8x8xf32>
    %cst_76 = arith.constant dense<0.000000e+00> : vector<8xf32>
    %104 = vector.multi_reduction <add>, %103, %cst_76 [1] : vector<8x8xf32> to vector<8xf32>
    %105 = vector.shape_cast %104 : vector<8xf32> to vector<8x1xf32>
    %106 = tpu.reciprocal %105 {approx = true} : vector<8x1xf32> -> vector<8x1xf32>
    %107 = vector.broadcast %106 : vector<8x1xf32> to vector<8x8xf32>
    %108 = arith.mulf %103, %107 : vector<8x8xf32>
    %109 = arith.truncf %108 : vector<8x8xf32> to vector<8x8xbf16>
    %110 = arith.truncf %95 : vector<8x8xf32> to vector<8x8xbf16>
    %cst_77 = arith.constant dense<0.000000e+00> : vector<8x8xf32>
    %111 = tpu.matmul %109, %110, %cst_77 {dimension_numbers = #tpu.dot_dimension_numbers<[1], [0], [0], [1], [0, 0, 1, 1], [], []>} : vector<8x8xbf16>, vector<8x8xbf16>, vector<8x8xf32> -> vector<8x8xf32>
    %c0_78 = arith.constant 0 : index
    %c1_79 = arith.constant 1 : index
    %c0_80 = arith.constant 0 : index
    %c0_81 = arith.constant 0 : index
    %112 = vector.load %arg12[%c0_78, %c1_79, %c0_80, %c0_81] : memref<1x4x8x32xbf16, #tpu.memory_space<vmem>>, vector<1x1x8x32xbf16>
    %113 = vector.shape_cast %112 : vector<1x1x8x32xbf16> to vector<8x32xbf16>
    %114 = arith.truncf %111 : vector<8x8xf32> to vector<8x8xbf16>
    %cst_82 = arith.constant dense<0.000000e+00> : vector<8x32xf32>
    %115 = tpu.matmul %114, %113, %cst_82 {dimension_numbers = #tpu.dot_dimension_numbers<[1], [0], [0], [1], [0, 0, 1, 1], [], []>} : vector<8x8xbf16>, vector<8x32xbf16>, vector<8x32xf32> -> vector<8x32xf32>
    %116 = arith.addf %71, %115 : vector<8x32xf32>
    %c0_83 = arith.constant 0 : index
    %c2 = arith.constant 2 : index
    %c0_84 = arith.constant 0 : index
    %c0_85 = arith.constant 0 : index
    %117 = vector.load %arg6[%c0_83, %c2, %c0_84, %c0_85] : memref<1x4x32x8xbf16, #tpu.memory_space<vmem>>, vector<1x1x32x8xbf16>
    %118 = vector.shape_cast %117 : vector<1x1x32x8xbf16> to vector<32x8xbf16>
    %119 = arith.truncf %27 : vector<8x32xf32> to vector<8x32xbf16>
    %cst_86 = arith.constant dense<0.000000e+00> : vector<8x8xf32>
    %120 = tpu.matmul %119, %118, %cst_86 {dimension_numbers = #tpu.dot_dimension_numbers<[1], [0], [0], [1], [0, 0, 1, 1], [], []>} : vector<8x32xbf16>, vector<32x8xbf16>, vector<8x8xf32> -> vector<8x8xf32>
    %c0_87 = arith.constant 0 : index
    %c2_88 = arith.constant 2 : index
    %c0_89 = arith.constant 0 : index
    %c0_90 = arith.constant 0 : index
    %121 = vector.load %arg7[%c0_87, %c2_88, %c0_89, %c0_90] : memref<1x4x1x8xf32, #tpu.memory_space<vmem>>, vector<1x1x1x8xf32>
    %122 = vector.shape_cast %121 : vector<1x1x1x8xf32> to vector<1x8xf32>
    %123 = vector.broadcast %122 : vector<1x8xf32> to vector<8x8xf32>
    %124 = arith.addf %120, %123 : vector<8x8xf32>
    %c0_91 = arith.constant 0 : index
    %c2_92 = arith.constant 2 : index
    %c0_93 = arith.constant 0 : index
    %c0_94 = arith.constant 0 : index
    %125 = vector.load %arg8[%c0_91, %c2_92, %c0_93, %c0_94] : memref<1x4x32x8xbf16, #tpu.memory_space<vmem>>, vector<1x1x32x8xbf16>
    %126 = vector.shape_cast %125 : vector<1x1x32x8xbf16> to vector<32x8xbf16>
    %127 = arith.truncf %27 : vector<8x32xf32> to vector<8x32xbf16>
    %cst_95 = arith.constant dense<0.000000e+00> : vector<8x8xf32>
    %128 = tpu.matmul %127, %126, %cst_95 {dimension_numbers = #tpu.dot_dimension_numbers<[1], [0], [0], [1], [0, 0, 1, 1], [], []>} : vector<8x32xbf16>, vector<32x8xbf16>, vector<8x8xf32> -> vector<8x8xf32>
    %c0_96 = arith.constant 0 : index
    %c2_97 = arith.constant 2 : index
    %c0_98 = arith.constant 0 : index
    %c0_99 = arith.constant 0 : index
    %129 = vector.load %arg9[%c0_96, %c2_97, %c0_98, %c0_99] : memref<1x4x1x8xf32, #tpu.memory_space<vmem>>, vector<1x1x1x8xf32>
    %130 = vector.shape_cast %129 : vector<1x1x1x8xf32> to vector<1x8xf32>
    %131 = vector.broadcast %130 : vector<1x8xf32> to vector<8x8xf32>
    %132 = arith.addf %128, %131 : vector<8x8xf32>
    %c0_100 = arith.constant 0 : index
    %c2_101 = arith.constant 2 : index
    %c0_102 = arith.constant 0 : index
    %c0_103 = arith.constant 0 : index
    %133 = vector.load %arg10[%c0_100, %c2_101, %c0_102, %c0_103] : memref<1x4x32x8xbf16, #tpu.memory_space<vmem>>, vector<1x1x32x8xbf16>
    %134 = vector.shape_cast %133 : vector<1x1x32x8xbf16> to vector<32x8xbf16>
    %135 = arith.truncf %27 : vector<8x32xf32> to vector<8x32xbf16>
    %cst_104 = arith.constant dense<0.000000e+00> : vector<8x8xf32>
    %136 = tpu.matmul %135, %134, %cst_104 {dimension_numbers = #tpu.dot_dimension_numbers<[1], [0], [0], [1], [0, 0, 1, 1], [], []>} : vector<8x32xbf16>, vector<32x8xbf16>, vector<8x8xf32> -> vector<8x8xf32>
    %c0_105 = arith.constant 0 : index
    %c2_106 = arith.constant 2 : index
    %c0_107 = arith.constant 0 : index
    %c0_108 = arith.constant 0 : index
    %137 = vector.load %arg11[%c0_105, %c2_106, %c0_107, %c0_108] : memref<1x4x1x8xf32, #tpu.memory_space<vmem>>, vector<1x1x1x8xf32>
    %138 = vector.shape_cast %137 : vector<1x1x1x8xf32> to vector<1x8xf32>
    %139 = vector.broadcast %138 : vector<1x8xf32> to vector<8x8xf32>
    %140 = arith.addf %136, %139 : vector<8x8xf32>
    %141 = arith.truncf %124 : vector<8x8xf32> to vector<8x8xbf16>
    %142 = arith.truncf %132 : vector<8x8xf32> to vector<8x8xbf16>
    %cst_109 = arith.constant dense<0.000000e+00> : vector<8x8xf32>
    %143 = tpu.matmul %141, %142, %cst_109 {dimension_numbers = #tpu.dot_dimension_numbers<[1], [1], [0], [0], [0, 0, 1, 0], [], []>} : vector<8x8xbf16>, vector<8x8xbf16>, vector<8x8xf32> -> vector<8x8xf32>
    %cst_110 = arith.constant dense<0xFF800000> : vector<8xf32>
    %144 = vector.multi_reduction <maximumf>, %143, %cst_110 [1] : vector<8x8xf32> to vector<8xf32>
    %145 = vector.shape_cast %144 : vector<8xf32> to vector<8x1xf32>
    %146 = vector.broadcast %145 : vector<8x1xf32> to vector<8x8xf32>
    %147 = arith.subf %143, %146 : vector<8x8xf32>
    %148 = math.exp %147 : vector<8x8xf32>
    %cst_111 = arith.constant dense<0.000000e+00> : vector<8xf32>
    %149 = vector.multi_reduction <add>, %148, %cst_111 [1] : vector<8x8xf32> to vector<8xf32>
    %150 = vector.shape_cast %149 : vector<8xf32> to vector<8x1xf32>
    %151 = tpu.reciprocal %150 {approx = true} : vector<8x1xf32> -> vector<8x1xf32>
    %152 = vector.broadcast %151 : vector<8x1xf32> to vector<8x8xf32>
    %153 = arith.mulf %148, %152 : vector<8x8xf32>
    %154 = arith.truncf %153 : vector<8x8xf32> to vector<8x8xbf16>
    %155 = arith.truncf %140 : vector<8x8xf32> to vector<8x8xbf16>
    %cst_112 = arith.constant dense<0.000000e+00> : vector<8x8xf32>
    %156 = tpu.matmul %154, %155, %cst_112 {dimension_numbers = #tpu.dot_dimension_numbers<[1], [0], [0], [1], [0, 0, 1, 1], [], []>} : vector<8x8xbf16>, vector<8x8xbf16>, vector<8x8xf32> -> vector<8x8xf32>
    %c0_113 = arith.constant 0 : index
    %c2_114 = arith.constant 2 : index
    %c0_115 = arith.constant 0 : index
    %c0_116 = arith.constant 0 : index
    %157 = vector.load %arg12[%c0_113, %c2_114, %c0_115, %c0_116] : memref<1x4x8x32xbf16, #tpu.memory_space<vmem>>, vector<1x1x8x32xbf16>
    %158 = vector.shape_cast %157 : vector<1x1x8x32xbf16> to vector<8x32xbf16>
    %159 = arith.truncf %156 : vector<8x8xf32> to vector<8x8xbf16>
    %cst_117 = arith.constant dense<0.000000e+00> : vector<8x32xf32>
    %160 = tpu.matmul %159, %158, %cst_117 {dimension_numbers = #tpu.dot_dimension_numbers<[1], [0], [0], [1], [0, 0, 1, 1], [], []>} : vector<8x8xbf16>, vector<8x32xbf16>, vector<8x32xf32> -> vector<8x32xf32>
    %161 = arith.addf %116, %160 : vector<8x32xf32>
    %c0_118 = arith.constant 0 : index
    %c3 = arith.constant 3 : index
    %c0_119 = arith.constant 0 : index
    %c0_120 = arith.constant 0 : index
    %162 = vector.load %arg6[%c0_118, %c3, %c0_119, %c0_120] : memref<1x4x32x8xbf16, #tpu.memory_space<vmem>>, vector<1x1x32x8xbf16>
    %163 = vector.shape_cast %162 : vector<1x1x32x8xbf16> to vector<32x8xbf16>
    %164 = arith.truncf %27 : vector<8x32xf32> to vector<8x32xbf16>
    %cst_121 = arith.constant dense<0.000000e+00> : vector<8x8xf32>
    %165 = tpu.matmul %164, %163, %cst_121 {dimension_numbers = #tpu.dot_dimension_numbers<[1], [0], [0], [1], [0, 0, 1, 1], [], []>} : vector<8x32xbf16>, vector<32x8xbf16>, vector<8x8xf32> -> vector<8x8xf32>
    %c0_122 = arith.constant 0 : index
    %c3_123 = arith.constant 3 : index
    %c0_124 = arith.constant 0 : index
    %c0_125 = arith.constant 0 : index
    %166 = vector.load %arg7[%c0_122, %c3_123, %c0_124, %c0_125] : memref<1x4x1x8xf32, #tpu.memory_space<vmem>>, vector<1x1x1x8xf32>
    %167 = vector.shape_cast %166 : vector<1x1x1x8xf32> to vector<1x8xf32>
    %168 = vector.broadcast %167 : vector<1x8xf32> to vector<8x8xf32>
    %169 = arith.addf %165, %168 : vector<8x8xf32>
    %c0_126 = arith.constant 0 : index
    %c3_127 = arith.constant 3 : index
    %c0_128 = arith.constant 0 : index
    %c0_129 = arith.constant 0 : index
    %170 = vector.load %arg8[%c0_126, %c3_127, %c0_128, %c0_129] : memref<1x4x32x8xbf16, #tpu.memory_space<vmem>>, vector<1x1x32x8xbf16>
    %171 = vector.shape_cast %170 : vector<1x1x32x8xbf16> to vector<32x8xbf16>
    %172 = arith.truncf %27 : vector<8x32xf32> to vector<8x32xbf16>
    %cst_130 = arith.constant dense<0.000000e+00> : vector<8x8xf32>
    %173 = tpu.matmul %172, %171, %cst_130 {dimension_numbers = #tpu.dot_dimension_numbers<[1], [0], [0], [1], [0, 0, 1, 1], [], []>} : vector<8x32xbf16>, vector<32x8xbf16>, vector<8x8xf32> -> vector<8x8xf32>
    %c0_131 = arith.constant 0 : index
    %c3_132 = arith.constant 3 : index
    %c0_133 = arith.constant 0 : index
    %c0_134 = arith.constant 0 : index
    %174 = vector.load %arg9[%c0_131, %c3_132, %c0_133, %c0_134] : memref<1x4x1x8xf32, #tpu.memory_space<vmem>>, vector<1x1x1x8xf32>
    %175 = vector.shape_cast %174 : vector<1x1x1x8xf32> to vector<1x8xf32>
    %176 = vector.broadcast %175 : vector<1x8xf32> to vector<8x8xf32>
    %177 = arith.addf %173, %176 : vector<8x8xf32>
    %c0_135 = arith.constant 0 : index
    %c3_136 = arith.constant 3 : index
    %c0_137 = arith.constant 0 : index
    %c0_138 = arith.constant 0 : index
    %178 = vector.load %arg10[%c0_135, %c3_136, %c0_137, %c0_138] : memref<1x4x32x8xbf16, #tpu.memory_space<vmem>>, vector<1x1x32x8xbf16>
    %179 = vector.shape_cast %178 : vector<1x1x32x8xbf16> to vector<32x8xbf16>
    %180 = arith.truncf %27 : vector<8x32xf32> to vector<8x32xbf16>
    %cst_139 = arith.constant dense<0.000000e+00> : vector<8x8xf32>
    %181 = tpu.matmul %180, %179, %cst_139 {dimension_numbers = #tpu.dot_dimension_numbers<[1], [0], [0], [1], [0, 0, 1, 1], [], []>} : vector<8x32xbf16>, vector<32x8xbf16>, vector<8x8xf32> -> vector<8x8xf32>
    %c0_140 = arith.constant 0 : index
    %c3_141 = arith.constant 3 : index
    %c0_142 = arith.constant 0 : index
    %c0_143 = arith.constant 0 : index
    %182 = vector.load %arg11[%c0_140, %c3_141, %c0_142, %c0_143] : memref<1x4x1x8xf32, #tpu.memory_space<vmem>>, vector<1x1x1x8xf32>
    %183 = vector.shape_cast %182 : vector<1x1x1x8xf32> to vector<1x8xf32>
    %184 = vector.broadcast %183 : vector<1x8xf32> to vector<8x8xf32>
    %185 = arith.addf %181, %184 : vector<8x8xf32>
    %186 = arith.truncf %169 : vector<8x8xf32> to vector<8x8xbf16>
    %187 = arith.truncf %177 : vector<8x8xf32> to vector<8x8xbf16>
    %cst_144 = arith.constant dense<0.000000e+00> : vector<8x8xf32>
    %188 = tpu.matmul %186, %187, %cst_144 {dimension_numbers = #tpu.dot_dimension_numbers<[1], [1], [0], [0], [0, 0, 1, 0], [], []>} : vector<8x8xbf16>, vector<8x8xbf16>, vector<8x8xf32> -> vector<8x8xf32>
    %cst_145 = arith.constant dense<0xFF800000> : vector<8xf32>
    %189 = vector.multi_reduction <maximumf>, %188, %cst_145 [1] : vector<8x8xf32> to vector<8xf32>
    %190 = vector.shape_cast %189 : vector<8xf32> to vector<8x1xf32>
    %191 = vector.broadcast %190 : vector<8x1xf32> to vector<8x8xf32>
    %192 = arith.subf %188, %191 : vector<8x8xf32>
    %193 = math.exp %192 : vector<8x8xf32>
    %cst_146 = arith.constant dense<0.000000e+00> : vector<8xf32>
    %194 = vector.multi_reduction <add>, %193, %cst_146 [1] : vector<8x8xf32> to vector<8xf32>
    %195 = vector.shape_cast %194 : vector<8xf32> to vector<8x1xf32>
    %196 = tpu.reciprocal %195 {approx = true} : vector<8x1xf32> -> vector<8x1xf32>
    %197 = vector.broadcast %196 : vector<8x1xf32> to vector<8x8xf32>
    %198 = arith.mulf %193, %197 : vector<8x8xf32>
    %199 = arith.truncf %198 : vector<8x8xf32> to vector<8x8xbf16>
    %200 = arith.truncf %185 : vector<8x8xf32> to vector<8x8xbf16>
    %cst_147 = arith.constant dense<0.000000e+00> : vector<8x8xf32>
    %201 = tpu.matmul %199, %200, %cst_147 {dimension_numbers = #tpu.dot_dimension_numbers<[1], [0], [0], [1], [0, 0, 1, 1], [], []>} : vector<8x8xbf16>, vector<8x8xbf16>, vector<8x8xf32> -> vector<8x8xf32>
    %c0_148 = arith.constant 0 : index
    %c3_149 = arith.constant 3 : index
    %c0_150 = arith.constant 0 : index
    %c0_151 = arith.constant 0 : index
    %202 = vector.load %arg12[%c0_148, %c3_149, %c0_150, %c0_151] : memref<1x4x8x32xbf16, #tpu.memory_space<vmem>>, vector<1x1x8x32xbf16>
    %203 = vector.shape_cast %202 : vector<1x1x8x32xbf16> to vector<8x32xbf16>
    %204 = arith.truncf %201 : vector<8x8xf32> to vector<8x8xbf16>
    %cst_152 = arith.constant dense<0.000000e+00> : vector<8x32xf32>
    %205 = tpu.matmul %204, %203, %cst_152 {dimension_numbers = #tpu.dot_dimension_numbers<[1], [0], [0], [1], [0, 0, 1, 1], [], []>} : vector<8x8xbf16>, vector<8x32xbf16>, vector<8x32xf32> -> vector<8x32xf32>
    %206 = arith.addf %161, %205 : vector<8x32xf32>
    %207 = arith.addf %3, %206 : vector<8x32xf32>
    %c0_153 = arith.constant 0 : index
    %c0_154 = arith.constant 0 : index
    %c0_155 = arith.constant 0 : index
    %208 = vector.load %arg13[%c0_153, %c0_154, %c0_155] : memref<1x1x32xf32, #tpu.memory_space<vmem>>, vector<1x1x32xf32>
    %209 = vector.shape_cast %208 : vector<1x1x32xf32> to vector<1x32xf32>
    %210 = vector.broadcast %209 : vector<1x32xf32> to vector<8x32xf32>
    %211 = arith.addf %207, %210 : vector<8x32xf32>
    %c0_156 = arith.constant 0 : index
    %c0_157 = arith.constant 0 : index
    %c0_158 = arith.constant 0 : index
    %212 = vector.load %arg14[%c0_156, %c0_157, %c0_158] : memref<1x1x32xf32, #tpu.memory_space<vmem>>, vector<1x1x32xf32>
    %213 = vector.shape_cast %212 : vector<1x1x32xf32> to vector<1x32xf32>
    %c0_159 = arith.constant 0 : index
    %c0_160 = arith.constant 0 : index
    %c0_161 = arith.constant 0 : index
    %214 = vector.load %arg15[%c0_159, %c0_160, %c0_161] : memref<1x1x32xf32, #tpu.memory_space<vmem>>, vector<1x1x32xf32>
    %215 = vector.shape_cast %214 : vector<1x1x32xf32> to vector<1x32xf32>
    %cst_162 = arith.constant dense<0.000000e+00> : vector<8xf32>
    %216 = vector.multi_reduction <add>, %211, %cst_162 [1] : vector<8x32xf32> to vector<8xf32>
    %217 = vector.shape_cast %216 : vector<8xf32> to vector<8x1xf32>
    %cst_163 = arith.constant 3.200000e+01 : f32
    %218 = vector.broadcast %cst_163 : f32 to vector<8x1xf32>
    %219 = arith.divf %217, %218 : vector<8x1xf32>
    %220 = vector.broadcast %219 : vector<8x1xf32> to vector<8x32xf32>
    %221 = arith.subf %211, %220 : vector<8x32xf32>
    %222 = arith.mulf %221, %221 : vector<8x32xf32>
    %cst_164 = arith.constant dense<0.000000e+00> : vector<8xf32>
    %223 = vector.multi_reduction <add>, %222, %cst_164 [1] : vector<8x32xf32> to vector<8xf32>
    %224 = vector.shape_cast %223 : vector<8xf32> to vector<8x1xf32>
    %cst_165 = arith.constant 3.200000e+01 : f32
    %225 = vector.broadcast %cst_165 : f32 to vector<8x1xf32>
    %226 = arith.divf %224, %225 : vector<8x1xf32>
    %cst_166 = arith.constant 9.99999974E-6 : f32
    %227 = vector.broadcast %cst_166 : f32 to vector<8x1xf32>
    %228 = arith.addf %226, %227 : vector<8x1xf32>
    %229 = math.rsqrt %228 : vector<8x1xf32>
    %230 = vector.broadcast %229 : vector<8x1xf32> to vector<8x32xf32>
    %231 = arith.mulf %221, %230 : vector<8x32xf32>
    %232 = vector.broadcast %213 : vector<1x32xf32> to vector<8x32xf32>
    %233 = arith.mulf %231, %232 : vector<8x32xf32>
    %234 = vector.broadcast %215 : vector<1x32xf32> to vector<8x32xf32>
    %235 = arith.addf %233, %234 : vector<8x32xf32>
    %c0_167 = arith.constant 0 : index
    %c0_168 = arith.constant 0 : index
    %c0_169 = arith.constant 0 : index
    %236 = vector.load %arg16[%c0_167, %c0_168, %c0_169] : memref<1x32x128xbf16, #tpu.memory_space<vmem>>, vector<1x32x128xbf16>
    %237 = vector.shape_cast %236 : vector<1x32x128xbf16> to vector<32x128xbf16>
    %238 = arith.truncf %235 : vector<8x32xf32> to vector<8x32xbf16>
    %cst_170 = arith.constant dense<0.000000e+00> : vector<8x128xf32>
    %239 = tpu.matmul %238, %237, %cst_170 {dimension_numbers = #tpu.dot_dimension_numbers<[1], [0], [0], [1], [0, 0, 1, 1], [], []>} : vector<8x32xbf16>, vector<32x128xbf16>, vector<8x128xf32> -> vector<8x128xf32>
    %c0_171 = arith.constant 0 : index
    %c0_172 = arith.constant 0 : index
    %c0_173 = arith.constant 0 : index
    %240 = vector.load %arg17[%c0_171, %c0_172, %c0_173] : memref<1x1x128xf32, #tpu.memory_space<vmem>>, vector<1x1x128xf32>
    %241 = vector.shape_cast %240 : vector<1x1x128xf32> to vector<1x128xf32>
    %242 = vector.broadcast %241 : vector<1x128xf32> to vector<8x128xf32>
    %243 = arith.addf %239, %242 : vector<8x128xf32>
    %244 = arith.mulf %243, %243 : vector<8x128xf32>
    %245 = arith.mulf %243, %244 : vector<8x128xf32>
    %cst_174 = arith.constant 4.471500e-02 : f32
    %246 = vector.broadcast %cst_174 : f32 to vector<8x128xf32>
    %247 = arith.mulf %246, %245 : vector<8x128xf32>
    %248 = arith.addf %243, %247 : vector<8x128xf32>
    %cst_175 = arith.constant 0.797884583 : f32
    %249 = vector.broadcast %cst_175 : f32 to vector<8x128xf32>
    %250 = arith.mulf %249, %248 : vector<8x128xf32>
    %251 = math.tanh %250 : vector<8x128xf32>
    %cst_176 = arith.constant 1.000000e+00 : f32
    %252 = vector.broadcast %cst_176 : f32 to vector<8x128xf32>
    %253 = arith.addf %252, %251 : vector<8x128xf32>
    %cst_177 = arith.constant 5.000000e-01 : f32
    %254 = vector.broadcast %cst_177 : f32 to vector<8x128xf32>
    %255 = arith.mulf %254, %253 : vector<8x128xf32>
    %256 = arith.mulf %243, %255 : vector<8x128xf32>
    %c0_178 = arith.constant 0 : index
    %c0_179 = arith.constant 0 : index
    %c0_180 = arith.constant 0 : index
    %257 = vector.load %arg18[%c0_178, %c0_179, %c0_180] : memref<1x128x32xbf16, #tpu.memory_space<vmem>>, vector<1x128x32xbf16>
    %258 = vector.shape_cast %257 : vector<1x128x32xbf16> to vector<128x32xbf16>
    %259 = arith.truncf %256 : vector<8x128xf32> to vector<8x128xbf16>
    %cst_181 = arith.constant dense<0.000000e+00> : vector<8x32xf32>
    %260 = tpu.matmul %259, %258, %cst_181 {dimension_numbers = #tpu.dot_dimension_numbers<[1], [0], [0], [1], [0, 0, 1, 1], [], []>} : vector<8x128xbf16>, vector<128x32xbf16>, vector<8x32xf32> -> vector<8x32xf32>
    %261 = arith.addf %211, %260 : vector<8x32xf32>
    %c0_182 = arith.constant 0 : index
    %c0_183 = arith.constant 0 : index
    %c0_184 = arith.constant 0 : index
    %262 = vector.load %arg19[%c0_182, %c0_183, %c0_184] : memref<1x1x32xf32, #tpu.memory_space<vmem>>, vector<1x1x32xf32>
    %263 = vector.shape_cast %262 : vector<1x1x32xf32> to vector<1x32xf32>
    %264 = vector.broadcast %263 : vector<1x32xf32> to vector<8x32xf32>
    %265 = arith.addf %261, %264 : vector<8x32xf32>
    %c0_185 = arith.constant 0 : index
    %c0_186 = arith.constant 0 : index
    %266 = vector.load %arg30[%c0_185, %c0_186] : memref<8x32xf32, #tpu.memory_space<vmem>>, vector<8x32xf32>
    tpu.vector_store %arg30[%c0_185, %c0_186], %265 {strides = array<i32>} : memref<8x32xf32, #tpu.memory_space<vmem>>, vector<8x32xf32>,
    %c1_i32 = arith.constant 1 : i32
    %267 = arith.cmpi eq, %arg0, %c1_i32 : i32
    %268 = arith.extui %267 : i1 to i32
    %c0_i32_187 = arith.constant 0 : i32
    %269 = arith.cmpi ne, %268, %c0_i32_187 : i32
    scf.if %269 {
      %c0_188 = arith.constant 0 : index
      %c0_189 = arith.constant 0 : index
      %270 = vector.load %arg30[%c0_188, %c0_189] : memref<8x32xf32, #tpu.memory_space<vmem>>, vector<8x32xf32>
      %c0_190 = arith.constant 0 : index
      %c0_191 = arith.constant 0 : index
      %271 = vector.load %arg20[%c0_190, %c0_191] : memref<1x32xf32, #tpu.memory_space<vmem>>, vector<1x32xf32>
      %c0_192 = arith.constant 0 : index
      %c0_193 = arith.constant 0 : index
      %272 = vector.load %arg21[%c0_192, %c0_193] : memref<1x32xf32, #tpu.memory_space<vmem>>, vector<1x32xf32>
      %cst_194 = arith.constant dense<0.000000e+00> : vector<8xf32>
      %273 = vector.multi_reduction <add>, %270, %cst_194 [1] : vector<8x32xf32> to vector<8xf32>
      %274 = vector.shape_cast %273 : vector<8xf32> to vector<8x1xf32>
      %cst_195 = arith.constant 3.200000e+01 : f32
      %275 = vector.broadcast %cst_195 : f32 to vector<8x1xf32>
      %276 = arith.divf %274, %275 : vector<8x1xf32>
      %277 = vector.broadcast %276 : vector<8x1xf32> to vector<8x32xf32>
      %278 = arith.subf %270, %277 : vector<8x32xf32>
      %279 = arith.mulf %278, %278 : vector<8x32xf32>
      %cst_196 = arith.constant dense<0.000000e+00> : vector<8xf32>
      %280 = vector.multi_reduction <add>, %279, %cst_196 [1] : vector<8x32xf32> to vector<8xf32>
      %281 = vector.shape_cast %280 : vector<8xf32> to vector<8x1xf32>
      %cst_197 = arith.constant 3.200000e+01 : f32
      %282 = vector.broadcast %cst_197 : f32 to vector<8x1xf32>
      %283 = arith.divf %281, %282 : vector<8x1xf32>
      %cst_198 = arith.constant 9.99999974E-6 : f32
      %284 = vector.broadcast %cst_198 : f32 to vector<8x1xf32>
      %285 = arith.addf %283, %284 : vector<8x1xf32>
      %286 = math.rsqrt %285 : vector<8x1xf32>
      %287 = vector.broadcast %286 : vector<8x1xf32> to vector<8x32xf32>
      %288 = arith.mulf %278, %287 : vector<8x32xf32>
      %289 = vector.broadcast %271 : vector<1x32xf32> to vector<8x32xf32>
      %290 = arith.mulf %288, %289 : vector<8x32xf32>
      %291 = vector.broadcast %272 : vector<1x32xf32> to vector<8x32xf32>
      %292 = arith.addf %290, %291 : vector<8x32xf32>
      %c0_199 = arith.constant 0 : index
      %c0_200 = arith.constant 0 : index
      %293 = vector.load %arg22[%c0_199, %c0_200] : memref<32x64xbf16, #tpu.memory_space<vmem>>, vector<32x64xbf16>
      %294 = arith.truncf %292 : vector<8x32xf32> to vector<8x32xbf16>
      %cst_201 = arith.constant dense<0.000000e+00> : vector<8x64xf32>
      %295 = tpu.matmul %294, %293, %cst_201 {dimension_numbers = #tpu.dot_dimension_numbers<[1], [0], [0], [1], [0, 0, 1, 1], [], []>} : vector<8x32xbf16>, vector<32x64xbf16>, vector<8x64xf32> -> vector<8x64xf32>
      %c0_202 = arith.constant 0 : index
      %c0_203 = arith.constant 0 : index
      %296 = vector.load %arg23[%c0_202, %c0_203] : memref<1x64xf32, #tpu.memory_space<vmem>>, vector<1x64xf32>
      %297 = vector.broadcast %296 : vector<1x64xf32> to vector<8x64xf32>
      %298 = arith.addf %295, %297 : vector<8x64xf32>
      %299 = arith.mulf %298, %298 : vector<8x64xf32>
      %300 = arith.mulf %298, %299 : vector<8x64xf32>
      %cst_204 = arith.constant 4.471500e-02 : f32
      %301 = vector.broadcast %cst_204 : f32 to vector<8x64xf32>
      %302 = arith.mulf %301, %300 : vector<8x64xf32>
      %303 = arith.addf %298, %302 : vector<8x64xf32>
      %cst_205 = arith.constant 0.797884583 : f32
      %304 = vector.broadcast %cst_205 : f32 to vector<8x64xf32>
      %305 = arith.mulf %304, %303 : vector<8x64xf32>
      %306 = math.tanh %305 : vector<8x64xf32>
      %cst_206 = arith.constant 1.000000e+00 : f32
      %307 = vector.broadcast %cst_206 : f32 to vector<8x64xf32>
      %308 = arith.addf %307, %306 : vector<8x64xf32>
      %cst_207 = arith.constant 5.000000e-01 : f32
      %309 = vector.broadcast %cst_207 : f32 to vector<8x64xf32>
      %310 = arith.mulf %309, %308 : vector<8x64xf32>
      %311 = arith.mulf %298, %310 : vector<8x64xf32>
      %c0_208 = arith.constant 0 : index
      %c0_209 = arith.constant 0 : index
      %312 = vector.load %arg24[%c0_208, %c0_209] : memref<64x64xbf16, #tpu.memory_space<vmem>>, vector<64x64xbf16>
      %313 = arith.truncf %311 : vector<8x64xf32> to vector<8x64xbf16>
      %cst_210 = arith.constant dense<0.000000e+00> : vector<8x64xf32>
      %314 = tpu.matmul %313, %312, %cst_210 {dimension_numbers = #tpu.dot_dimension_numbers<[1], [0], [0], [1], [0, 0, 1, 1], [], []>} : vector<8x64xbf16>, vector<64x64xbf16>, vector<8x64xf32> -> vector<8x64xf32>
      %c0_211 = arith.constant 0 : index
      %c0_212 = arith.constant 0 : index
      %315 = vector.load %arg25[%c0_211, %c0_212] : memref<1x64xf32, #tpu.memory_space<vmem>>, vector<1x64xf32>
      %316 = vector.broadcast %315 : vector<1x64xf32> to vector<8x64xf32>
      %317 = arith.addf %314, %316 : vector<8x64xf32>
      %318 = arith.mulf %317, %317 : vector<8x64xf32>
      %319 = arith.mulf %317, %318 : vector<8x64xf32>
      %cst_213 = arith.constant 4.471500e-02 : f32
      %320 = vector.broadcast %cst_213 : f32 to vector<8x64xf32>
      %321 = arith.mulf %320, %319 : vector<8x64xf32>
      %322 = arith.addf %317, %321 : vector<8x64xf32>
      %cst_214 = arith.constant 0.797884583 : f32
      %323 = vector.broadcast %cst_214 : f32 to vector<8x64xf32>
      %324 = arith.mulf %323, %322 : vector<8x64xf32>
      %325 = math.tanh %324 : vector<8x64xf32>
      %cst_215 = arith.constant 1.000000e+00 : f32
      %326 = vector.broadcast %cst_215 : f32 to vector<8x64xf32>
      %327 = arith.addf %326, %325 : vector<8x64xf32>
      %cst_216 = arith.constant 5.000000e-01 : f32
      %328 = vector.broadcast %cst_216 : f32 to vector<8x64xf32>
      %329 = arith.mulf %328, %327 : vector<8x64xf32>
      %330 = arith.mulf %317, %329 : vector<8x64xf32>
      %c0_217 = arith.constant 0 : index
      %c0_218 = arith.constant 0 : index
      %331 = vector.load %arg26[%c0_217, %c0_218] : memref<64x16xbf16, #tpu.memory_space<vmem>>, vector<64x16xbf16>
      %332 = arith.truncf %330 : vector<8x64xf32> to vector<8x64xbf16>
      %cst_219 = arith.constant dense<0.000000e+00> : vector<8x16xf32>
      %333 = tpu.matmul %332, %331, %cst_219 {dimension_numbers = #tpu.dot_dimension_numbers<[1], [0], [0], [1], [0, 0, 1, 1], [], []>} : vector<8x64xbf16>, vector<64x16xbf16>, vector<8x16xf32> -> vector<8x16xf32>
      %c0_220 = arith.constant 0 : index
      %c0_221 = arith.constant 0 : index
      %334 = vector.load %arg27[%c0_220, %c0_221] : memref<1x16xf32, #tpu.memory_space<vmem>>, vector<1x16xf32>
      %335 = vector.broadcast %334 : vector<1x16xf32> to vector<8x16xf32>
      %336 = arith.addf %333, %335 : vector<8x16xf32>
      %337 = arith.mulf %336, %336 : vector<8x16xf32>
      %cst_222 = arith.constant dense<0.000000e+00> : vector<8xf32>
      %338 = vector.multi_reduction <add>, %337, %cst_222 [1] : vector<8x16xf32> to vector<8xf32>
      %339 = vector.shape_cast %338 : vector<8xf32> to vector<8x1xf32>
      %cst_223 = arith.constant 1.000000e-24 : f32
      %340 = vector.broadcast %cst_223 : f32 to vector<8x1xf32>
      %341 = arith.maximumf %339, %340 : vector<8x1xf32>
      %342 = math.rsqrt %341 : vector<8x1xf32>
      %343 = vector.broadcast %342 : vector<8x1xf32> to vector<8x16xf32>
      %344 = arith.mulf %336, %343 : vector<8x16xf32>
      %c0_224 = arith.constant 0 : index
      %c0_225 = arith.constant 0 : index
      %345 = vector.load %arg28[%c0_224, %c0_225] : memref<16x64xbf16, #tpu.memory_space<vmem>>, vector<16x64xbf16>
      %346 = arith.truncf %344 : vector<8x16xf32> to vector<8x16xbf16>
      %cst_226 = arith.constant dense<0.000000e+00> : vector<8x64xf32>
      %347 = tpu.matmul %346, %345, %cst_226 {dimension_numbers = #tpu.dot_dimension_numbers<[1], [0], [0], [1], [0, 0, 1, 1], [], []>} : vector<8x16xbf16>, vector<16x64xbf16>, vector<8x64xf32> -> vector<8x64xf32>
      %c0_227 = arith.constant 0 : index
      %c0_228 = arith.constant 0 : index
      %348 = vector.load %arg29[%c0_227, %c0_228] : memref<8x64xf32, #tpu.memory_space<vmem>>, vector<8x64xf32>
      tpu.vector_store %arg29[%c0_227, %c0_228], %347 {strides = array<i32>} : memref<8x64xf32, #tpu.memory_space<vmem>>, vector<8x64xf32>,
    } else {
    }
    return
  }
  func.func @transform_0(%arg0: i32) -> (i32, i32) {
    %c0_i32 = arith.constant 0 : i32
    %c0_i32_0 = arith.constant 0 : i32
    %c0_i32_1 = arith.constant 0 : i32
    return %c0_i32, %c0_i32_0 : i32, i32
  }
  func.func @transform_1(%arg0: i32) -> (i32, i32) {
    %c0_i32 = arith.constant 0 : i32
    %c0_i32_0 = arith.constant 0 : i32
    %c0_i32_1 = arith.constant 0 : i32
    return %c0_i32, %c0_i32_0 : i32, i32
  }
  func.func @transform_2(%arg0: i32) -> (i32, i32) {
    %c0_i32 = arith.constant 0 : i32
    %c0_i32_0 = arith.constant 0 : i32
    %c0_i32_1 = arith.constant 0 : i32
    return %c0_i32, %c0_i32_0 : i32, i32
  }
  func.func @transform_3(%arg0: i32) -> (i32, i32, i32) {
    %c0_i32 = arith.constant 0 : i32
    %c0_i32_0 = arith.constant 0 : i32
    %c0_i32_1 = arith.constant 0 : i32
    return %arg0, %c0_i32, %c0_i32_0 : i32, i32, i32
  }
  func.func @transform_4(%arg0: i32) -> (i32, i32, i32) {
    %c0_i32 = arith.constant 0 : i32
    %c0_i32_0 = arith.constant 0 : i32
    %c0_i32_1 = arith.constant 0 : i32
    return %arg0, %c0_i32, %c0_i32_0 : i32, i32, i32
  }
  func.func @transform_5(%arg0: i32) -> (i32, i32, i32, i32) {
    %c0_i32 = arith.constant 0 : i32
    %c0_i32_0 = arith.constant 0 : i32
    %c0_i32_1 = arith.constant 0 : i32
    %c0_i32_2 = arith.constant 0 : i32
    return %arg0, %c0_i32, %c0_i32_0, %c0_i32_1 : i32, i32, i32, i32
  }
  func.func @transform_6(%arg0: i32) -> (i32, i32, i32, i32) {
    %c0_i32 = arith.constant 0 : i32
    %c0_i32_0 = arith.constant 0 : i32
    %c0_i32_1 = arith.constant 0 : i32
    %c0_i32_2 = arith.constant 0 : i32
    return %arg0, %c0_i32, %c0_i32_0, %c0_i32_1 : i32, i32, i32, i32
  }
  func.func @transform_7(%arg0: i32) -> (i32, i32, i32, i32) {
    %c0_i32 = arith.constant 0 : i32
    %c0_i32_0 = arith.constant 0 : i32
    %c0_i32_1 = arith.constant 0 : i32
    %c0_i32_2 = arith.constant 0 : i32
    return %arg0, %c0_i32, %c0_i32_0, %c0_i32_1 : i32, i32, i32, i32
  }
  func.func @transform_8(%arg0: i32) -> (i32, i32, i32, i32) {
    %c0_i32 = arith.constant 0 : i32
    %c0_i32_0 = arith.constant 0 : i32
    %c0_i32_1 = arith.constant 0 : i32
    %c0_i32_2 = arith.constant 0 : i32
    return %arg0, %c0_i32, %c0_i32_0, %c0_i32_1 : i32, i32, i32, i32
  }
  func.func @transform_9(%arg0: i32) -> (i32, i32, i32, i32) {
    %c0_i32 = arith.constant 0 : i32
    %c0_i32_0 = arith.constant 0 : i32
    %c0_i32_1 = arith.constant 0 : i32
    %c0_i32_2 = arith.constant 0 : i32
    return %arg0, %c0_i32, %c0_i32_0, %c0_i32_1 : i32, i32, i32, i32
  }
  func.func @transform_10(%arg0: i32) -> (i32, i32, i32, i32) {
    %c0_i32 = arith.constant 0 : i32
    %c0_i32_0 = arith.constant 0 : i32
    %c0_i32_1 = arith.constant 0 : i32
    %c0_i32_2 = arith.constant 0 : i32
    return %arg0, %c0_i32, %c0_i32_0, %c0_i32_1 : i32, i32, i32, i32
  }
  func.func @transform_11(%arg0: i32) -> (i32, i32, i32, i32) {
    %c0_i32 = arith.constant 0 : i32
    %c0_i32_0 = arith.constant 0 : i32
    %c0_i32_1 = arith.constant 0 : i32
    %c0_i32_2 = arith.constant 0 : i32
    return %arg0, %c0_i32, %c0_i32_0, %c0_i32_1 : i32, i32, i32, i32
  }
  func.func @transform_12(%arg0: i32) -> (i32, i32, i32) {
    %c0_i32 = arith.constant 0 : i32
    %c0_i32_0 = arith.constant 0 : i32
    %c0_i32_1 = arith.constant 0 : i32
    return %arg0, %c0_i32, %c0_i32_0 : i32, i32, i32
  }
  func.func @transform_13(%arg0: i32) -> (i32, i32, i32) {
    %c0_i32 = arith.constant 0 : i32
    %c0_i32_0 = arith.constant 0 : i32
    %c0_i32_1 = arith.constant 0 : i32
    return %arg0, %c0_i32, %c0_i32_0 : i32, i32, i32
  }
  func.func @transform_14(%arg0: i32) -> (i32, i32, i32) {
    %c0_i32 = arith.constant 0 : i32
    %c0_i32_0 = arith.constant 0 : i32
    %c0_i32_1 = arith.constant 0 : i32
    return %arg0, %c0_i32, %c0_i32_0 : i32, i32, i32
  }
  func.func @transform_15(%arg0: i32) -> (i32, i32, i32) {
    %c0_i32 = arith.constant 0 : i32
    %c0_i32_0 = arith.constant 0 : i32
    %c0_i32_1 = arith.constant 0 : i32
    return %arg0, %c0_i32, %c0_i32_0 : i32, i32, i32
  }
  func.func @transform_16(%arg0: i32) -> (i32, i32, i32) {
    %c0_i32 = arith.constant 0 : i32
    %c0_i32_0 = arith.constant 0 : i32
    %c0_i32_1 = arith.constant 0 : i32
    return %arg0, %c0_i32, %c0_i32_0 : i32, i32, i32
  }
  func.func @transform_17(%arg0: i32) -> (i32, i32, i32) {
    %c0_i32 = arith.constant 0 : i32
    %c0_i32_0 = arith.constant 0 : i32
    %c0_i32_1 = arith.constant 0 : i32
    return %arg0, %c0_i32, %c0_i32_0 : i32, i32, i32
  }
  func.func @transform_18(%arg0: i32) -> (i32, i32, i32) {
    %c0_i32 = arith.constant 0 : i32
    %c0_i32_0 = arith.constant 0 : i32
    %c0_i32_1 = arith.constant 0 : i32
    return %arg0, %c0_i32, %c0_i32_0 : i32, i32, i32
  }
  func.func @transform_19(%arg0: i32) -> (i32, i32) {
    %c0_i32 = arith.constant 0 : i32
    %c0_i32_0 = arith.constant 0 : i32
    %c0_i32_1 = arith.constant 0 : i32
    return %c0_i32, %c0_i32_0 : i32, i32
  }
  func.func @transform_20(%arg0: i32) -> (i32, i32) {
    %c0_i32 = arith.constant 0 : i32
    %c0_i32_0 = arith.constant 0 : i32
    %c0_i32_1 = arith.constant 0 : i32
    return %c0_i32, %c0_i32_0 : i32, i32
  }
  func.func @transform_21(%arg0: i32) -> (i32, i32) {
    %c0_i32 = arith.constant 0 : i32
    %c0_i32_0 = arith.constant 0 : i32
    %c0_i32_1 = arith.constant 0 : i32
    return %c0_i32, %c0_i32_0 : i32, i32
  }
  func.func @transform_22(%arg0: i32) -> (i32, i32) {
    %c0_i32 = arith.constant 0 : i32
    %c0_i32_0 = arith.constant 0 : i32
    %c0_i32_1 = arith.constant 0 : i32
    return %c0_i32, %c0_i32_0 : i32, i32
  }
  func.func @transform_23(%arg0: i32) -> (i32, i32) {
    %c0_i32 = arith.constant 0 : i32
    %c0_i32_0 = arith.constant 0 : i32
    %c0_i32_1 = arith.constant 0 : i32
    return %c0_i32, %c0_i32_0 : i32, i32
  }
  func.func @transform_24(%arg0: i32) -> (i32, i32) {
    %c0_i32 = arith.constant 0 : i32
    %c0_i32_0 = arith.constant 0 : i32
    %c0_i32_1 = arith.constant 0 : i32
    return %c0_i32, %c0_i32_0 : i32, i32
  }
  func.func @transform_25(%arg0: i32) -> (i32, i32) {
    %c0_i32 = arith.constant 0 : i32
    %c0_i32_0 = arith.constant 0 : i32
    %c0_i32_1 = arith.constant 0 : i32
    return %c0_i32, %c0_i32_0 : i32, i32
  }
  func.func @transform_26(%arg0: i32) -> (i32, i32) {
    %c0_i32 = arith.constant 0 : i32
    %c0_i32_0 = arith.constant 0 : i32
    %c0_i32_1 = arith.constant 0 : i32
    return %c0_i32, %c0_i32_0 : i32, i32
  }
  func.func @transform_27(%arg0: i32) -> (i32, i32) {
    %c0_i32 = arith.constant 0 : i32
    %c0_i32_0 = arith.constant 0 : i32
    %c0_i32_1 = arith.constant 0 : i32
    return %c0_i32, %c0_i32_0 : i32, i32
  }
  func.func @transform_28(%arg0: i32) -> (i32, i32) {
    %c0_i32 = arith.constant 0 : i32
    %c0_i32_0 = arith.constant 0 : i32
    %c0_i32_1 = arith.constant 0 : i32
    return %c0_i32, %c0_i32_0 : i32, i32
  }
}

</mosaic_0001>

<llo_original>
// kernel: _lambda_.1
$region0: #{_lambda_.1}
  #allocation0 [shape = 'u32[]', space=smem, size = 0x4, offset = 0x4, fixed_abs, tag = 'smem constant byte address 0x4 - core index']
  #allocation1 [shape = 'u32[72,128]{1,0:T(1,128)}', space=vmem, size = 0x9000, scoped, tag = 'internal scratch']
  #allocation2 [shape = 'f32[8,32]{1,0:T(8,128)}', space=vmem, size = 0x1000, scoped, tag = 'scratch operand']
  %s0 = inlined_call_operand.hbm [shape: f32[8,16], index: 0, kind: input, shape index: {}]
  %s1 = inlined_call_operand.hbm [shape: bf16[16,32], index: 1, kind: input, shape index: {}]
  %s2 = inlined_call_operand.vmem [shape: f32[1,32], index: 2, kind: input, shape index: {}, may-alias: {2,20}]
  %s3 = inlined_call_operand.vmem [shape: f32[2,1,32], index: 3, kind: input, shape index: {}, may-alias: {3,13}]
  %s4 = inlined_call_operand.vmem [shape: f32[2,1,32], index: 4, kind: input, shape index: {}, may-alias: {4,12,14,18}]
  %s5 = inlined_call_operand.hbm [shape: bf16[2,4,32,8], index: 5, kind: input, shape index: {}]
  %s6 = inlined_call_operand.vmem [shape: f32[2,4,1,8], index: 6, kind: input, shape index: {}, may-alias: {6,8,10}]
  %s7 = inlined_call_operand.hbm [shape: bf16[2,4,32,8], index: 7, kind: input, shape index: {}]
  %s8 = inlined_call_operand.vmem [shape: f32[2,4,1,8], index: 8, kind: input, shape index: {}, may-alias: {6,8,10}]
  %s9 = inlined_call_operand.hbm [shape: bf16[2,4,32,8], index: 9, kind: input, shape index: {}]
  %s10 = inlined_call_operand.vmem [shape: f32[2,4,1,8], index: 10, kind: input, shape index: {}, may-alias: {6,8,10}]
  %s11 = inlined_call_operand.hbm [shape: bf16[2,4,8,32], index: 11, kind: input, shape index: {}]
  %s12 = inlined_call_operand.vmem [shape: f32[2,1,32], index: 12, kind: input, shape index: {}, may-alias: {4,12,14,18}]
  %s13 = inlined_call_operand.vmem [shape: f32[2,1,32], index: 13, kind: input, shape index: {}, may-alias: {3,13}]
  %s14 = inlined_call_operand.vmem [shape: f32[2,1,32], index: 14, kind: input, shape index: {}, may-alias: {4,12,14,18}]
  %s15 = inlined_call_operand.hbm [shape: bf16[2,32,128], index: 15, kind: input, shape index: {}]
  %s16 = inlined_call_operand.vmem [shape: f32[2,1,128], index: 16, kind: input, shape index: {}]
  %s17 = inlined_call_operand.hbm [shape: bf16[2,128,32], index: 17, kind: input, shape index: {}]
  %s18 = inlined_call_operand.vmem [shape: f32[2,1,32], index: 18, kind: input, shape index: {}, may-alias: {4,12,14,18}]
  %s19 = inlined_call_operand.vmem [shape: f32[1,32], index: 19, kind: input, shape index: {}]
  %s20 = inlined_call_operand.vmem [shape: f32[1,32], index: 20, kind: input, shape index: {}, may-alias: {2,20}]
  %s21 = inlined_call_operand.hbm [shape: bf16[32,64], index: 21, kind: input, shape index: {}]
  %s22 = inlined_call_operand.vmem [shape: f32[1,64], index: 22, kind: input, shape index: {}, may-alias: {22,24}]
  %s23 = inlined_call_operand.hbm [shape: bf16[64,64], index: 23, kind: input, shape index: {}]
  %s24 = inlined_call_operand.vmem [shape: f32[1,64], index: 24, kind: input, shape index: {}, may-alias: {22,24}]
  %s25 = inlined_call_operand.vmem [shape: bf16[64,16], index: 25, kind: input, shape index: {}]
  %s26 = inlined_call_operand.vmem [shape: f32[1,16], index: 26, kind: input, shape index: {}]
  %s27 = inlined_call_operand.hbm [shape: bf16[16,64], index: 27, kind: input, shape index: {}]
  %s28 = inlined_call_operand.hbm [shape: f32[8,64], index: 28, kind: output, shape index: {}]
  %s29 = sld [smem:[#allocation0]]
  $region197: #{_lambda_.1} parent=0
    _
  %s31 = ssub.s32 1, %s29
  %s32 = scalar_select 0, %s31, %s29
  $region1: #{_lambda_.1} parent=0
    #allocation3 [shape = 'u8[4096]{0}', space=vmem, size = 0x1000, scoped, tag = 'input window, operand 0, single buffered']
    #allocation4 [shape = 's32[2]{0}', space=sflag, size = 0x8, scoped, tag = 'scoped memory for _lambda_.1']
    #allocation5 [shape = 's32[2]{0}', space=sflag, size = 0x8, scoped, tag = 'scoped memory for _lambda_.1']
    #allocation6 [shape = 'u8[4096]{0}', space=vmem, size = 0x1000, scoped, tag = 'input window, operand 1, single buffered']
    #allocation7 [shape = 's32[1]{0}', space=sflag, size = 0x4, scoped, tag = 'scoped memory for _lambda_.1']
    #allocation8 [shape = 'u8[65536]{0}', space=vmem, size = 0x10000, scoped, tag = 'input window, operand 5']
    #allocation9 [shape = 'u8[65536]{0}', space=vmem, size = 0x10000, scoped, tag = 'input window, operand 7']
    #allocation10 [shape = 'u8[65536]{0}', space=vmem, size = 0x10000, scoped, tag = 'input window, operand 9']
    #allocation11 [shape = 'u8[16384]{0}', space=vmem, size = 0x4000, scoped, tag = 'input window, operand 11']
    #allocation12 [shape = 'u8[16384]{0}', space=vmem, size = 0x4000, scoped, tag = 'input window, operand 15']
    #allocation13 [shape = 'u8[65536]{0}', space=vmem, size = 0x10000, scoped, tag = 'input window, operand 17']
    #allocation14 [shape = 'u8[8192]{0}', space=vmem, size = 0x2000, scoped, tag = 'input window, operand 21, single buffered']
    #allocation15 [shape = 'u8[16384]{0}', space=vmem, size = 0x4000, scoped, tag = 'input window, operand 23, single buffered']
    #allocation16 [shape = 's32[1]{0}', space=sflag, size = 0x4, scoped, tag = 'scoped memory for _lambda_.1']
    #allocation17 [shape = 'u8[4096]{0}', space=vmem, size = 0x1000, scoped, tag = 'input window, operand 27, single buffered']
    #allocation18 [shape = 'u8[4096]{0}', space=vmem, size = 0x1000, scoped, tag = 'output window, operand 0, single buffered']
    %33 = vsyncpa [#allocation4], 0
    %34 = vsyncpa [#allocation7], 0
    %35 = vsyncpa [#allocation16], 0
    %36 = vsyncpa [#allocation5], 0
    loop: start=0, step=1, limit=4
    $region2: #{_lambda_.1} parent=1 // loop_pre_header
      _
    $region3: #{_lambda_.1} parent=1 // loop_header
      %s38 = sphi 0, %s42
      %p39 = scmp.ge.s32.totalorder %s38, 4
      %s46 = sphi 0, %s46
      %s48 = sphi 0, %s46
      %s49 = sphi 0, %s48
      %s63 = sphi 0, %s49
      %s67 = sphi 0, %s67
      %s69 = sphi 0, %s67
      %s70 = sphi 0, %s69
      %s84 = sphi 0, %s70
      %s88 = sphi 0, %s88
      %s90 = sphi 0, %s88
      %s91 = sphi 0, %s90
      %s105 = sphi 0, %s91
      %s111 = sphi 0, %s113
      %s114 = sphi 0, %s111
      %s115 = sphi 0, %s114
      %s131 = sphi 0, %s115
      %s137 = sphi 0, %s139
      %s140 = sphi 0, %s137
      %s141 = sphi 0, %s140
      %s157 = sphi 0, %s141
      %s163 = sphi 0, %s165
      %s166 = sphi 0, %s163
      %s167 = sphi 0, %s166
      %s183 = sphi 0, %s167
      %s189 = sphi 0, %s191
      %s192 = sphi 0, %s189
      %s193 = sphi 0, %s192
      %s209 = sphi 0, %s193
      %s215 = sphi 0, %s217
      %s218 = sphi 0, %s215
      %s219 = sphi 0, %s218
      %s235 = sphi 0, %s219
      %s241 = sphi 0, %s243
      %s244 = sphi 0, %s241
      %s245 = sphi 0, %s244
      %s261 = sphi 0, %s245
      %s267 = sphi 0, %s269
      %s270 = sphi 0, %s267
      %s271 = sphi 0, %s270
      %s287 = sphi 0, %s271
      %s293 = sphi 0, %s295
      %s296 = sphi 0, %s293
      %s297 = sphi 0, %s296
      %s313 = sphi 0, %s297
      %s319 = sphi 0, %s321
      %s322 = sphi 0, %s319
      %s323 = sphi 0, %s322
      %s339 = sphi 0, %s323
      %s345 = sphi 0, %s347
      %s348 = sphi 0, %s345
      %s349 = sphi 0, %s348
      %s365 = sphi 0, %s349
      %s371 = sphi 0, %s373
      %s374 = sphi 0, %s371
      %s375 = sphi 0, %s374
      %s391 = sphi 0, %s375
      %s397 = sphi 0, %s399
      %s400 = sphi 0, %s397
      %s401 = sphi 0, %s400
      %s417 = sphi 0, %s401
      %s423 = sphi 0, %s425
      %s426 = sphi 0, %s423
      %s427 = sphi 0, %s426
      %s443 = sphi 0, %s427
      %s449 = sphi 0, %s451
      %s452 = sphi 0, %s449
      %s453 = sphi 0, %s452
      %s469 = sphi 0, %s453
      %s475 = sphi 0, %s477
      %s478 = sphi 0, %s475
      %s479 = sphi 0, %s478
      %s495 = sphi 0, %s479
      %s501 = sphi 0, %s503
      %s504 = sphi 0, %s501
      %s505 = sphi 0, %s504
      %s521 = sphi 0, %s505
      %s525 = sphi 0, %s525
      %s527 = sphi 0, %s525
      %s528 = sphi 0, %s527
      %s542 = sphi 0, %s528
      %s546 = sphi 0, %s546
      %s548 = sphi 0, %s546
      %s549 = sphi 0, %s548
      %s563 = sphi 0, %s549
      %s567 = sphi 0, %s567
      %s569 = sphi 0, %s567
      %s570 = sphi 0, %s569
      %s584 = sphi 0, %s570
      %s588 = sphi 0, %s588
      %s590 = sphi 0, %s588
      %s591 = sphi 0, %s590
      %s605 = sphi 0, %s591
      %s609 = sphi 0, %s609
      %s611 = sphi 0, %s609
      %s612 = sphi 0, %s611
      %s626 = sphi 0, %s612
      %s630 = sphi 0, %s630
      %s632 = sphi 0, %s630
      %s633 = sphi 0, %s632
      %s647 = sphi 0, %s633
      %s651 = sphi 0, %s651
      %s653 = sphi 0, %s651
      %s654 = sphi 0, %s653
      %s668 = sphi 0, %s654
      %s672 = sphi 0, %s672
      %s674 = sphi 0, %s672
      %s675 = sphi 0, %s674
      %s689 = sphi 0, %s675
      %s693 = sphi 0, %s693
      %s695 = sphi 0, %s693
      %s696 = sphi 0, %s695
      %s710 = sphi 0, %s696
      %s714 = sphi 0, %s714
      %s716 = sphi 0, %s714
      %s717 = sphi 0, %s716
      %s731 = sphi 0, %s717
    $region4: #{_lambda_.1} parent=1 // loop_header_branch
      %41 = sbr.rel (%p39) target = $region8
    $region5: #{_lambda_.1} parent=1 // loop_body
      %s43 = ssub.s32 %s38, 1
      %s44 = ssub.s32 %s38, 2
      %s45 = sadd.s32 %s38, 1
      %s47 = sadd.s32 %s46, 1
      %p50 = scmp.eq.s32.totalorder %s38, 1
      %p51 = scmp.ne.s32.totalorder %s46, %s48
      %p52 = scmp.eq.s32.totalorder %s38, 0
      %p53 = por %p51, %p52
      %p54 = scmp.ne.s32.totalorder %s46, %s48
      %p55 = scmp.eq.s32.totalorder %s43, 1
      %p56 = por %p54, %p55
      %p57 = scmp.ne.s32.totalorder %s48, %s49
      %p58 = scmp.eq.s32.totalorder %s43, 0
      %p59 = por %p57, %p58
      %p60 = scmp.ne.s32.totalorder %s48, %s49
      %p61 = scmp.eq.s32.totalorder %s44, 1
      %p62 = por %p60, %p61
      %p64 = scmp.ne.s32.totalorder %s49, %s63
      %p65 = scmp.eq.s32.totalorder %s44, 0
      %p66 = por %p64, %p65
      %s68 = sadd.s32 %s67, 1
      %p71 = scmp.eq.s32.totalorder %s38, 1
      %p72 = scmp.ne.s32.totalorder %s67, %s69
      %p73 = scmp.eq.s32.totalorder %s38, 0
      %p74 = por %p72, %p73
      %p75 = scmp.ne.s32.totalorder %s67, %s69
      %p76 = scmp.eq.s32.totalorder %s43, 1
      %p77 = por %p75, %p76
      %p78 = scmp.ne.s32.totalorder %s69, %s70
      %p79 = scmp.eq.s32.totalorder %s43, 0
      %p80 = por %p78, %p79
      %p81 = scmp.ne.s32.totalorder %s69, %s70
      %p82 = scmp.eq.s32.totalorder %s44, 1
      %p83 = por %p81, %p82
      %p85 = scmp.ne.s32.totalorder %s70, %s84
      %p86 = scmp.eq.s32.totalorder %s44, 0
      %p87 = por %p85, %p86
      %s89 = sadd.s32 %s88, 1
      %p92 = scmp.eq.s32.totalorder %s38, 1
      %p93 = scmp.ne.s32.totalorder %s88, %s90
      %p94 = scmp.eq.s32.totalorder %s38, 0
      %p95 = por %p93, %p94
      %p96 = scmp.ne.s32.totalorder %s88, %s90
      %p97 = scmp.eq.s32.totalorder %s43, 1
      %p98 = por %p96, %p97
      %p99 = scmp.ne.s32.totalorder %s90, %s91
      %p100 = scmp.eq.s32.totalorder %s43, 0
      %p101 = por %p99, %p100
      %p102 = scmp.ne.s32.totalorder %s90, %s91
      %p103 = scmp.eq.s32.totalorder %s44, 1
      %p104 = por %p102, %p103
      %p106 = scmp.ne.s32.totalorder %s91, %s105
      %p107 = scmp.eq.s32.totalorder %s44, 0
      %p108 = por %p106, %p107
      %s109 = ssub.s32 %s38, %s45
      %p110 = scmp.eq.s32.totalorder %s109, 0
      %s112 = sadd.s32 %s111, 1
      %s113 = scalar_select %p110, %s111, %s112
      %p116 = pneg %p110
      %p117 = scmp.eq.s32.totalorder %s38, 1
      %p118 = por %p116, %p117
      %p119 = scmp.ne.s32.totalorder %s111, %s114
      %p120 = scmp.eq.s32.totalorder %s38, 0
      %p121 = por %p119, %p120
      %p122 = scmp.ne.s32.totalorder %s111, %s114
      %p123 = scmp.eq.s32.totalorder %s43, 1
      %p124 = por %p122, %p123
      %p125 = scmp.ne.s32.totalorder %s114, %s115
      %p126 = scmp.eq.s32.totalorder %s43, 0
      %p127 = por %p125, %p126
      %p128 = scmp.ne.s32.totalorder %s114, %s115
      %p129 = scmp.eq.s32.totalorder %s44, 1
      %p130 = por %p128, %p129
      %p132 = scmp.ne.s32.totalorder %s115, %s131
      %p133 = scmp.eq.s32.totalorder %s44, 0
      %p134 = por %p132, %p133
      %s135 = ssub.s32 %s38, %s45
      %p136 = scmp.eq.s32.totalorder %s135, 0
      %s138 = sadd.s32 %s137, 1
      %s139 = scalar_select %p136, %s137, %s138
      %p142 = pneg %p136
      %p143 = scmp.eq.s32.totalorder %s38, 1
      %p144 = por %p142, %p143
      %p145 = scmp.ne.s32.totalorder %s137, %s140
      %p146 = scmp.eq.s32.totalorder %s38, 0
      %p147 = por %p145, %p146
      %p148 = scmp.ne.s32.totalorder %s137, %s140
      %p149 = scmp.eq.s32.totalorder %s43, 1
      %p150 = por %p148, %p149
      %p151 = scmp.ne.s32.totalorder %s140, %s141
      %p152 = scmp.eq.s32.totalorder %s43, 0
      %p153 = por %p151, %p152
      %p154 = scmp.ne.s32.totalorder %s140, %s141
      %p155 = scmp.eq.s32.totalorder %s44, 1
      %p156 = por %p154, %p155
      %p158 = scmp.ne.s32.totalorder %s141, %s157
      %p159 = scmp.eq.s32.totalorder %s44, 0
      %p160 = por %p158, %p159
      %s161 = ssub.s32 %s38, %s45
      %p162 = scmp.eq.s32.totalorder %s161, 0
      %s164 = sadd.s32 %s163, 1
      %s165 = scalar_select %p162, %s163, %s164
      %p168 = pneg %p162
      %p169 = scmp.eq.s32.totalorder %s38, 1
      %p170 = por %p168, %p169
      %p171 = scmp.ne.s32.totalorder %s163, %s166
      %p172 = scmp.eq.s32.totalorder %s38, 0
      %p173 = por %p171, %p172
      %p174 = scmp.ne.s32.totalorder %s163, %s166
      %p175 = scmp.eq.s32.totalorder %s43, 1
      %p176 = por %p174, %p175
      %p177 = scmp.ne.s32.totalorder %s166, %s167
      %p178 = scmp.eq.s32.totalorder %s43, 0
      %p179 = por %p177, %p178
      %p180 = scmp.ne.s32.totalorder %s166, %s167
      %p181 = scmp.eq.s32.totalorder %s44, 1
      %p182 = por %p180, %p181
      %p184 = scmp.ne.s32.totalorder %s167, %s183
      %p185 = scmp.eq.s32.totalorder %s44, 0
      %p186 = por %p184, %p185
      %s187 = ssub.s32 %s38, %s45
      %p188 = scmp.eq.s32.totalorder %s187, 0
      %s190 = sadd.s32 %s189, 1
      %s191 = scalar_select %p188, %s189, %s190
      %p194 = pneg %p188
      %p195 = scmp.eq.s32.totalorder %s38, 1
      %p196 = por %p194, %p195
      %p197 = scmp.ne.s32.totalorder %s189, %s192
      %p198 = scmp.eq.s32.totalorder %s38, 0
      %p199 = por %p197, %p198
      %p200 = scmp.ne.s32.totalorder %s189, %s192
      %p201 = scmp.eq.s32.totalorder %s43, 1
      %p202 = por %p200, %p201
      %p203 = scmp.ne.s32.totalorder %s192, %s193
      %p204 = scmp.eq.s32.totalorder %s43, 0
      %p205 = por %p203, %p204
      %p206 = scmp.ne.s32.totalorder %s192, %s193
      %p207 = scmp.eq.s32.totalorder %s44, 1
      %p208 = por %p206, %p207
      %p210 = scmp.ne.s32.totalorder %s193, %s209
      %p211 = scmp.eq.s32.totalorder %s44, 0
      %p212 = por %p210, %p211
      %s213 = ssub.s32 %s38, %s45
      %p214 = scmp.eq.s32.totalorder %s213, 0
      %s216 = sadd.s32 %s215, 1
      %s217 = scalar_select %p214, %s215, %s216
      %p220 = pneg %p214
      %p221 = scmp.eq.s32.totalorder %s38, 1
      %p222 = por %p220, %p221
      %p223 = scmp.ne.s32.totalorder %s215, %s218
      %p224 = scmp.eq.s32.totalorder %s38, 0
      %p225 = por %p223, %p224
      %p226 = scmp.ne.s32.totalorder %s215, %s218
      %p227 = scmp.eq.s32.totalorder %s43, 1
      %p228 = por %p226, %p227
      %p229 = scmp.ne.s32.totalorder %s218, %s219
      %p230 = scmp.eq.s32.totalorder %s43, 0
      %p231 = por %p229, %p230
      %p232 = scmp.ne.s32.totalorder %s218, %s219
      %p233 = scmp.eq.s32.totalorder %s44, 1
      %p234 = por %p232, %p233
      %p236 = scmp.ne.s32.totalorder %s219, %s235
      %p237 = scmp.eq.s32.totalorder %s44, 0
      %p238 = por %p236, %p237
      %s239 = ssub.s32 %s38, %s45
      %p240 = scmp.eq.s32.totalorder %s239, 0
      %s242 = sadd.s32 %s241, 1
      %s243 = scalar_select %p240, %s241, %s242
      %p246 = pneg %p240
      %p247 = scmp.eq.s32.totalorder %s38, 1
      %p248 = por %p246, %p247
      %p249 = scmp.ne.s32.totalorder %s241, %s244
      %p250 = scmp.eq.s32.totalorder %s38, 0
      %p251 = por %p249, %p250
      %p252 = scmp.ne.s32.totalorder %s241, %s244
      %p253 = scmp.eq.s32.totalorder %s43, 1
      %p254 = por %p252, %p253
      %p255 = scmp.ne.s32.totalorder %s244, %s245
      %p256 = scmp.eq.s32.totalorder %s43, 0
      %p257 = por %p255, %p256
      %p258 = scmp.ne.s32.totalorder %s244, %s245
      %p259 = scmp.eq.s32.totalorder %s44, 1
      %p260 = por %p258, %p259
      %p262 = scmp.ne.s32.totalorder %s245, %s261
      %p263 = scmp.eq.s32.totalorder %s44, 0
      %p264 = por %p262, %p263
      %s265 = ssub.s32 %s38, %s45
      %p266 = scmp.eq.s32.totalorder %s265, 0
      %s268 = sadd.s32 %s267, 1
      %s269 = scalar_select %p266, %s267, %s268
      %p272 = pneg %p266
      %p273 = scmp.eq.s32.totalorder %s38, 1
      %p274 = por %p272, %p273
      %p275 = scmp.ne.s32.totalorder %s267, %s270
      %p276 = scmp.eq.s32.totalorder %s38, 0
      %p277 = por %p275, %p276
      %p278 = scmp.ne.s32.totalorder %s267, %s270
      %p279 = scmp.eq.s32.totalorder %s43, 1
      %p280 = por %p278, %p279
      %p281 = scmp.ne.s32.totalorder %s270, %s271
      %p282 = scmp.eq.s32.totalorder %s43, 0
      %p283 = por %p281, %p282
      %p284 = scmp.ne.s32.totalorder %s270, %s271
      %p285 = scmp.eq.s32.totalorder %s44, 1
      %p286 = por %p284, %p285
      %p288 = scmp.ne.s32.totalorder %s271, %s287
      %p289 = scmp.eq.s32.totalorder %s44, 0
      %p290 = por %p288, %p289
      %s291 = ssub.s32 %s38, %s45
      %p292 = scmp.eq.s32.totalorder %s291, 0
      %s294 = sadd.s32 %s293, 1
      %s295 = scalar_select %p292, %s293, %s294
      %p298 = pneg %p292
      %p299 = scmp.eq.s32.totalorder %s38, 1
      %p300 = por %p298, %p299
      %p301 = scmp.ne.s32.totalorder %s293, %s296
      %p302 = scmp.eq.s32.totalorder %s38, 0
      %p303 = por %p301, %p302
      %p304 = scmp.ne.s32.totalorder %s293, %s296
      %p305 = scmp.eq.s32.totalorder %s43, 1
      %p306 = por %p304, %p305
      %p307 = scmp.ne.s32.totalorder %s296, %s297
      %p308 = scmp.eq.s32.totalorder %s43, 0
      %p309 = por %p307, %p308
      %p310 = scmp.ne.s32.totalorder %s296, %s297
      %p311 = scmp.eq.s32.totalorder %s44, 1
      %p312 = por %p310, %p311
      %p314 = scmp.ne.s32.totalorder %s297, %s313
      %p315 = scmp.eq.s32.totalorder %s44, 0
      %p316 = por %p314, %p315
      %s317 = ssub.s32 %s38, %s45
      %p318 = scmp.eq.s32.totalorder %s317, 0
      %s320 = sadd.s32 %s319, 1
      %s321 = scalar_select %p318, %s319, %s320
      %p324 = pneg %p318
      %p325 = scmp.eq.s32.totalorder %s38, 1
      %p326 = por %p324, %p325
      %p327 = scmp.ne.s32.totalorder %s319, %s322
      %p328 = scmp.eq.s32.totalorder %s38, 0
      %p329 = por %p327, %p328
      %p330 = scmp.ne.s32.totalorder %s319, %s322
      %p331 = scmp.eq.s32.totalorder %s43, 1
      %p332 = por %p330, %p331
      %p333 = scmp.ne.s32.totalorder %s322, %s323
      %p334 = scmp.eq.s32.totalorder %s43, 0
      %p335 = por %p333, %p334
      %p336 = scmp.ne.s32.totalorder %s322, %s323
      %p337 = scmp.eq.s32.totalorder %s44, 1
      %p338 = por %p336, %p337
      %p340 = scmp.ne.s32.totalorder %s323, %s339
      %p341 = scmp.eq.s32.totalorder %s44, 0
      %p342 = por %p340, %p341
      %s343 = ssub.s32 %s38, %s45
      %p344 = scmp.eq.s32.totalorder %s343, 0
      %s346 = sadd.s32 %s345, 1
      %s347 = scalar_select %p344, %s345, %s346
      %p350 = pneg %p344
      %p351 = scmp.eq.s32.totalorder %s38, 1
      %p352 = por %p350, %p351
      %p353 = scmp.ne.s32.totalorder %s345, %s348
      %p354 = scmp.eq.s32.totalorder %s38, 0
      %p355 = por %p353, %p354
      %p356 = scmp.ne.s32.totalorder %s345, %s348
      %p357 = scmp.eq.s32.totalorder %s43, 1
      %p358 = por %p356, %p357
      %p359 = scmp.ne.s32.totalorder %s348, %s349
      %p360 = scmp.eq.s32.totalorder %s43, 0
      %p361 = por %p359, %p360
      %p362 = scmp.ne.s32.totalorder %s348, %s349
      %p363 = scmp.eq.s32.totalorder %s44, 1
      %p364 = por %p362, %p363
      %p366 = scmp.ne.s32.totalorder %s349, %s365
      %p367 = scmp.eq.s32.totalorder %s44, 0
      %p368 = por %p366, %p367
      %s369 = ssub.s32 %s38, %s45
      %p370 = scmp.eq.s32.totalorder %s369, 0
      %s372 = sadd.s32 %s371, 1
      %s373 = scalar_select %p370, %s371, %s372
      %p376 = pneg %p370
      %p377 = scmp.eq.s32.totalorder %s38, 1
      %p378 = por %p376, %p377
      %p379 = scmp.ne.s32.totalorder %s371, %s374
      %p380 = scmp.eq.s32.totalorder %s38, 0
      %p381 = por %p379, %p380
      %p382 = scmp.ne.s32.totalorder %s371, %s374
      %p383 = scmp.eq.s32.totalorder %s43, 1
      %p384 = por %p382, %p383
      %p385 = scmp.ne.s32.totalorder %s374, %s375
      %p386 = scmp.eq.s32.totalorder %s43, 0
      %p387 = por %p385, %p386
      %p388 = scmp.ne.s32.totalorder %s374, %s375
      %p389 = scmp.eq.s32.totalorder %s44, 1
      %p390 = por %p388, %p389
      %p392 = scmp.ne.s32.totalorder %s375, %s391
      %p393 = scmp.eq.s32.totalorder %s44, 0
      %p394 = por %p392, %p393
      %s395 = ssub.s32 %s38, %s45
      %p396 = scmp.eq.s32.totalorder %s395, 0
      %s398 = sadd.s32 %s397, 1
      %s399 = scalar_select %p396, %s397, %s398
      %p402 = pneg %p396
      %p403 = scmp.eq.s32.totalorder %s38, 1
      %p404 = por %p402, %p403
      %p405 = scmp.ne.s32.totalorder %s397, %s400
      %p406 = scmp.eq.s32.totalorder %s38, 0
      %p407 = por %p405, %p406
      %p408 = scmp.ne.s32.totalorder %s397, %s400
      %p409 = scmp.eq.s32.totalorder %s43, 1
      %p410 = por %p408, %p409
      %p411 = scmp.ne.s32.totalorder %s400, %s401
      %p412 = scmp.eq.s32.totalorder %s43, 0
      %p413 = por %p411, %p412
      %p414 = scmp.ne.s32.totalorder %s400, %s401
      %p415 = scmp.eq.s32.totalorder %s44, 1
      %p416 = por %p414, %p415
      %p418 = scmp.ne.s32.totalorder %s401, %s417
      %p419 = scmp.eq.s32.totalorder %s44, 0
      %p420 = por %p418, %p419
      %s421 = ssub.s32 %s38, %s45
      %p422 = scmp.eq.s32.totalorder %s421, 0
      %s424 = sadd.s32 %s423, 1
      %s425 = scalar_select %p422, %s423, %s424
      %p428 = pneg %p422
      %p429 = scmp.eq.s32.totalorder %s38, 1
      %p430 = por %p428, %p429
      %p431 = scmp.ne.s32.totalorder %s423, %s426
      %p432 = scmp.eq.s32.totalorder %s38, 0
      %p433 = por %p431, %p432
      %p434 = scmp.ne.s32.totalorder %s423, %s426
      %p435 = scmp.eq.s32.totalorder %s43, 1
      %p436 = por %p434, %p435
      %p437 = scmp.ne.s32.totalorder %s426, %s427
      %p438 = scmp.eq.s32.totalorder %s43, 0
      %p439 = por %p437, %p438
      %p440 = scmp.ne.s32.totalorder %s426, %s427
      %p441 = scmp.eq.s32.totalorder %s44, 1
      %p442 = por %p440, %p441
      %p444 = scmp.ne.s32.totalorder %s427, %s443
      %p445 = scmp.eq.s32.totalorder %s44, 0
      %p446 = por %p444, %p445
      %s447 = ssub.s32 %s38, %s45
      %p448 = scmp.eq.s32.totalorder %s447, 0
      %s450 = sadd.s32 %s449, 1
      %s451 = scalar_select %p448, %s449, %s450
      %p454 = pneg %p448
      %p455 = scmp.eq.s32.totalorder %s38, 1
      %p456 = por %p454, %p455
      %p457 = scmp.ne.s32.totalorder %s449, %s452
      %p458 = scmp.eq.s32.totalorder %s38, 0
      %p459 = por %p457, %p458
      %p460 = scmp.ne.s32.totalorder %s449, %s452
      %p461 = scmp.eq.s32.totalorder %s43, 1
      %p462 = por %p460, %p461
      %p463 = scmp.ne.s32.totalorder %s452, %s453
      %p464 = scmp.eq.s32.totalorder %s43, 0
      %p465 = por %p463, %p464
      %p466 = scmp.ne.s32.totalorder %s452, %s453
      %p467 = scmp.eq.s32.totalorder %s44, 1
      %p468 = por %p466, %p467
      %p470 = scmp.ne.s32.totalorder %s453, %s469
      %p471 = scmp.eq.s32.totalorder %s44, 0
      %p472 = por %p470, %p471
      %s473 = ssub.s32 %s38, %s45
      %p474 = scmp.eq.s32.totalorder %s473, 0
      %s476 = sadd.s32 %s475, 1
      %s477 = scalar_select %p474, %s475, %s476
      %p480 = pneg %p474
      %p481 = scmp.eq.s32.totalorder %s38, 1
      %p482 = por %p480, %p481
      %p483 = scmp.ne.s32.totalorder %s475, %s478
      %p484 = scmp.eq.s32.totalorder %s38, 0
      %p485 = por %p483, %p484
      %p486 = scmp.ne.s32.totalorder %s475, %s478
      %p487 = scmp.eq.s32.totalorder %s43, 1
      %p488 = por %p486, %p487
      %p489 = scmp.ne.s32.totalorder %s478, %s479
      %p490 = scmp.eq.s32.totalorder %s43, 0
      %p491 = por %p489, %p490
      %p492 = scmp.ne.s32.totalorder %s478, %s479
      %p493 = scmp.eq.s32.totalorder %s44, 1
      %p494 = por %p492, %p493
      %p496 = scmp.ne.s32.totalorder %s479, %s495
      %p497 = scmp.eq.s32.totalorder %s44, 0
      %p498 = por %p496, %p497
      %s499 = ssub.s32 %s38, %s45
      %p500 = scmp.eq.s32.totalorder %s499, 0
      %s502 = sadd.s32 %s501, 1
      %s503 = scalar_select %p500, %s501, %s502
      %p506 = pneg %p500
      %p507 = scmp.eq.s32.totalorder %s38, 1
      %p508 = por %p506, %p507
      %p509 = scmp.ne.s32.totalorder %s501, %s504
      %p510 = scmp.eq.s32.totalorder %s38, 0
      %p511 = por %p509, %p510
      %p512 = scmp.ne.s32.totalorder %s501, %s504
      %p513 = scmp.eq.s32.totalorder %s43, 1
      %p514 = por %p512, %p513
      %p515 = scmp.ne.s32.totalorder %s504, %s505
      %p516 = scmp.eq.s32.totalorder %s43, 0
      %p517 = por %p515, %p516
      %p518 = scmp.ne.s32.totalorder %s504, %s505
      %p519 = scmp.eq.s32.totalorder %s44, 1
      %p520 = por %p518, %p519
      %p522 = scmp.ne.s32.totalorder %s505, %s521
      %p523 = scmp.eq.s32.totalorder %s44, 0
      %p524 = por %p522, %p523
      %s526 = sadd.s32 %s525, 1
      %p529 = scmp.eq.s32.totalorder %s38, 1
      %p530 = scmp.ne.s32.totalorder %s525, %s527
      %p531 = scmp.eq.s32.totalorder %s38, 0
      %p532 = por %p530, %p531
      %p533 = scmp.ne.s32.totalorder %s525, %s527
      %p534 = scmp.eq.s32.totalorder %s43, 1
      %p535 = por %p533, %p534
      %p536 = scmp.ne.s32.totalorder %s527, %s528
      %p537 = scmp.eq.s32.totalorder %s43, 0
      %p538 = por %p536, %p537
      %p539 = scmp.ne.s32.totalorder %s527, %s528
      %p540 = scmp.eq.s32.totalorder %s44, 1
      %p541 = por %p539, %p540
      %p543 = scmp.ne.s32.totalorder %s528, %s542
      %p544 = scmp.eq.s32.totalorder %s44, 0
      %p545 = por %p543, %p544
      %s547 = sadd.s32 %s546, 1
      %p550 = scmp.eq.s32.totalorder %s38, 1
      %p551 = scmp.ne.s32.totalorder %s546, %s548
      %p552 = scmp.eq.s32.totalorder %s38, 0
      %p553 = por %p551, %p552
      %p554 = scmp.ne.s32.totalorder %s546, %s548
      %p555 = scmp.eq.s32.totalorder %s43, 1
      %p556 = por %p554, %p555
      %p557 = scmp.ne.s32.totalorder %s548, %s549
      %p558 = scmp.eq.s32.totalorder %s43, 0
      %p559 = por %p557, %p558
      %p560 = scmp.ne.s32.totalorder %s548, %s549
      %p561 = scmp.eq.s32.totalorder %s44, 1
      %p562 = por %p560, %p561
      %p564 = scmp.ne.s32.totalorder %s549, %s563
      %p565 = scmp.eq.s32.totalorder %s44, 0
      %p566 = por %p564, %p565
      %s568 = sadd.s32 %s567, 1
      %p571 = scmp.eq.s32.totalorder %s38, 1
      %p572 = scmp.ne.s32.totalorder %s567, %s569
      %p573 = scmp.eq.s32.totalorder %s38, 0
      %p574 = por %p572, %p573
      %p575 = scmp.ne.s32.totalorder %s567, %s569
      %p576 = scmp.eq.s32.totalorder %s43, 1
      %p577 = por %p575, %p576
      %p578 = scmp.ne.s32.totalorder %s569, %s570
      %p579 = scmp.eq.s32.totalorder %s43, 0
      %p580 = por %p578, %p579
      %p581 = scmp.ne.s32.totalorder %s569, %s570
      %p582 = scmp.eq.s32.totalorder %s44, 1
      %p583 = por %p581, %p582
      %p585 = scmp.ne.s32.totalorder %s570, %s584
      %p586 = scmp.eq.s32.totalorder %s44, 0
      %p587 = por %p585, %p586
      %s589 = sadd.s32 %s588, 1
      %p592 = scmp.eq.s32.totalorder %s38, 1
      %p593 = scmp.ne.s32.totalorder %s588, %s590
      %p594 = scmp.eq.s32.totalorder %s38, 0
      %p595 = por %p593, %p594
      %p596 = scmp.ne.s32.totalorder %s588, %s590
      %p597 = scmp.eq.s32.totalorder %s43, 1
      %p598 = por %p596, %p597
      %p599 = scmp.ne.s32.totalorder %s590, %s591
      %p600 = scmp.eq.s32.totalorder %s43, 0
      %p601 = por %p599, %p600
      %p602 = scmp.ne.s32.totalorder %s590, %s591
      %p603 = scmp.eq.s32.totalorder %s44, 1
      %p604 = por %p602, %p603
      %p606 = scmp.ne.s32.totalorder %s591, %s605
      %p607 = scmp.eq.s32.totalorder %s44, 0
      %p608 = por %p606, %p607
      %s610 = sadd.s32 %s609, 1
      %p613 = scmp.eq.s32.totalorder %s38, 1
      %p614 = scmp.ne.s32.totalorder %s609, %s611
      %p615 = scmp.eq.s32.totalorder %s38, 0
      %p616 = por %p614, %p615
      %p617 = scmp.ne.s32.totalorder %s609, %s611
      %p618 = scmp.eq.s32.totalorder %s43, 1
      %p619 = por %p617, %p618
      %p620 = scmp.ne.s32.totalorder %s611, %s612
      %p621 = scmp.eq.s32.totalorder %s43, 0
      %p622 = por %p620, %p621
      %p623 = scmp.ne.s32.totalorder %s611, %s612
      %p624 = scmp.eq.s32.totalorder %s44, 1
      %p625 = por %p623, %p624
      %p627 = scmp.ne.s32.totalorder %s612, %s626
      %p628 = scmp.eq.s32.totalorder %s44, 0
      %p629 = por %p627, %p628
      %s631 = sadd.s32 %s630, 1
      %p634 = scmp.eq.s32.totalorder %s38, 1
      %p635 = scmp.ne.s32.totalorder %s630, %s632
      %p636 = scmp.eq.s32.totalorder %s38, 0
      %p637 = por %p635, %p636
      %p638 = scmp.ne.s32.totalorder %s630, %s632
      %p639 = scmp.eq.s32.totalorder %s43, 1
      %p640 = por %p638, %p639
      %p641 = scmp.ne.s32.totalorder %s632, %s633
      %p642 = scmp.eq.s32.totalorder %s43, 0
      %p643 = por %p641, %p642
      %p644 = scmp.ne.s32.totalorder %s632, %s633
      %p645 = scmp.eq.s32.totalorder %s44, 1
      %p646 = por %p644, %p645
      %p648 = scmp.ne.s32.totalorder %s633, %s647
      %p649 = scmp.eq.s32.totalorder %s44, 0
      %p650 = por %p648, %p649
      %s652 = sadd.s32 %s651, 1
      %p655 = scmp.eq.s32.totalorder %s38, 1
      %p656 = scmp.ne.s32.totalorder %s651, %s653
      %p657 = scmp.eq.s32.totalorder %s38, 0
      %p658 = por %p656, %p657
      %p659 = scmp.ne.s32.totalorder %s651, %s653
      %p660 = scmp.eq.s32.totalorder %s43, 1
      %p661 = por %p659, %p660
      %p662 = scmp.ne.s32.totalorder %s653, %s654
      %p663 = scmp.eq.s32.totalorder %s43, 0
      %p664 = por %p662, %p663
      %p665 = scmp.ne.s32.totalorder %s653, %s654
      %p666 = scmp.eq.s32.totalorder %s44, 1
      %p667 = por %p665, %p666
      %p669 = scmp.ne.s32.totalorder %s654, %s668
      %p670 = scmp.eq.s32.totalorder %s44, 0
      %p671 = por %p669, %p670
      %s673 = sadd.s32 %s672, 1
      %p676 = scmp.eq.s32.totalorder %s38, 1
      %p677 = scmp.ne.s32.totalorder %s672, %s674
      %p678 = scmp.eq.s32.totalorder %s38, 0
      %p679 = por %p677, %p678
      %p680 = scmp.ne.s32.totalorder %s672, %s674
      %p681 = scmp.eq.s32.totalorder %s43, 1
      %p682 = por %p680, %p681
      %p683 = scmp.ne.s32.totalorder %s674, %s675
      %p684 = scmp.eq.s32.totalorder %s43, 0
      %p685 = por %p683, %p684
      %p686 = scmp.ne.s32.totalorder %s674, %s675
      %p687 = scmp.eq.s32.totalorder %s44, 1
      %p688 = por %p686, %p687
      %p690 = scmp.ne.s32.totalorder %s675, %s689
      %p691 = scmp.eq.s32.totalorder %s44, 0
      %p692 = por %p690, %p691
      %s694 = sadd.s32 %s693, 1
      %p697 = scmp.eq.s32.totalorder %s38, 1
      %p698 = scmp.ne.s32.totalorder %s693, %s695
      %p699 = scmp.eq.s32.totalorder %s38, 0
      %p700 = por %p698, %p699
      %p701 = scmp.ne.s32.totalorder %s693, %s695
      %p702 = scmp.eq.s32.totalorder %s43, 1
      %p703 = por %p701, %p702
      %p704 = scmp.ne.s32.totalorder %s695, %s696
      %p705 = scmp.eq.s32.totalorder %s43, 0
      %p706 = por %p704, %p705
      %p707 = scmp.ne.s32.totalorder %s695, %s696
      %p708 = scmp.eq.s32.totalorder %s44, 1
      %p709 = por %p707, %p708
      %p711 = scmp.ne.s32.totalorder %s696, %s710
      %p712 = scmp.eq.s32.totalorder %s44, 0
      %p713 = por %p711, %p712
      %s715 = sadd.s32 %s714, 1
      %p718 = scmp.eq.s32.totalorder %s38, 1
      %p719 = scmp.ne.s32.totalorder %s714, %s716
      %p720 = scmp.eq.s32.totalorder %s38, 0
      %p721 = por %p719, %p720
      %p722 = scmp.ne.s32.totalorder %s714, %s716
      %p723 = scmp.eq.s32.totalorder %s43, 1
      %p724 = por %p722, %p723
      %p725 = scmp.ne.s32.totalorder %s716, %s717
      %p726 = scmp.eq.s32.totalorder %s43, 0
      %p727 = por %p725, %p726
      %p728 = scmp.ne.s32.totalorder %s716, %s717
      %p729 = scmp.eq.s32.totalorder %s44, 1
      %p730 = por %p728, %p729
      %p732 = scmp.ne.s32.totalorder %s717, %s731
      %p733 = scmp.eq.s32.totalorder %s44, 0
      %p734 = por %p732, %p733
      %p735 = scmp.le.s32.totalorder 1, %s38
      %p736 = scmp.lt.s32.totalorder %s38, 3
      %p737 = pnand %p735, %p736
      %p738 = pneg %p737
      // Predicated region
      $region9: #{_lambda_.1} parent=5 // pred_check
        _
      $region10: #{_lambda_.1} parent=5 // pred_check_branch
        %740 = sbr.rel (%p737) target = $region12
      $region11: #{_lambda_.1} parent=5 // pred_region
        %s741 = ssub.s32 %s38, 1
        // Predicated region
        $region13: #{_lambda_.1} parent=11 // pred_check
          %p742 = pneg %p59
        $region14: #{_lambda_.1} parent=11 // pred_check_branch
          %744 = sbr.rel (%p742) target = $region16
        $region15: #{_lambda_.1} parent=11 // pred_region
          %746 = vsyncadd [#allocation4], 0
          %s748 = sshll.u32 %s0, 4
          %s749 = int_to_ptr.hbm [resolvable:$true] %s748
          %s750 = sshll.u32 [#allocation3], 4
          %s751 = int_to_ptr.vmem [resolvable:$true] %s750
          %753 = dma.hbm_to_vmem [thread:$0]  %s749, 128, %s751, [#allocation4]
        $region16: #{_lambda_.1} parent=11 // pred_fallthru
          _
        // Predicated region
        $region17: #{_lambda_.1} parent=11 // pred_check
          %p754 = pneg %p80
        $region18: #{_lambda_.1} parent=11 // pred_check_branch
          %756 = sbr.rel (%p754) target = $region20
        $region19: #{_lambda_.1} parent=11 // pred_region
          %758 = vsyncadd [#allocation7], 0
          %s759 = sshll.u32 %s1, 4
          %s760 = int_to_ptr.hbm [resolvable:$true] %s759
          %s761 = sshll.u32 [#allocation6], 4
          %s762 = int_to_ptr.vmem [resolvable:$true] %s761
          %767 = dma.hbm_to_vmem [thread:$0]  %s760, 128, %s762, [#allocation7], 64, 64, 4
        $region20: #{_lambda_.1} parent=11 // pred_fallthru
          _
        // Predicated region
        $region21: #{_lambda_.1} parent=11 // pred_check
          %p768 = pneg %p101
        $region22: #{_lambda_.1} parent=11 // pred_check_branch
          %770 = sbr.rel (%p768) target = $region24
        $region23: #{_lambda_.1} parent=11 // pred_region
          _
        $region24: #{_lambda_.1} parent=11 // pred_fallthru
          _
        // Predicated region
        $region25: #{_lambda_.1} parent=11 // pred_check
          %p771 = pneg %p538
        $region26: #{_lambda_.1} parent=11 // pred_check_branch
          %773 = sbr.rel (%p771) target = $region28
        $region27: #{_lambda_.1} parent=11 // pred_region
          _
        $region28: #{_lambda_.1} parent=11 // pred_fallthru
          _
        // Predicated region
        $region29: #{_lambda_.1} parent=11 // pred_check
          %p774 = pneg %p559
        $region30: #{_lambda_.1} parent=11 // pred_check_branch
          %776 = sbr.rel (%p774) target = $region32
        $region31: #{_lambda_.1} parent=11 // pred_region
          _
        $region32: #{_lambda_.1} parent=11 // pred_fallthru
          _
        // Predicated region
        $region33: #{_lambda_.1} parent=11 // pred_check
          %p777 = pneg %p580
        $region34: #{_lambda_.1} parent=11 // pred_check_branch
          %779 = sbr.rel (%p777) target = $region36
        $region35: #{_lambda_.1} parent=11 // pred_region
          %781 = vsyncadd [#allocation7], 0
          %s782 = sshll.u32 %s21, 4
          %s783 = int_to_ptr.hbm [resolvable:$true] %s782
          %s784 = sshll.u32 [#allocation14], 4
          %s785 = int_to_ptr.vmem [resolvable:$true] %s784
          %790 = dma.hbm_to_vmem [thread:$0]  %s783, 256, %s785, [#allocation7], 64, 64, 4
        $region36: #{_lambda_.1} parent=11 // pred_fallthru
          _
        // Predicated region
        $region37: #{_lambda_.1} parent=11 // pred_check
          %p791 = pneg %p601
        $region38: #{_lambda_.1} parent=11 // pred_check_branch
          %793 = sbr.rel (%p791) target = $region40
        $region39: #{_lambda_.1} parent=11 // pred_region
          _
        $region40: #{_lambda_.1} parent=11 // pred_fallthru
          _
        // Predicated region
        $region41: #{_lambda_.1} parent=11 // pred_check
          %p794 = pneg %p622
        $region42: #{_lambda_.1} parent=11 // pred_check_branch
          %796 = sbr.rel (%p794) target = $region44
        $region43: #{_lambda_.1} parent=11 // pred_region
          %798 = vsyncadd [#allocation16], 0
          %s799 = sshll.u32 %s23, 4
          %s800 = int_to_ptr.hbm [resolvable:$true] %s799
          %s801 = sshll.u32 [#allocation15], 4
          %s802 = int_to_ptr.vmem [resolvable:$true] %s801
          %807 = dma.hbm_to_vmem [thread:$0]  %s800, 512, %s802, [#allocation16], 64, 64, 4
        $region44: #{_lambda_.1} parent=11 // pred_fallthru
          _
        // Predicated region
        $region45: #{_lambda_.1} parent=11 // pred_check
          %p808 = pneg %p643
        $region46: #{_lambda_.1} parent=11 // pred_check_branch
          %810 = sbr.rel (%p808) target = $region48
        $region47: #{_lambda_.1} parent=11 // pred_region
          _
        $region48: #{_lambda_.1} parent=11 // pred_fallthru
          _
        // Predicated region
        $region49: #{_lambda_.1} parent=11 // pred_check
          %p811 = pneg %p664
        $region50: #{_lambda_.1} parent=11 // pred_check_branch
          %813 = sbr.rel (%p811) target = $region52
        $region51: #{_lambda_.1} parent=11 // pred_region
          _
        $region52: #{_lambda_.1} parent=11 // pred_fallthru
          _
        // Predicated region
        $region53: #{_lambda_.1} parent=11 // pred_check
          %p814 = pneg %p685
        $region54: #{_lambda_.1} parent=11 // pred_check_branch
          %816 = sbr.rel (%p814) target = $region56
        $region55: #{_lambda_.1} parent=11 // pred_region
          _
        $region56: #{_lambda_.1} parent=11 // pred_fallthru
          _
        // Predicated region
        $region57: #{_lambda_.1} parent=11 // pred_check
          %p817 = pneg %p706
        $region58: #{_lambda_.1} parent=11 // pred_check_branch
          %819 = sbr.rel (%p817) target = $region60
        $region59: #{_lambda_.1} parent=11 // pred_region
          %821 = vsyncadd [#allocation16], 0
          %s822 = sshll.u32 %s27, 4
          %s823 = int_to_ptr.hbm [resolvable:$true] %s822
          %s824 = sshll.u32 [#allocation17], 4
          %s825 = int_to_ptr.vmem [resolvable:$true] %s824
          %830 = dma.hbm_to_vmem [thread:$0]  %s823, 128, %s825, [#allocation16], 64, 64, 4
        $region60: #{_lambda_.1} parent=11 // pred_fallthru
          _
      $region12: #{_lambda_.1} parent=5 // pred_fallthru
        _
      %p831 = scmp.lt.s32.totalorder %s38, 2
      // Predicated region
      $region61: #{_lambda_.1} parent=5 // pred_check
        %p832 = pneg %p831
      $region62: #{_lambda_.1} parent=5 // pred_check_branch
        %834 = sbr.rel (%p832) target = $region64
      $region63: #{_lambda_.1} parent=5 // pred_region
        // Predicated region
        $region65: #{_lambda_.1} parent=63 // pred_check
          %p835 = pneg %p121
        $region66: #{_lambda_.1} parent=63 // pred_check_branch
          %837 = sbr.rel (%p835) target = $region68
        $region67: #{_lambda_.1} parent=63 // pred_region
          %p838 = scmp.lt.s32.totalorder %s38, 1
          %s839 = scalar_select %p838, %s38, 1
          %s840 = scalar_lea.vmem %s3, %s839
        $region68: #{_lambda_.1} parent=63 // pred_fallthru
          _
        // Predicated region
        $region69: #{_lambda_.1} parent=63 // pred_check
          %p841 = pneg %p147
        $region70: #{_lambda_.1} parent=63 // pred_check_branch
          %843 = sbr.rel (%p841) target = $region72
        $region71: #{_lambda_.1} parent=63 // pred_region
          %p844 = scmp.lt.s32.totalorder %s38, 1
          %s845 = scalar_select %p844, %s38, 1
          %s846 = scalar_lea.vmem %s4, %s845
        $region72: #{_lambda_.1} parent=63 // pred_fallthru
          _
        // Predicated region
        $region73: #{_lambda_.1} parent=63 // pred_check
          %p847 = pneg %p173
        $region74: #{_lambda_.1} parent=63 // pred_check_branch
          %849 = sbr.rel (%p847) target = $region76
        $region75: #{_lambda_.1} parent=63 // pred_region
          %s850 = sand.u32 %s38, 1
          %s851 = scalar_lea.sflag [#allocation4], %s850
          %s852 = sand.u32 %s163, 1
          %s853 = smul.addr %s852, 64
          %s854 = scalar_lea.vmem [#allocation8], %s853
          %856 = vsyncadd %s851, 0
          %s857 = smul.addr %s38, 16
          %s858 = smul.addr %s857, 4
          %s859 = scalar_lea.hbm %s5, %s858
          %s860 = sshll.u32 %s859, 4
          %s861 = int_to_ptr.hbm [resolvable:$true] %s860
          %s862 = sshll.u32 %s854, 4
          %s863 = int_to_ptr.vmem [resolvable:$true] %s862
          %868 = dma.hbm_to_vmem [thread:$0]  %s861, 1024, %s863, %s851, 64, 64, 4
        $region76: #{_lambda_.1} parent=63 // pred_fallthru
          _
        // Predicated region
        $region77: #{_lambda_.1} parent=63 // pred_check
          %p869 = pneg %p199
        $region78: #{_lambda_.1} parent=63 // pred_check_branch
          %871 = sbr.rel (%p869) target = $region80
        $region79: #{_lambda_.1} parent=63 // pred_region
          %p872 = scmp.lt.s32.totalorder %s38, 1
          %s873 = scalar_select %p872, %s38, 1
          %s874 = smul.addr %s873, 4
          %s875 = scalar_lea.vmem %s6, %s874
        $region80: #{_lambda_.1} parent=63 // pred_fallthru
          _
        // Predicated region
        $region81: #{_lambda_.1} parent=63 // pred_check
          %p876 = pneg %p225
        $region82: #{_lambda_.1} parent=63 // pred_check_branch
          %878 = sbr.rel (%p876) target = $region84
        $region83: #{_lambda_.1} parent=63 // pred_region
          %s879 = sand.u32 %s38, 1
          %s880 = scalar_lea.sflag [#allocation4], %s879
          %s881 = sand.u32 %s215, 1
          %s882 = smul.addr %s881, 64
          %s883 = scalar_lea.vmem [#allocation9], %s882
          %885 = vsyncadd %s880, 0
          %s886 = smul.addr %s38, 16
          %s887 = smul.addr %s886, 4
          %s888 = scalar_lea.hbm %s7, %s887
          %s889 = sshll.u32 %s888, 4
          %s890 = int_to_ptr.hbm [resolvable:$true] %s889
          %s891 = sshll.u32 %s883, 4
          %s892 = int_to_ptr.vmem [resolvable:$true] %s891
          %897 = dma.hbm_to_vmem [thread:$0]  %s890, 1024, %s892, %s880, 64, 64, 4
        $region84: #{_lambda_.1} parent=63 // pred_fallthru
          _
        // Predicated region
        $region85: #{_lambda_.1} parent=63 // pred_check
          %p898 = pneg %p251
        $region86: #{_lambda_.1} parent=63 // pred_check_branch
          %900 = sbr.rel (%p898) target = $region88
        $region87: #{_lambda_.1} parent=63 // pred_region
          %p901 = scmp.lt.s32.totalorder %s38, 1
          %s902 = scalar_select %p901, %s38, 1
          %s903 = smul.addr %s902, 4
          %s904 = scalar_lea.vmem %s8, %s903
        $region88: #{_lambda_.1} parent=63 // pred_fallthru
          _
        // Predicated region
        $region89: #{_lambda_.1} parent=63 // pred_check
          %p905 = pneg %p277
        $region90: #{_lambda_.1} parent=63 // pred_check_branch
          %907 = sbr.rel (%p905) target = $region92
        $region91: #{_lambda_.1} parent=63 // pred_region
          %s908 = sand.u32 %s38, 1
          %s909 = scalar_lea.sflag [#allocation4], %s908
          %s910 = sand.u32 %s267, 1
          %s911 = smul.addr %s910, 64
          %s912 = scalar_lea.vmem [#allocation10], %s911
          %914 = vsyncadd %s909, 0
          %s915 = smul.addr %s38, 16
          %s916 = smul.addr %s915, 4
          %s917 = scalar_lea.hbm %s9, %s916
          %s918 = sshll.u32 %s917, 4
          %s919 = int_to_ptr.hbm [resolvable:$true] %s918
          %s920 = sshll.u32 %s912, 4
          %s921 = int_to_ptr.vmem [resolvable:$true] %s920
          %926 = dma.hbm_to_vmem [thread:$0]  %s919, 1024, %s921, %s909, 64, 64, 4
        $region92: #{_lambda_.1} parent=63 // pred_fallthru
          _
        // Predicated region
        $region93: #{_lambda_.1} parent=63 // pred_check
          %p927 = pneg %p303
        $region94: #{_lambda_.1} parent=63 // pred_check_branch
          %929 = sbr.rel (%p927) target = $region96
        $region95: #{_lambda_.1} parent=63 // pred_region
          %p930 = scmp.lt.s32.totalorder %s38, 1
          %s931 = scalar_select %p930, %s38, 1
          %s932 = smul.addr %s931, 4
          %s933 = scalar_lea.vmem %s10, %s932
        $region96: #{_lambda_.1} parent=63 // pred_fallthru
          _
        // Predicated region
        $region97: #{_lambda_.1} parent=63 // pred_check
          %p934 = pneg %p329
        $region98: #{_lambda_.1} parent=63 // pred_check_branch
          %936 = sbr.rel (%p934) target = $region100
        $region99: #{_lambda_.1} parent=63 // pred_region
          %s937 = sand.u32 %s38, 1
          %s938 = scalar_lea.sflag [#allocation4], %s937
          %s939 = sand.u32 %s319, 1
          %s940 = smul.addr %s939, 16
          %s941 = scalar_lea.vmem [#allocation11], %s940
          %943 = vsyncadd %s938, 0
          %s944 = smul.addr %s38, 4
          %s945 = smul.addr %s944, 4
          %s946 = scalar_lea.hbm %s11, %s945
          %s947 = sshll.u32 %s946, 4
          %s948 = int_to_ptr.hbm [resolvable:$true] %s947
          %s949 = sshll.u32 %s941, 4
          %s950 = int_to_ptr.vmem [resolvable:$true] %s949
          %955 = dma.hbm_to_vmem [thread:$0]  %s948, 256, %s950, %s938, 64, 64, 4
        $region100: #{_lambda_.1} parent=63 // pred_fallthru
          _
        // Predicated region
        $region101: #{_lambda_.1} parent=63 // pred_check
          %p956 = pneg %p355
        $region102: #{_lambda_.1} parent=63 // pred_check_branch
          %958 = sbr.rel (%p956) target = $region104
        $region103: #{_lambda_.1} parent=63 // pred_region
          %p959 = scmp.lt.s32.totalorder %s38, 1
          %s960 = scalar_select %p959, %s38, 1
          %s961 = scalar_lea.vmem %s12, %s960
        $region104: #{_lambda_.1} parent=63 // pred_fallthru
          _
        // Predicated region
        $region105: #{_lambda_.1} parent=63 // pred_check
          %p962 = pneg %p381
        $region106: #{_lambda_.1} parent=63 // pred_check_branch
          %964 = sbr.rel (%p962) target = $region108
        $region107: #{_lambda_.1} parent=63 // pred_region
          %p965 = scmp.lt.s32.totalorder %s38, 1
          %s966 = scalar_select %p965, %s38, 1
          %s967 = scalar_lea.vmem %s13, %s966
        $region108: #{_lambda_.1} parent=63 // pred_fallthru
          _
        // Predicated region
        $region109: #{_lambda_.1} parent=63 // pred_check
          %p968 = pneg %p407
        $region110: #{_lambda_.1} parent=63 // pred_check_branch
          %970 = sbr.rel (%p968) target = $region112
        $region111: #{_lambda_.1} parent=63 // pred_region
          %p971 = scmp.lt.s32.totalorder %s38, 1
          %s972 = scalar_select %p971, %s38, 1
          %s973 = scalar_lea.vmem %s14, %s972
        $region112: #{_lambda_.1} parent=63 // pred_fallthru
          _
        // Predicated region
        $region113: #{_lambda_.1} parent=63 // pred_check
          %p974 = pneg %p433
        $region114: #{_lambda_.1} parent=63 // pred_check_branch
          %976 = sbr.rel (%p974) target = $region116
        $region115: #{_lambda_.1} parent=63 // pred_region
          %s977 = sand.u32 %s38, 1
          %s978 = scalar_lea.sflag [#allocation4], %s977
          %s979 = sand.u32 %s423, 1
          %s980 = smul.addr %s979, 16
          %s981 = scalar_lea.vmem [#allocation12], %s980
          %983 = vsyncadd %s978, 0
          %s984 = smul.addr %s38, 4
          %s985 = smul.addr %s984, 4
          %s986 = scalar_lea.hbm %s15, %s985
          %s987 = sshll.u32 %s986, 4
          %s988 = int_to_ptr.hbm [resolvable:$true] %s987
          %s989 = sshll.u32 %s981, 4
          %s990 = int_to_ptr.vmem [resolvable:$true] %s989
          %995 = dma.hbm_to_vmem [thread:$0]  %s988, 256, %s990, %s978, 64, 64, 4
        $region116: #{_lambda_.1} parent=63 // pred_fallthru
          _
        // Predicated region
        $region117: #{_lambda_.1} parent=63 // pred_check
          %p996 = pneg %p459
        $region118: #{_lambda_.1} parent=63 // pred_check_branch
          %998 = sbr.rel (%p996) target = $region120
        $region119: #{_lambda_.1} parent=63 // pred_region
          %p999 = scmp.lt.s32.totalorder %s38, 1
          %s1000 = scalar_select %p999, %s38, 1
          %s1001 = scalar_lea.vmem %s16, %s1000
        $region120: #{_lambda_.1} parent=63 // pred_fallthru
          _
        // Predicated region
        $region121: #{_lambda_.1} parent=63 // pred_check
          %p1002 = pneg %p485
        $region122: #{_lambda_.1} parent=63 // pred_check_branch
          %1004 = sbr.rel (%p1002) target = $region124
        $region123: #{_lambda_.1} parent=63 // pred_region
          %s1005 = sand.u32 %s38, 1
          %s1006 = scalar_lea.sflag [#allocation4], %s1005
          %s1007 = sand.u32 %s475, 1
          %s1008 = smul.addr %s1007, 64
          %s1009 = scalar_lea.vmem [#allocation13], %s1008
          %1011 = vsyncadd %s1006, 0
          %s1012 = smul.addr %s38, 16
          %s1013 = smul.addr %s1012, 4
          %s1014 = scalar_lea.hbm %s17, %s1013
          %s1015 = sshll.u32 %s1014, 4
          %s1016 = int_to_ptr.hbm [resolvable:$true] %s1015
          %s1017 = sshll.u32 %s1009, 4
          %s1018 = int_to_ptr.vmem [resolvable:$true] %s1017
          %1023 = dma.hbm_to_vmem [thread:$0]  %s1016, 1024, %s1018, %s1006, 64, 64, 4
        $region124: #{_lambda_.1} parent=63 // pred_fallthru
          _
        // Predicated region
        $region125: #{_lambda_.1} parent=63 // pred_check
          %p1024 = pneg %p511
        $region126: #{_lambda_.1} parent=63 // pred_check_branch
          %1026 = sbr.rel (%p1024) target = $region128
        $region127: #{_lambda_.1} parent=63 // pred_region
          %p1027 = scmp.lt.s32.totalorder %s38, 1
          %s1028 = scalar_select %p1027, %s38, 1
          %s1029 = scalar_lea.vmem %s18, %s1028
        $region128: #{_lambda_.1} parent=63 // pred_fallthru
          _
      $region64: #{_lambda_.1} parent=5 // pred_fallthru
        _
      %p1030 = scmp.le.s32.totalorder 1, %s38
      %p1031 = scmp.lt.s32.totalorder %s38, 3
      %p1032 = pnand %p1030, %p1031
      %p1033 = pneg %p1032
      // Predicated region
      $region129: #{_lambda_.1} parent=5 // pred_check
        _
      $region130: #{_lambda_.1} parent=5 // pred_check_branch
        %1035 = sbr.rel (%p1032) target = $region132
      $region131: #{_lambda_.1} parent=5 // pred_region
        %s1036 = ssub.s32 %s38, 1
        // Predicated region
        $region133: #{_lambda_.1} parent=131 // pred_check
          %p1037 = pneg %p59
        $region134: #{_lambda_.1} parent=131 // pred_check_branch
          %1039 = sbr.rel (%p1037) target = $region136
        $region135: #{_lambda_.1} parent=131 // pred_region
          %1041 = dma.done [#allocation4], 128
        $region136: #{_lambda_.1} parent=131 // pred_fallthru
          _
        // Predicated region
        $region137: #{_lambda_.1} parent=131 // pred_check
          %p1042 = pneg %p80
        $region138: #{_lambda_.1} parent=131 // pred_check_branch
          %1044 = sbr.rel (%p1042) target = $region140
        $region139: #{_lambda_.1} parent=131 // pred_region
          %1046 = dma.done [#allocation7], 128
        $region140: #{_lambda_.1} parent=131 // pred_fallthru
          _
        %s1047 = sand.u32 %s43, 1
        %s1048 = scalar_lea.sflag [#allocation4], %s1047
        %s1049 = sand.u32 %s166, 1
        %s1050 = smul.addr %s1049, 64
        %s1051 = scalar_lea.vmem [#allocation8], %s1050
        // Predicated region
        $region141: #{_lambda_.1} parent=131 // pred_check
          %p1052 = pneg %p179
        $region142: #{_lambda_.1} parent=131 // pred_check_branch
          %1054 = sbr.rel (%p1052) target = $region144
        $region143: #{_lambda_.1} parent=131 // pred_region
          %1056 = dma.done %s1048, 1024
        $region144: #{_lambda_.1} parent=131 // pred_fallthru
          _
        %s1057 = sand.u32 %s43, 1
        %s1058 = scalar_lea.sflag [#allocation4], %s1057
        %s1059 = sand.u32 %s218, 1
        %s1060 = smul.addr %s1059, 64
        %s1061 = scalar_lea.vmem [#allocation9], %s1060
        // Predicated region
        $region145: #{_lambda_.1} parent=131 // pred_check
          %p1062 = pneg %p231
        $region146: #{_lambda_.1} parent=131 // pred_check_branch
          %1064 = sbr.rel (%p1062) target = $region148
        $region147: #{_lambda_.1} parent=131 // pred_region
          %1066 = dma.done %s1058, 1024
        $region148: #{_lambda_.1} parent=131 // pred_fallthru
          _
        %s1067 = sand.u32 %s43, 1
        %s1068 = scalar_lea.sflag [#allocation4], %s1067
        %s1069 = sand.u32 %s270, 1
        %s1070 = smul.addr %s1069, 64
        %s1071 = scalar_lea.vmem [#allocation10], %s1070
        // Predicated region
        $region149: #{_lambda_.1} parent=131 // pred_check
          %p1072 = pneg %p283
        $region150: #{_lambda_.1} parent=131 // pred_check_branch
          %1074 = sbr.rel (%p1072) target = $region152
        $region151: #{_lambda_.1} parent=131 // pred_region
          %1076 = dma.done %s1068, 1024
        $region152: #{_lambda_.1} parent=131 // pred_fallthru
          _
        %s1077 = sand.u32 %s43, 1
        %s1078 = scalar_lea.sflag [#allocation4], %s1077
        %s1079 = sand.u32 %s322, 1
        %s1080 = smul.addr %s1079, 16
        %s1081 = scalar_lea.vmem [#allocation11], %s1080
        // Predicated region
        $region153: #{_lambda_.1} parent=131 // pred_check
          %p1082 = pneg %p335
        $region154: #{_lambda_.1} parent=131 // pred_check_branch
          %1084 = sbr.rel (%p1082) target = $region156
        $region155: #{_lambda_.1} parent=131 // pred_region
          %1086 = dma.done %s1078, 256
        $region156: #{_lambda_.1} parent=131 // pred_fallthru
          _
        %s1087 = sand.u32 %s43, 1
        %s1088 = scalar_lea.sflag [#allocation4], %s1087
        %s1089 = sand.u32 %s426, 1
        %s1090 = smul.addr %s1089, 16
        %s1091 = scalar_lea.vmem [#allocation12], %s1090
        // Predicated region
        $region157: #{_lambda_.1} parent=131 // pred_check
          %p1092 = pneg %p439
        $region158: #{_lambda_.1} parent=131 // pred_check_branch
          %1094 = sbr.rel (%p1092) target = $region160
        $region159: #{_lambda_.1} parent=131 // pred_region
          %1096 = dma.done %s1088, 256
        $region160: #{_lambda_.1} parent=131 // pred_fallthru
          _
        %s1097 = sand.u32 %s43, 1
        %s1098 = scalar_lea.sflag [#allocation4], %s1097
        %s1099 = sand.u32 %s478, 1
        %s1100 = smul.addr %s1099, 64
        %s1101 = scalar_lea.vmem [#allocation13], %s1100
        // Predicated region
        $region161: #{_lambda_.1} parent=131 // pred_check
          %p1102 = pneg %p491
        $region162: #{_lambda_.1} parent=131 // pred_check_branch
          %1104 = sbr.rel (%p1102) target = $region164
        $region163: #{_lambda_.1} parent=131 // pred_region
          %1106 = dma.done %s1098, 1024
        $region164: #{_lambda_.1} parent=131 // pred_fallthru
          _
        // Predicated region
        $region165: #{_lambda_.1} parent=131 // pred_check
          %p1107 = pneg %p580
        $region166: #{_lambda_.1} parent=131 // pred_check_branch
          %1109 = sbr.rel (%p1107) target = $region168
        $region167: #{_lambda_.1} parent=131 // pred_region
          %1111 = dma.done [#allocation7], 256
        $region168: #{_lambda_.1} parent=131 // pred_fallthru
          _
        // Predicated region
        $region169: #{_lambda_.1} parent=131 // pred_check
          %p1112 = pneg %p622
        $region170: #{_lambda_.1} parent=131 // pred_check_branch
          %1114 = sbr.rel (%p1112) target = $region172
        $region171: #{_lambda_.1} parent=131 // pred_region
          %1116 = dma.done [#allocation16], 512
        $region172: #{_lambda_.1} parent=131 // pred_fallthru
          _
        // Predicated region
        $region173: #{_lambda_.1} parent=131 // pred_check
          %p1117 = pneg %p706
        $region174: #{_lambda_.1} parent=131 // pred_check_branch
          %1119 = sbr.rel (%p1117) target = $region176
        $region175: #{_lambda_.1} parent=131 // pred_region
          %1121 = dma.done [#allocation16], 128
        $region176: #{_lambda_.1} parent=131 // pred_fallthru
          _
        %p1122 = pneg %p59
        %p1123 = pneg %p56
        %p1124 = pneg %p80
        %p1125 = pneg %p77
        %p1126 = pneg %p101
        %p1127 = pneg %p98
        %p1128 = scmp.lt.s32.totalorder %s43, 1
        %s1129 = scalar_select %p1128, %s43, 1
        %s1130 = scalar_lea.vmem %s3, %s1129
        %p1131 = pneg %p127
        %p1132 = pneg %p124
        %p1133 = scmp.lt.s32.totalorder %s43, 1
        %s1134 = scalar_select %p1133, %s43, 1
        %s1135 = scalar_lea.vmem %s4, %s1134
        %p1136 = pneg %p153
        %p1137 = pneg %p150
        %s1138 = sand.u32 %s43, 1
        %s1139 = scalar_lea.sflag [#allocation4], %s1138
        %s1140 = sand.u32 %s166, 1
        %s1141 = smul.addr %s1140, 64
        %s1142 = scalar_lea.vmem [#allocation8], %s1141
        %p1143 = pneg %p179
        %p1144 = pneg %p176
        %p1145 = scmp.lt.s32.totalorder %s43, 1
        %s1146 = scalar_select %p1145, %s43, 1
        %s1147 = smul.addr %s1146, 4
        %s1148 = scalar_lea.vmem %s6, %s1147
        %p1149 = pneg %p205
        %p1150 = pneg %p202
        %s1151 = sand.u32 %s43, 1
        %s1152 = scalar_lea.sflag [#allocation4], %s1151
        %s1153 = sand.u32 %s218, 1
        %s1154 = smul.addr %s1153, 64
        %s1155 = scalar_lea.vmem [#allocation9], %s1154
        %p1156 = pneg %p231
        %p1157 = pneg %p228
        %p1158 = scmp.lt.s32.totalorder %s43, 1
        %s1159 = scalar_select %p1158, %s43, 1
        %s1160 = smul.addr %s1159, 4
        %s1161 = scalar_lea.vmem %s8, %s1160
        %p1162 = pneg %p257
        %p1163 = pneg %p254
        %s1164 = sand.u32 %s43, 1
        %s1165 = scalar_lea.sflag [#allocation4], %s1164
        %s1166 = sand.u32 %s270, 1
        %s1167 = smul.addr %s1166, 64
        %s1168 = scalar_lea.vmem [#allocation10], %s1167
        %p1169 = pneg %p283
        %p1170 = pneg %p280
        %p1171 = scmp.lt.s32.totalorder %s43, 1
        %s1172 = scalar_select %p1171, %s43, 1
        %s1173 = smul.addr %s1172, 4
        %s1174 = scalar_lea.vmem %s10, %s1173
        %p1175 = pneg %p309
        %p1176 = pneg %p306
        %s1177 = sand.u32 %s43, 1
        %s1178 = scalar_lea.sflag [#allocation4], %s1177
        %s1179 = sand.u32 %s322, 1
        %s1180 = smul.addr %s1179, 16
        %s1181 = scalar_lea.vmem [#allocation11], %s1180
        %p1182 = pneg %p335
        %p1183 = pneg %p332
        %p1184 = scmp.lt.s32.totalorder %s43, 1
        %s1185 = scalar_select %p1184, %s43, 1
        %s1186 = scalar_lea.vmem %s12, %s1185
        %p1187 = pneg %p361
        %p1188 = pneg %p358
        %p1189 = scmp.lt.s32.totalorder %s43, 1
        %s1190 = scalar_select %p1189, %s43, 1
        %s1191 = scalar_lea.vmem %s13, %s1190
        %p1192 = pneg %p387
        %p1193 = pneg %p384
        %p1194 = scmp.lt.s32.totalorder %s43, 1
        %s1195 = scalar_select %p1194, %s43, 1
        %s1196 = scalar_lea.vmem %s14, %s1195
        %p1197 = pneg %p413
        %p1198 = pneg %p410
        %s1199 = sand.u32 %s43, 1
        %s1200 = scalar_lea.sflag [#allocation4], %s1199
        %s1201 = sand.u32 %s426, 1
        %s1202 = smul.addr %s1201, 16
        %s1203 = scalar_lea.vmem [#allocation12], %s1202
        %p1204 = pneg %p439
        %p1205 = pneg %p436
        %p1206 = scmp.lt.s32.totalorder %s43, 1
        %s1207 = scalar_select %p1206, %s43, 1
        %s1208 = scalar_lea.vmem %s16, %s1207
        %p1209 = pneg %p465
        %p1210 = pneg %p462
        %s1211 = sand.u32 %s43, 1
        %s1212 = scalar_lea.sflag [#allocation4], %s1211
        %s1213 = sand.u32 %s478, 1
        %s1214 = smul.addr %s1213, 64
        %s1215 = scalar_lea.vmem [#allocation13], %s1214
        %p1216 = pneg %p491
        %p1217 = pneg %p488
        %p1218 = scmp.lt.s32.totalorder %s43, 1
        %s1219 = scalar_select %p1218, %s43, 1
        %s1220 = scalar_lea.vmem %s18, %s1219
        %p1221 = pneg %p517
        %p1222 = pneg %p514
        %p1223 = pneg %p538
        %p1224 = pneg %p535
        %p1225 = pneg %p559
        %p1226 = pneg %p556
        %p1227 = pneg %p580
        %p1228 = pneg %p577
        %p1229 = pneg %p601
        %p1230 = pneg %p598
        %p1231 = pneg %p622
        %p1232 = pneg %p619
        %p1233 = pneg %p643
        %p1234 = pneg %p640
        %p1235 = pneg %p664
        %p1236 = pneg %p661
        %p1237 = pneg %p685
        %p1238 = pneg %p682
        %p1239 = pneg %p706
        %p1240 = pneg %p703
        %p1241 = pneg %p727
        %p1242 = pneg %p724
        %p1243 = scmp.lt.s32.totalorder %s43, 1
        %s1244 = scalar_select %p1243, %s43, 1
        %s1245 = scalar_lea.vmem %s3, %s1244
        %p1246 = scmp.lt.s32.totalorder %s43, 1
        %s1247 = scalar_select %p1246, %s43, 1
        %s1248 = scalar_lea.vmem %s4, %s1247
        %p1249 = scmp.lt.s32.totalorder %s43, 1
        %s1250 = scalar_select %p1249, %s43, 1
        %s1251 = smul.addr %s1250, 4
        %s1252 = scalar_lea.vmem %s6, %s1251
        %p1253 = scmp.lt.s32.totalorder %s43, 1
        %s1254 = scalar_select %p1253, %s43, 1
        %s1255 = smul.addr %s1254, 4
        %s1256 = scalar_lea.vmem %s8, %s1255
        %p1257 = scmp.lt.s32.totalorder %s43, 1
        %s1258 = scalar_select %p1257, %s43, 1
        %s1259 = smul.addr %s1258, 4
        %s1260 = scalar_lea.vmem %s10, %s1259
        %p1261 = scmp.lt.s32.totalorder %s43, 1
        %s1262 = scalar_select %p1261, %s43, 1
        %s1263 = scalar_lea.vmem %s12, %s1262
        %p1264 = scmp.lt.s32.totalorder %s43, 1
        %s1265 = scalar_select %p1264, %s43, 1
        %s1266 = scalar_lea.vmem %s13, %s1265
        %p1267 = scmp.lt.s32.totalorder %s43, 1
        %s1268 = scalar_select %p1267, %s43, 1
        %s1269 = scalar_lea.vmem %s14, %s1268
        %p1270 = scmp.lt.s32.totalorder %s43, 1
        %s1271 = scalar_select %p1270, %s43, 1
        %s1272 = scalar_lea.vmem %s16, %s1271
        %p1273 = scmp.lt.s32.totalorder %s43, 1
        %s1274 = scalar_select %p1273, %s43, 1
        %s1275 = scalar_lea.vmem %s18, %s1274
        %p1277 = scmp.eq.s32.totalorder %s43, 0
        // Predicated region
        $region177: #{_lambda_.1} parent=131 // pred_check
          %p1278 = pneg %p1277
        $region178: #{_lambda_.1} parent=131 // pred_check_branch
          %1280 = sbr.rel (%p1278) target = $region180
        $region179: #{_lambda_.1} parent=131 // pred_region
          %v1281 = vld [vmem:[#allocation3] sm:$0xff]
          %v1282 = vld [vmem:[#allocation6] sm:$0xf]
          %v1283 = vld [vmem:[#allocation6 + $0x4] sm:$0xf]
          %v1284 = vpack.c.bf16 %v1281, %v1281
          %v1285 = vld [vmem:[%s2] sm:$0x1]
          %v1287 = vperm.slane %v1285, 0
          %v1291 = vunpack.c.l.b16 %v1282
          %v1292 = vunpack.c.l.b16 %v1283
          %v1293 = vpack.c.b16 %v1292, %v1291
          %vm1295 = vcmask 130048
          %v1297 = vsel %vm1295, %v1284, 0
          %1299 = vmatpush.bf16.msra.mxu0 0
          %1300 = vmatpush.bf16.msra.mxu0 0
          %1301 = vmatpush.bf16.msra.mxu0 0
          %1302 = vmatpush.bf16.msra.mxu0 0
          %1303 = vmatpush.bf16.msra.mxu0 0
          %1304 = vmatpush.bf16.msra.mxu0 0
          %1305 = vmatpush.bf16.msra.mxu0 0
          %1306 = vmatpush.bf16.msra.mxu0 %v1293
          %1307 = vmatmul.bf16.gmra.mxu0 %v1297
          %v1308 = vpop.f32.mrf.mxu0
          %v1309 = vadd.f32 %v1287, %v1308
          %v1310 = vpop.f32.mrf.mxu0
          %1311 = vdwg.mxu0
          %vm1312 = vcmask 261120
          %1313 = vst.msk [vmem:[#allocation2] sm:$0xff] %vm1312, %v1309
        $region180: #{_lambda_.1} parent=131 // pred_fallthru
          _
        %v1314 = vld [vmem:[#allocation2] sm:$0xff]
        %v1315 = vld [vmem:[%s1245] sm:$0x1]
        %v1316 = vld [vmem:[%s1248] sm:$0x1]
        %vm1317 = vcmask 261120
        %v1318 = vsel %vm1317, %v1314, 0.0
        %1319 = vadd.xlane.f32.xlu0 %v1318
        %v1320 = vpop.xlane.xlu0 %1319
        %v1321 = vrcp.pop 32.0
        %v1322 = vmul.f32 32.0, %v1321
        %v1323 = vsub.f32 1.0, %v1322
        %v1324 = vmul.f32 %v1321, %v1323
        %v1325 = vadd.f32 %v1321, %v1324
        %vm1326 = vweird.f32 %v1321
        %v1327 = vsel %vm1326, %v1321, %v1325
        %v1328 = vmul.f32 %v1320, %v1327
        %v1329 = vsub.f32 %v1314, %v1328
        %v1330 = vmul.f32 %v1329, %v1329
        %v1331 = vsel %vm1317, %v1330, 0.0
        %1332 = vadd.xlane.f32.xlu0 %v1331
        %v1333 = vpop.xlane.xlu0 %1332
        %v1334 = vmul.f32 %v1333, %v1327
        %v1335 = vadd.f32 %v1334, 1e-05
        %v1336 = vrsqrt.pop %v1335
        %v1337 = vmul.f32 %v1336, %v1335
        %v1338 = vmul.f32 %v1337, %v1336
        %v1339 = vmul.f32 0.5, %v1338
        %v1340 = vsub.f32 1.5, %v1339
        %v1341 = vmul.f32 %v1336, %v1340
        %vm1342 = vweird.f32 %v1335
        %vm1343 = vweird.f32 %v1336
        %vm1344 = vmor %vm1342, %vm1343
        %v1345 = vsel %vm1344, %v1336, %v1341
        %v1346 = vmul.f32 %v1329, %v1345
        %v1348 = vperm.slane %v1315, 0
        %v1350 = vmul.f32 %v1346, %v1348
        %v1352 = vperm.slane %v1316, 0
        %v1354 = vadd.f32 %v1350, %v1352
        %v1355 = vld [vmem:[%s1051] sm:$0xf]
        %v1356 = vld [vmem:[%s1051 + $0x4] sm:$0xf]
        %v1357 = vld [vmem:[%s1051 + $0x8] sm:$0xf]
        %v1358 = vld [vmem:[%s1051 + $0xc] sm:$0xf]
        %v1359 = vpack.c.bf16 %v1354, %v1354
        %v1360 = vld [vmem:[%s1252] sm:$0x1]
        %v1362 = vperm.slane %v1360, 0
        %v1368 = vunpack.c.l.b16 %v1355
        %v1369 = vunpack.c.l.b16 %v1356
        %v1370 = vunpack.c.l.b16 %v1357
        %v1371 = vunpack.c.l.b16 %v1358
        %v1372 = vpack.c.b16 %v1369, %v1368
        %v1373 = vpack.c.b16 %v1371, %v1370
        %v1377 = vsel %vm1317, %v1359, 0
        %1379 = vmatpush.bf16.msra.mxu0 0
        %1380 = vmatpush.bf16.msra.mxu0 0
        %1381 = vmatpush.bf16.msra.mxu0 0
        %1382 = vmatpush.bf16.msra.mxu0 0
        %1383 = vmatpush.bf16.msra.mxu0 0
        %1384 = vmatpush.bf16.msra.mxu0 0
        %1385 = vmatpush.bf16.msra.mxu0 %v1373
        %1386 = vmatpush.bf16.msra.mxu0 %v1372
        %1387 = vmatmul.bf16.gmra.mxu0 %v1377
        %v1388 = vpop.f32.mrf.mxu0
        %v1389 = vadd.f32 %v1362, %v1388
        %v1390 = vpop.f32.mrf.mxu0
        %1391 = vdwg.mxu0
        %v1392 = vld [vmem:[%s1061] sm:$0xf]
        %v1393 = vld [vmem:[%s1061 + $0x4] sm:$0xf]
        %v1394 = vld [vmem:[%s1061 + $0x8] sm:$0xf]
        %v1395 = vld [vmem:[%s1061 + $0xc] sm:$0xf]
        %v1396 = vld [vmem:[%s1256] sm:$0x1]
        %v1398 = vperm.slane %v1396, 0
        %v1404 = vunpack.c.l.b16 %v1392
        %v1405 = vunpack.c.l.b16 %v1393
        %v1406 = vunpack.c.l.b16 %v1394
        %v1407 = vunpack.c.l.b16 %v1395
        %v1408 = vpack.c.b16 %v1405, %v1404
        %v1409 = vpack.c.b16 %v1407, %v1406
        %1412 = vmatpush.bf16.msra.mxu0 0
        %1413 = vmatpush.bf16.msra.mxu0 0
        %1414 = vmatpush.bf16.msra.mxu0 0
        %1415 = vmatpush.bf16.msra.mxu0 0
        %1416 = vmatpush.bf16.msra.mxu0 0
        %1417 = vmatpush.bf16.msra.mxu0 0
        %1418 = vmatpush.bf16.msra.mxu0 %v1409
        %1419 = vmatpush.bf16.msra.mxu0 %v1408
        %1420 = vmatmul.bf16.gmra.mxu0 %v1377
        %v1421 = vpop.f32.mrf.mxu0
        %v1422 = vadd.f32 %v1398, %v1421
        %v1423 = vpop.f32.mrf.mxu0
        %1424 = vdwg.mxu0
        %v1425 = vld [vmem:[%s1071] sm:$0xf]
        %v1426 = vld [vmem:[%s1071 + $0x4] sm:$0xf]
        %v1427 = vld [vmem:[%s1071 + $0x8] sm:$0xf]
        %v1428 = vld [vmem:[%s1071 + $0xc] sm:$0xf]
        %v1429 = vld [vmem:[%s1260] sm:$0x1]
        %v1431 = vperm.slane %v1429, 0
        %v1437 = vunpack.c.l.b16 %v1425
        %v1438 = vunpack.c.l.b16 %v1426
        %v1439 = vunpack.c.l.b16 %v1427
        %v1440 = vunpack.c.l.b16 %v1428
        %v1441 = vpack.c.b16 %v1438, %v1437
        %v1442 = vpack.c.b16 %v1440, %v1439
        %1445 = vmatpush.bf16.msra.mxu0 0
        %1446 = vmatpush.bf16.msra.mxu0 0
        %1447 = vmatpush.bf16.msra.mxu0 0
        %1448 = vmatpush.bf16.msra.mxu0 0
        %1449 = vmatpush.bf16.msra.mxu0 0
        %1450 = vmatpush.bf16.msra.mxu0 0
        %1451 = vmatpush.bf16.msra.mxu0 %v1442
        %1452 = vmatpush.bf16.msra.mxu0 %v1441
        %1453 = vmatmul.bf16.gmra.mxu0 %v1377
        %v1454 = vpop.f32.mrf.mxu0
        %v1455 = vadd.f32 %v1431, %v1454
        %v1456 = vpop.f32.mrf.mxu0
        %1457 = vdwg.mxu0
        %v1458 = vpack.c.bf16 %v1389, %v1389
        %v1459 = vpack.c.bf16 %v1422, %v1422
        %vm1460 = vcmask 64512
        %v1462 = vsel %vm1460, %v1458, 0
        %v1465 = vsel %vm1460, %v1459, 0
        %1467 = vmatpush.bf16.xpose.msra.mxu0 0
        %1468 = vmatpush.bf16.xpose.msra.mxu0 0
        %1469 = vmatpush.bf16.xpose.msra.mxu0 0
        %1470 = vmatpush.bf16.xpose.msra.mxu0 0
        %1471 = vmatpush.bf16.xpose.msra.mxu0 0
        %1472 = vmatpush.bf16.xpose.msra.mxu0 0
        %1473 = vmatpush.bf16.xpose.msra.mxu0 0
        %1474 = vmatpush.bf16.xpose.msra.mxu0 %v1465
        %1475 = vmatmul.bf16.gmra.mxu0 %v1462
        %v1476 = vpop.f32.mrf.mxu0
        %v1477 = vadd.f32 0.0, %v1476
        %v1478 = vpop.f32.mrf.mxu0
        %1479 = vdwg.mxu0
        %v1480 = vsel %vm1460, %v1477, -inf
        %1481 = vmax.xlane.f32.xlu0 %v1480
        %v1482 = vpop.xlane.xlu0 %1481
        %v1483 = vsub.f32 %v1477, %v1482
        %v1484 = vmul.f32 %v1483, 1.442695
        %v1485 = vpow.pop %v1484
        %v1486 = vsel %vm1460, %v1485, 0.0
        %1487 = vadd.xlane.f32.xlu0 %v1486
        %v1488 = vpop.xlane.xlu0 %1487
        %v1489 = vrcp.pop %v1488
        %v1490 = vmul.f32 %v1485, %v1489
        %v1491 = vpack.c.bf16 %v1490, %v1490
        %v1492 = vpack.c.bf16 %v1455, %v1455
        %v1494 = vsel %vm1460, %v1491, 0
        %vm1496 = vcmask 1043456
        %v1498 = vsel %vm1496, %v1492, 0
        %1500 = vmatpush.bf16.msra.mxu0 0
        %1501 = vmatpush.bf16.msra.mxu0 0
        %1502 = vmatpush.bf16.msra.mxu0 0
        %1503 = vmatpush.bf16.msra.mxu0 0
        %1504 = vmatpush.bf16.msra.mxu0 0
        %1505 = vmatpush.bf16.msra.mxu0 0
        %1506 = vmatpush.bf16.msra.mxu0 0
        %1507 = vmatpush.bf16.msra.mxu0 %v1498
        %1508 = vmatmul.bf16.gmra.mxu0 %v1494
        %v1509 = vpop.f32.mrf.mxu0
        %v1510 = vadd.f32 0.0, %v1509
        %v1511 = vpop.f32.mrf.mxu0
        %1512 = vdwg.mxu0
        %v1513 = vld [vmem:[%s1081] sm:$0xf]
        %v1514 = vpack.c.bf16 %v1510, %v1510
        %s1515 = scalar_lea.vmem %s1051, 16 [#allocation8]
        %v1516 = vld [vmem:[%s1515] sm:$0xf]
        %v1517 = vld [vmem:[%s1515 + $0x4] sm:$0xf]
        %v1518 = vld [vmem:[%s1515 + $0x8] sm:$0xf]
        %v1519 = vld [vmem:[%s1515 + $0xc] sm:$0xf]
        %s1520 = scalar_lea.vmem %s1252, 1
        %v1521 = vld [vmem:[%s1520] sm:$0x1]
        %v1523 = vperm.slane %v1521, 0
        %v1529 = vunpack.c.l.b16 %v1516
        %v1530 = vunpack.c.l.b16 %v1517
        %v1531 = vunpack.c.l.b16 %v1518
        %v1532 = vunpack.c.l.b16 %v1519
        %v1533 = vpack.c.b16 %v1530, %v1529
        %v1534 = vpack.c.b16 %v1532, %v1531
        %1537 = vmatpush.bf16.msra.mxu0 0
        %1538 = vmatpush.bf16.msra.mxu0 0
        %1539 = vmatpush.bf16.msra.mxu0 0
        %1540 = vmatpush.bf16.msra.mxu0 0
        %1541 = vmatpush.bf16.msra.mxu0 0
        %1542 = vmatpush.bf16.msra.mxu0 0
        %1543 = vmatpush.bf16.msra.mxu0 %v1534
        %1544 = vmatpush.bf16.msra.mxu0 %v1533
        %1545 = vmatmul.bf16.gmra.mxu0 %v1377
        %v1546 = vpop.f32.mrf.mxu0
        %v1547 = vadd.f32 %v1523, %v1546
        %v1548 = vpop.f32.mrf.mxu0
        %1549 = vdwg.mxu0
        %s1550 = scalar_lea.vmem %s1061, 16 [#allocation9]
        %v1551 = vld [vmem:[%s1550] sm:$0xf]
        %v1552 = vld [vmem:[%s1550 + $0x4] sm:$0xf]
        %v1553 = vld [vmem:[%s1550 + $0x8] sm:$0xf]
        %v1554 = vld [vmem:[%s1550 + $0xc] sm:$0xf]
        %s1555 = scalar_lea.vmem %s1256, 1
        %v1556 = vld [vmem:[%s1555] sm:$0x1]
        %v1558 = vperm.slane %v1556, 0
        %v1564 = vunpack.c.l.b16 %v1551
        %v1565 = vunpack.c.l.b16 %v1552
        %v1566 = vunpack.c.l.b16 %v1553
        %v1567 = vunpack.c.l.b16 %v1554
        %v1568 = vpack.c.b16 %v1565, %v1564
        %v1569 = vpack.c.b16 %v1567, %v1566
        %1572 = vmatpush.bf16.msra.mxu0 0
        %1573 = vmatpush.bf16.msra.mxu0 0
        %1574 = vmatpush.bf16.msra.mxu0 0
        %1575 = vmatpush.bf16.msra.mxu0 0
        %1576 = vmatpush.bf16.msra.mxu0 0
        %1577 = vmatpush.bf16.msra.mxu0 0
        %1578 = vmatpush.bf16.msra.mxu0 %v1569
        %1579 = vmatpush.bf16.msra.mxu0 %v1568
        %1580 = vmatmul.bf16.gmra.mxu0 %v1377
        %v1581 = vpop.f32.mrf.mxu0
        %v1582 = vadd.f32 %v1558, %v1581
        %v1583 = vpop.f32.mrf.mxu0
        %1584 = vdwg.mxu0
        %s1585 = scalar_lea.vmem %s1071, 16 [#allocation10]
        %v1586 = vld [vmem:[%s1585] sm:$0xf]
        %v1587 = vld [vmem:[%s1585 + $0x4] sm:$0xf]
        %v1588 = vld [vmem:[%s1585 + $0x8] sm:$0xf]
        %v1589 = vld [vmem:[%s1585 + $0xc] sm:$0xf]
        %s1590 = scalar_lea.vmem %s1260, 1
        %v1591 = vld [vmem:[%s1590] sm:$0x1]
        %v1593 = vperm.slane %v1591, 0
        %v1599 = vunpack.c.l.b16 %v1586
        %v1600 = vunpack.c.l.b16 %v1587
        %v1601 = vunpack.c.l.b16 %v1588
        %v1602 = vunpack.c.l.b16 %v1589
        %v1603 = vpack.c.b16 %v1600, %v1599
        %v1604 = vpack.c.b16 %v1602, %v1601
        %1607 = vmatpush.bf16.msra.mxu0 0
        %1608 = vmatpush.bf16.msra.mxu0 0
        %1609 = vmatpush.bf16.msra.mxu0 0
        %1610 = vmatpush.bf16.msra.mxu0 0
        %1611 = vmatpush.bf16.msra.mxu0 0
        %1612 = vmatpush.bf16.msra.mxu0 0
        %1613 = vmatpush.bf16.msra.mxu0 %v1604
        %1614 = vmatpush.bf16.msra.mxu0 %v1603
        %1615 = vmatmul.bf16.gmra.mxu0 %v1377
        %v1616 = vpop.f32.mrf.mxu0
        %v1617 = vadd.f32 %v1593, %v1616
        %v1618 = vpop.f32.mrf.mxu0
        %1619 = vdwg.mxu0
        %v1620 = vpack.c.bf16 %v1547, %v1547
        %v1621 = vpack.c.bf16 %v1582, %v1582
        %v1623 = vsel %vm1460, %v1620, 0
        %v1626 = vsel %vm1460, %v1621, 0
        %1628 = vmatpush.bf16.xpose.msra.mxu0 0
        %1629 = vmatpush.bf16.xpose.msra.mxu0 0
        %1630 = vmatpush.bf16.xpose.msra.mxu0 0
        %1631 = vmatpush.bf16.xpose.msra.mxu0 0
        %1632 = vmatpush.bf16.xpose.msra.mxu0 0
        %1633 = vmatpush.bf16.xpose.msra.mxu0 0
        %1634 = vmatpush.bf16.xpose.msra.mxu0 0
        %1635 = vmatpush.bf16.xpose.msra.mxu0 %v1626
        %1636 = vmatmul.bf16.gmra.mxu0 %v1623
        %v1637 = vpop.f32.mrf.mxu0
        %v1638 = vadd.f32 0.0, %v1637
        %v1639 = vpop.f32.mrf.mxu0
        %1640 = vdwg.mxu0
        %v1641 = vsel %vm1460, %v1638, -inf
        %1642 = vmax.xlane.f32.xlu0 %v1641
        %v1643 = vpop.xlane.xlu0 %1642
        %v1644 = vsub.f32 %v1638, %v1643
        %v1645 = vmul.f32 %v1644, 1.442695
        %v1646 = vpow.pop %v1645
        %v1647 = vsel %vm1460, %v1646, 0.0
        %1648 = vadd.xlane.f32.xlu0 %v1647
        %v1649 = vpop.xlane.xlu0 %1648
        %v1650 = vrcp.pop %v1649
        %v1651 = vmul.f32 %v1646, %v1650
        %v1652 = vpack.c.bf16 %v1651, %v1651
        %v1653 = vpack.c.bf16 %v1617, %v1617
        %v1655 = vsel %vm1460, %v1652, 0
        %v1658 = vsel %vm1496, %v1653, 0
        %1660 = vmatpush.bf16.msra.mxu0 0
        %1661 = vmatpush.bf16.msra.mxu0 0
        %1662 = vmatpush.bf16.msra.mxu0 0
        %1663 = vmatpush.bf16.msra.mxu0 0
        %1664 = vmatpush.bf16.msra.mxu0 0
        %1665 = vmatpush.bf16.msra.mxu0 0
        %1666 = vmatpush.bf16.msra.mxu0 0
        %1667 = vmatpush.bf16.msra.mxu0 %v1658
        %1668 = vmatmul.bf16.gmra.mxu0 %v1655
        %v1669 = vpop.f32.mrf.mxu0
        %v1670 = vadd.f32 0.0, %v1669
        %v1671 = vpop.f32.mrf.mxu0
        %1672 = vdwg.mxu0
        %s1673 = scalar_lea.vmem %s1081, 4 [#allocation11]
        %v1674 = vld [vmem:[%s1673] sm:$0xf]
        %v1675 = vpack.c.bf16 %v1670, %v1670
        %v1677 = vsel %vm1460, %v1675, 0
        %v1680 = vsel %vm1496, %v1674, 0
        %1682 = vmatpush.bf16.msra.mxu0 0
        %1683 = vmatpush.bf16.msra.mxu0 0
        %1684 = vmatpush.bf16.msra.mxu0 0
        %1685 = vmatpush.bf16.msra.mxu0 0
        %1686 = vmatpush.bf16.msra.mxu0 0
        %1687 = vmatpush.bf16.msra.mxu0 0
        %1688 = vmatpush.bf16.msra.mxu0 0
        %1689 = vmatpush.bf16.msra.mxu0 %v1680
        %1690 = vmatmul.bf16.gmra.mxu0 %v1677
        %v1691 = vpop.f32.mrf.mxu0
        %v1692 = vadd.f32 0.0, %v1691
        %v1693 = vpop.f32.mrf.mxu0
        %1694 = vdwg.mxu0
        %v1696 = vsel %vm1460, %v1514, 0
        %v1699 = vsel %vm1496, %v1513, 0
        %1701 = vmatpush.bf16.msra.mxu0 0
        %1702 = vmatpush.bf16.msra.mxu0 0
        %1703 = vmatpush.bf16.msra.mxu0 0
        %1704 = vmatpush.bf16.msra.mxu0 0
        %1705 = vmatpush.bf16.msra.mxu0 0
        %1706 = vmatpush.bf16.msra.mxu0 0
        %1707 = vmatpush.bf16.msra.mxu0 0
        %1708 = vmatpush.bf16.msra.mxu0 %v1699
        %1709 = vmatmul.bf16.gmra.mxu0 %v1696
        %v1710 = vpop.f32.mrf.mxu0
        %v1711 = vadd.f32 %v1692, %v1710
        %v1712 = vpop.f32.mrf.mxu0
        %1713 = vdwg.mxu0
        %s1714 = scalar_lea.vmem %s1051, 32 [#allocation8]
        %v1715 = vld [vmem:[%s1714] sm:$0xf]
        %v1716 = vld [vmem:[%s1714 + $0x4] sm:$0xf]
        %v1717 = vld [vmem:[%s1714 + $0x8] sm:$0xf]
        %v1718 = vld [vmem:[%s1714 + $0xc] sm:$0xf]
        %s1719 = scalar_lea.vmem %s1252, 2
        %v1720 = vld [vmem:[%s1719] sm:$0x1]
        %v1722 = vperm.slane %v1720, 0
        %v1728 = vunpack.c.l.b16 %v1715
        %v1729 = vunpack.c.l.b16 %v1716
        %v1730 = vunpack.c.l.b16 %v1717
        %v1731 = vunpack.c.l.b16 %v1718
        %v1732 = vpack.c.b16 %v1729, %v1728
        %v1733 = vpack.c.b16 %v1731, %v1730
        %1736 = vmatpush.bf16.msra.mxu0 0
        %1737 = vmatpush.bf16.msra.mxu0 0
        %1738 = vmatpush.bf16.msra.mxu0 0
        %1739 = vmatpush.bf16.msra.mxu0 0
        %1740 = vmatpush.bf16.msra.mxu0 0
        %1741 = vmatpush.bf16.msra.mxu0 0
        %1742 = vmatpush.bf16.msra.mxu0 %v1733
        %1743 = vmatpush.bf16.msra.mxu0 %v1732
        %1744 = vmatmul.bf16.gmra.mxu0 %v1377
        %v1745 = vpop.f32.mrf.mxu0
        %v1746 = vadd.f32 %v1722, %v1745
        %v1747 = vpop.f32.mrf.mxu0
        %1748 = vdwg.mxu0
        %s1749 = scalar_lea.vmem %s1061, 32 [#allocation9]
        %v1750 = vld [vmem:[%s1749] sm:$0xf]
        %v1751 = vld [vmem:[%s1749 + $0x4] sm:$0xf]
        %v1752 = vld [vmem:[%s1749 + $0x8] sm:$0xf]
        %v1753 = vld [vmem:[%s1749 + $0xc] sm:$0xf]
        %s1754 = scalar_lea.vmem %s1256, 2
        %v1755 = vld [vmem:[%s1754] sm:$0x1]
        %v1757 = vperm.slane %v1755, 0
        %v1763 = vunpack.c.l.b16 %v1750
        %v1764 = vunpack.c.l.b16 %v1751
        %v1765 = vunpack.c.l.b16 %v1752
        %v1766 = vunpack.c.l.b16 %v1753
        %v1767 = vpack.c.b16 %v1764, %v1763
        %v1768 = vpack.c.b16 %v1766, %v1765
        %1771 = vmatpush.bf16.msra.mxu0 0
        %1772 = vmatpush.bf16.msra.mxu0 0
        %1773 = vmatpush.bf16.msra.mxu0 0
        %1774 = vmatpush.bf16.msra.mxu0 0
        %1775 = vmatpush.bf16.msra.mxu0 0
        %1776 = vmatpush.bf16.msra.mxu0 0
        %1777 = vmatpush.bf16.msra.mxu0 %v1768
        %1778 = vmatpush.bf16.msra.mxu0 %v1767
        %1779 = vmatmul.bf16.gmra.mxu0 %v1377
        %v1780 = vpop.f32.mrf.mxu0
        %v1781 = vadd.f32 %v1757, %v1780
        %v1782 = vpop.f32.mrf.mxu0
        %1783 = vdwg.mxu0
        %s1784 = scalar_lea.vmem %s1071, 32 [#allocation10]
        %v1785 = vld [vmem:[%s1784] sm:$0xf]
        %v1786 = vld [vmem:[%s1784 + $0x4] sm:$0xf]
        %v1787 = vld [vmem:[%s1784 + $0x8] sm:$0xf]
        %v1788 = vld [vmem:[%s1784 + $0xc] sm:$0xf]
        %s1789 = scalar_lea.vmem %s1260, 2
        %v1790 = vld [vmem:[%s1789] sm:$0x1]
        %v1792 = vperm.slane %v1790, 0
        %v1798 = vunpack.c.l.b16 %v1785
        %v1799 = vunpack.c.l.b16 %v1786
        %v1800 = vunpack.c.l.b16 %v1787
        %v1801 = vunpack.c.l.b16 %v1788
        %v1802 = vpack.c.b16 %v1799, %v1798
        %v1803 = vpack.c.b16 %v1801, %v1800
        %1806 = vmatpush.bf16.msra.mxu0 0
        %1807 = vmatpush.bf16.msra.mxu0 0
        %1808 = vmatpush.bf16.msra.mxu0 0
        %1809 = vmatpush.bf16.msra.mxu0 0
        %1810 = vmatpush.bf16.msra.mxu0 0
        %1811 = vmatpush.bf16.msra.mxu0 0
        %1812 = vmatpush.bf16.msra.mxu0 %v1803
        %1813 = vmatpush.bf16.msra.mxu0 %v1802
        %1814 = vmatmul.bf16.gmra.mxu0 %v1377
        %v1815 = vpop.f32.mrf.mxu0
        %v1816 = vadd.f32 %v1792, %v1815
        %v1817 = vpop.f32.mrf.mxu0
        %1818 = vdwg.mxu0
        %v1819 = vpack.c.bf16 %v1746, %v1746
        %v1820 = vpack.c.bf16 %v1781, %v1781
        %v1822 = vsel %vm1460, %v1819, 0
        %v1825 = vsel %vm1460, %v1820, 0
        %1827 = vmatpush.bf16.xpose.msra.mxu0 0
        %1828 = vmatpush.bf16.xpose.msra.mxu0 0
        %1829 = vmatpush.bf16.xpose.msra.mxu0 0
        %1830 = vmatpush.bf16.xpose.msra.mxu0 0
        %1831 = vmatpush.bf16.xpose.msra.mxu0 0
        %1832 = vmatpush.bf16.xpose.msra.mxu0 0
        %1833 = vmatpush.bf16.xpose.msra.mxu0 0
        %1834 = vmatpush.bf16.xpose.msra.mxu0 %v1825
        %1835 = vmatmul.bf16.gmra.mxu0 %v1822
        %v1836 = vpop.f32.mrf.mxu0
        %v1837 = vadd.f32 0.0, %v1836
        %v1838 = vpop.f32.mrf.mxu0
        %1839 = vdwg.mxu0
        %v1840 = vsel %vm1460, %v1837, -inf
        %1841 = vmax.xlane.f32.xlu0 %v1840
        %v1842 = vpop.xlane.xlu0 %1841
        %v1843 = vsub.f32 %v1837, %v1842
        %v1844 = vmul.f32 %v1843, 1.442695
        %v1845 = vpow.pop %v1844
        %v1846 = vsel %vm1460, %v1845, 0.0
        %1847 = vadd.xlane.f32.xlu0 %v1846
        %v1848 = vpop.xlane.xlu0 %1847
        %v1849 = vrcp.pop %v1848
        %v1850 = vmul.f32 %v1845, %v1849
        %v1851 = vpack.c.bf16 %v1850, %v1850
        %v1852 = vpack.c.bf16 %v1816, %v1816
        %v1854 = vsel %vm1460, %v1851, 0
        %v1857 = vsel %vm1496, %v1852, 0
        %1859 = vmatpush.bf16.msra.mxu0 0
        %1860 = vmatpush.bf16.msra.mxu0 0
        %1861 = vmatpush.bf16.msra.mxu0 0
        %1862 = vmatpush.bf16.msra.mxu0 0
        %1863 = vmatpush.bf16.msra.mxu0 0
        %1864 = vmatpush.bf16.msra.mxu0 0
        %1865 = vmatpush.bf16.msra.mxu0 0
        %1866 = vmatpush.bf16.msra.mxu0 %v1857
        %1867 = vmatmul.bf16.gmra.mxu0 %v1854
        %v1868 = vpop.f32.mrf.mxu0
        %v1869 = vadd.f32 0.0, %v1868
        %v1870 = vpop.f32.mrf.mxu0
        %1871 = vdwg.mxu0
        %s1872 = scalar_lea.vmem %s1081, 8 [#allocation11]
        %v1873 = vld [vmem:[%s1872] sm:$0xf]
        %v1874 = vpack.c.bf16 %v1869, %v1869
        %v1876 = vsel %vm1460, %v1874, 0
        %v1879 = vsel %vm1496, %v1873, 0
        %1881 = vmatpush.bf16.msra.mxu0 0
        %1882 = vmatpush.bf16.msra.mxu0 0
        %1883 = vmatpush.bf16.msra.mxu0 0
        %1884 = vmatpush.bf16.msra.mxu0 0
        %1885 = vmatpush.bf16.msra.mxu0 0
        %1886 = vmatpush.bf16.msra.mxu0 0
        %1887 = vmatpush.bf16.msra.mxu0 0
        %1888 = vmatpush.bf16.msra.mxu0 %v1879
        %1889 = vmatmul.bf16.gmra.mxu0 %v1876
        %v1890 = vpop.f32.mrf.mxu0
        %v1891 = vadd.f32 0.0, %v1890
        %v1892 = vpop.f32.mrf.mxu0
        %1893 = vdwg.mxu0
        %v1894 = vadd.f32 %v1711, %v1891
        %s1895 = scalar_lea.vmem %s1051, 48 [#allocation8]
        %v1896 = vld [vmem:[%s1895] sm:$0xf]
        %v1897 = vld [vmem:[%s1895 + $0x4] sm:$0xf]
        %v1898 = vld [vmem:[%s1895 + $0x8] sm:$0xf]
        %v1899 = vld [vmem:[%s1895 + $0xc] sm:$0xf]
        %s1900 = scalar_lea.vmem %s1252, 3
        %v1901 = vld [vmem:[%s1900] sm:$0x1]
        %v1903 = vperm.slane %v1901, 0
        %v1909 = vunpack.c.l.b16 %v1896
        %v1910 = vunpack.c.l.b16 %v1897
        %v1911 = vunpack.c.l.b16 %v1898
        %v1912 = vunpack.c.l.b16 %v1899
        %v1913 = vpack.c.b16 %v1910, %v1909
        %v1914 = vpack.c.b16 %v1912, %v1911
        %1917 = vmatpush.bf16.msra.mxu0 0
        %1918 = vmatpush.bf16.msra.mxu0 0
        %1919 = vmatpush.bf16.msra.mxu0 0
        %1920 = vmatpush.bf16.msra.mxu0 0
        %1921 = vmatpush.bf16.msra.mxu0 0
        %1922 = vmatpush.bf16.msra.mxu0 0
        %1923 = vmatpush.bf16.msra.mxu0 %v1914
        %1924 = vmatpush.bf16.msra.mxu0 %v1913
        %1925 = vmatmul.bf16.gmra.mxu0 %v1377
        %v1926 = vpop.f32.mrf.mxu0
        %v1927 = vadd.f32 %v1903, %v1926
        %v1928 = vpop.f32.mrf.mxu0
        %1929 = vdwg.mxu0
        %s1930 = scalar_lea.vmem %s1061, 48 [#allocation9]
        %v1931 = vld [vmem:[%s1930] sm:$0xf]
        %v1932 = vld [vmem:[%s1930 + $0x4] sm:$0xf]
        %v1933 = vld [vmem:[%s1930 + $0x8] sm:$0xf]
        %v1934 = vld [vmem:[%s1930 + $0xc] sm:$0xf]
        %s1935 = scalar_lea.vmem %s1256, 3
        %v1936 = vld [vmem:[%s1935] sm:$0x1]
        %v1938 = vperm.slane %v1936, 0
        %v1944 = vunpack.c.l.b16 %v1931
        %v1945 = vunpack.c.l.b16 %v1932
        %v1946 = vunpack.c.l.b16 %v1933
        %v1947 = vunpack.c.l.b16 %v1934
        %v1948 = vpack.c.b16 %v1945, %v1944
        %v1949 = vpack.c.b16 %v1947, %v1946
        %1952 = vmatpush.bf16.msra.mxu0 0
        %1953 = vmatpush.bf16.msra.mxu0 0
        %1954 = vmatpush.bf16.msra.mxu0 0
        %1955 = vmatpush.bf16.msra.mxu0 0
        %1956 = vmatpush.bf16.msra.mxu0 0
        %1957 = vmatpush.bf16.msra.mxu0 0
        %1958 = vmatpush.bf16.msra.mxu0 %v1949
        %1959 = vmatpush.bf16.msra.mxu0 %v1948
        %1960 = vmatmul.bf16.gmra.mxu0 %v1377
        %v1961 = vpop.f32.mrf.mxu0
        %v1962 = vadd.f32 %v1938, %v1961
        %v1963 = vpop.f32.mrf.mxu0
        %1964 = vdwg.mxu0
        %s1965 = scalar_lea.vmem %s1071, 48 [#allocation10]
        %v1966 = vld [vmem:[%s1965] sm:$0xf]
        %v1967 = vld [vmem:[%s1965 + $0x4] sm:$0xf]
        %v1968 = vld [vmem:[%s1965 + $0x8] sm:$0xf]
        %v1969 = vld [vmem:[%s1965 + $0xc] sm:$0xf]
        %s1970 = scalar_lea.vmem %s1260, 3
        %v1971 = vld [vmem:[%s1970] sm:$0x1]
        %v1973 = vperm.slane %v1971, 0
        %v1979 = vunpack.c.l.b16 %v1966
        %v1980 = vunpack.c.l.b16 %v1967
        %v1981 = vunpack.c.l.b16 %v1968
        %v1982 = vunpack.c.l.b16 %v1969
        %v1983 = vpack.c.b16 %v1980, %v1979
        %v1984 = vpack.c.b16 %v1982, %v1981
        %1987 = vmatpush.bf16.msra.mxu0 0
        %1988 = vmatpush.bf16.msra.mxu0 0
        %1989 = vmatpush.bf16.msra.mxu0 0
        %1990 = vmatpush.bf16.msra.mxu0 0
        %1991 = vmatpush.bf16.msra.mxu0 0
        %1992 = vmatpush.bf16.msra.mxu0 0
        %1993 = vmatpush.bf16.msra.mxu0 %v1984
        %1994 = vmatpush.bf16.msra.mxu0 %v1983
        %1995 = vmatmul.bf16.gmra.mxu0 %v1377
        %v1996 = vpop.f32.mrf.mxu0
        %v1997 = vadd.f32 %v1973, %v1996
        %v1998 = vpop.f32.mrf.mxu0
        %1999 = vdwg.mxu0
        %v2000 = vpack.c.bf16 %v1927, %v1927
        %v2001 = vpack.c.bf16 %v1962, %v1962
        %v2003 = vsel %vm1460, %v2000, 0
        %v2006 = vsel %vm1460, %v2001, 0
        %2008 = vmatpush.bf16.xpose.msra.mxu0 0
        %2009 = vmatpush.bf16.xpose.msra.mxu0 0
        %2010 = vmatpush.bf16.xpose.msra.mxu0 0
        %2011 = vmatpush.bf16.xpose.msra.mxu0 0
        %2012 = vmatpush.bf16.xpose.msra.mxu0 0
        %2013 = vmatpush.bf16.xpose.msra.mxu0 0
        %2014 = vmatpush.bf16.xpose.msra.mxu0 0
        %2015 = vmatpush.bf16.xpose.msra.mxu0 %v2006
        %2016 = vmatmul.bf16.gmra.mxu0 %v2003
        %v2017 = vpop.f32.mrf.mxu0
        %v2018 = vadd.f32 0.0, %v2017
        %v2019 = vpop.f32.mrf.mxu0
        %2020 = vdwg.mxu0
        %v2021 = vsel %vm1460, %v2018, -inf
        %2022 = vmax.xlane.f32.xlu0 %v2021
        %v2023 = vpop.xlane.xlu0 %2022
        %v2024 = vsub.f32 %v2018, %v2023
        %v2025 = vmul.f32 %v2024, 1.442695
        %v2026 = vpow.pop %v2025
        %v2027 = vsel %vm1460, %v2026, 0.0
        %2028 = vadd.xlane.f32.xlu0 %v2027
        %v2029 = vpop.xlane.xlu0 %2028
        %v2030 = vrcp.pop %v2029
        %v2031 = vmul.f32 %v2026, %v2030
        %v2032 = vpack.c.bf16 %v2031, %v2031
        %v2033 = vpack.c.bf16 %v1997, %v1997
        %v2035 = vsel %vm1460, %v2032, 0
        %v2038 = vsel %vm1496, %v2033, 0
        %2040 = vmatpush.bf16.msra.mxu0 0
        %2041 = vmatpush.bf16.msra.mxu0 0
        %2042 = vmatpush.bf16.msra.mxu0 0
        %2043 = vmatpush.bf16.msra.mxu0 0
        %2044 = vmatpush.bf16.msra.mxu0 0
        %2045 = vmatpush.bf16.msra.mxu0 0
        %2046 = vmatpush.bf16.msra.mxu0 0
        %2047 = vmatpush.bf16.msra.mxu0 %v2038
        %2048 = vmatmul.bf16.gmra.mxu0 %v2035
        %v2049 = vpop.f32.mrf.mxu0
        %v2050 = vadd.f32 0.0, %v2049
        %v2051 = vpop.f32.mrf.mxu0
        %2052 = vdwg.mxu0
        %s2053 = scalar_lea.vmem %s1081, 12 [#allocation11]
        %v2054 = vld [vmem:[%s2053] sm:$0xf]
        %v2055 = vpack.c.bf16 %v2050, %v2050
        %v2057 = vsel %vm1460, %v2055, 0
        %v2060 = vsel %vm1496, %v2054, 0
        %2062 = vmatpush.bf16.msra.mxu0 0
        %2063 = vmatpush.bf16.msra.mxu0 0
        %2064 = vmatpush.bf16.msra.mxu0 0
        %2065 = vmatpush.bf16.msra.mxu0 0
        %2066 = vmatpush.bf16.msra.mxu0 0
        %2067 = vmatpush.bf16.msra.mxu0 0
        %2068 = vmatpush.bf16.msra.mxu0 0
        %2069 = vmatpush.bf16.msra.mxu0 %v2060
        %2070 = vmatmul.bf16.gmra.mxu0 %v2057
        %v2071 = vpop.f32.mrf.mxu0
        %v2072 = vadd.f32 0.0, %v2071
        %v2073 = vpop.f32.mrf.mxu0
        %2074 = vdwg.mxu0
        %v2075 = vadd.f32 %v1894, %v2072
        %v2076 = vadd.f32 %v1314, %v2075
        %v2077 = vld [vmem:[%s1263] sm:$0x1]
        %v2079 = vperm.slane %v2077, 0
        %v2081 = vadd.f32 %v2076, %v2079
        %v2082 = vld [vmem:[%s1266] sm:$0x1]
        %v2083 = vld [vmem:[%s1269] sm:$0x1]
        %v2084 = vsel %vm1317, %v2081, 0.0
        %2085 = vadd.xlane.f32.xlu0 %v2084
        %v2086 = vpop.xlane.xlu0 %2085
        %v2087 = vmul.f32 %v2086, %v1327
        %v2088 = vsub.f32 %v2081, %v2087
        %v2089 = vmul.f32 %v2088, %v2088
        %v2090 = vsel %vm1317, %v2089, 0.0
        %2091 = vadd.xlane.f32.xlu0 %v2090
        %v2092 = vpop.xlane.xlu0 %2091
        %v2093 = vmul.f32 %v2092, %v1327
        %v2094 = vadd.f32 %v2093, 1e-05
        %v2095 = vrsqrt.pop %v2094
        %v2096 = vmul.f32 %v2095, %v2094
        %v2097 = vmul.f32 %v2096, %v2095
        %v2098 = vmul.f32 0.5, %v2097
        %v2099 = vsub.f32 1.5, %v2098
        %v2100 = vmul.f32 %v2095, %v2099
        %vm2101 = vweird.f32 %v2094
        %vm2102 = vweird.f32 %v2095
        %vm2103 = vmor %vm2101, %vm2102
        %v2104 = vsel %vm2103, %v2095, %v2100
        %v2105 = vmul.f32 %v2088, %v2104
        %v2107 = vperm.slane %v2082, 0
        %v2109 = vmul.f32 %v2105, %v2107
        %v2111 = vperm.slane %v2083, 0
        %v2113 = vadd.f32 %v2109, %v2111
        %v2114 = vld [vmem:[%s1091] sm:$0xf]
        %v2115 = vld [vmem:[%s1091 + $0x4] sm:$0xf]
        %v2116 = vld [vmem:[%s1091 + $0x8] sm:$0xf]
        %v2117 = vld [vmem:[%s1091 + $0xc] sm:$0xf]
        %v2118 = vpack.c.bf16 %v2113, %v2113
        %v2119 = vld [vmem:[%s1272] sm:$0x1]
        %v2121 = vperm.slane %v2119, 0
        %v2127 = vunpack.c.l.b16 %v2114
        %v2128 = vunpack.c.l.b16 %v2115
        %v2129 = vunpack.c.l.b16 %v2116
        %v2130 = vunpack.c.l.b16 %v2117
        %v2131 = vpack.c.b16 %v2128, %v2127
        %v2132 = vpack.c.b16 %v2130, %v2129
        %v2136 = vsel %vm1317, %v2118, 0
        %2138 = vmatpush.bf16.msra.mxu0 0
        %2139 = vmatpush.bf16.msra.mxu0 0
        %2140 = vmatpush.bf16.msra.mxu0 0
        %2141 = vmatpush.bf16.msra.mxu0 0
        %2142 = vmatpush.bf16.msra.mxu0 0
        %2143 = vmatpush.bf16.msra.mxu0 0
        %2144 = vmatpush.bf16.msra.mxu0 %v2132
        %2145 = vmatpush.bf16.msra.mxu0 %v2131
        %2146 = vmatmul.bf16.gmra.mxu0 %v2136
        %v2147 = vpop.f32.mrf.mxu0
        %v2148 = vadd.f32 %v2121, %v2147
        %v2149 = vpop.f32.mrf.mxu0
        %2150 = vdwg.mxu0
        %v2151 = vmul.f32 %v2148, %v2148
        %v2152 = vmul.f32 %v2148, %v2151
        %v2153 = vmul.f32 %v2152, 0.044715
        %v2154 = vadd.f32 %v2148, %v2153
        %v2155 = vmul.f32 %v2154, 0.7978846
        %v2156 = vtanh.pop %v2155
        %v2157 = vadd.f32 %v2156, 1.0
        %v2158 = vmul.f32 %v2157, 0.5
        %v2159 = vmul.f32 %v2148, %v2158
        %v2160 = vld [vmem:[%s1101] sm:$0xf]
        %v2161 = vld [vmem:[%s1101 + $0x4] sm:$0xf]
        %v2162 = vld [vmem:[%s1101 + $0x8] sm:$0xf]
        %v2163 = vld [vmem:[%s1101 + $0xc] sm:$0xf]
        %v2164 = vld [vmem:[%s1101 + $0x10] sm:$0xf]
        %v2165 = vld [vmem:[%s1101 + $0x14] sm:$0xf]
        %v2166 = vld [vmem:[%s1101 + $0x18] sm:$0xf]
        %v2167 = vld [vmem:[%s1101 + $0x1c] sm:$0xf]
        %v2168 = vld [vmem:[%s1101 + $0x20] sm:$0xf]
        %v2169 = vld [vmem:[%s1101 + $0x24] sm:$0xf]
        %v2170 = vld [vmem:[%s1101 + $0x28] sm:$0xf]
        %v2171 = vld [vmem:[%s1101 + $0x2c] sm:$0xf]
        %v2172 = vld [vmem:[%s1101 + $0x30] sm:$0xf]
        %v2173 = vld [vmem:[%s1101 + $0x34] sm:$0xf]
        %v2174 = vld [vmem:[%s1101 + $0x38] sm:$0xf]
        %v2175 = vld [vmem:[%s1101 + $0x3c] sm:$0xf]
        %v2176 = vpack.c.bf16 %v2159, %v2159
        %v2193 = vunpack.c.l.b16 %v2160
        %v2194 = vunpack.c.l.b16 %v2161
        %v2195 = vunpack.c.l.b16 %v2162
        %v2196 = vunpack.c.l.b16 %v2163
        %v2197 = vunpack.c.l.b16 %v2164
        %v2198 = vunpack.c.l.b16 %v2165
        %v2199 = vunpack.c.l.b16 %v2166
        %v2200 = vunpack.c.l.b16 %v2167
        %v2201 = vunpack.c.l.b16 %v2168
        %v2202 = vunpack.c.l.b16 %v2169
        %v2203 = vunpack.c.l.b16 %v2170
        %v2204 = vunpack.c.l.b16 %v2171
        %v2205 = vunpack.c.l.b16 %v2172
        %v2206 = vunpack.c.l.b16 %v2173
        %v2207 = vunpack.c.l.b16 %v2174
        %v2208 = vunpack.c.l.b16 %v2175
        %v2209 = vpack.c.b16 %v2194, %v2193
        %v2210 = vpack.c.b16 %v2196, %v2195
        %v2211 = vpack.c.b16 %v2198, %v2197
        %v2212 = vpack.c.b16 %v2200, %v2199
        %v2213 = vpack.c.b16 %v2202, %v2201
        %v2214 = vpack.c.b16 %v2204, %v2203
        %v2215 = vpack.c.b16 %v2206, %v2205
        %v2216 = vpack.c.b16 %v2208, %v2207
        %2225 = vmatpush.bf16.msra.mxu0 %v2216
        %2226 = vmatpush.bf16.msra.mxu0 %v2215
        %2227 = vmatpush.bf16.msra.mxu0 %v2214
        %2228 = vmatpush.bf16.msra.mxu0 %v2213
        %2229 = vmatpush.bf16.msra.mxu0 %v2212
        %2230 = vmatpush.bf16.msra.mxu0 %v2211
        %2231 = vmatpush.bf16.msra.mxu0 %v2210
        %2232 = vmatpush.bf16.msra.mxu0 %v2209
        %2233 = vmatmul.bf16.gmra.mxu0 %v2176
        %v2234 = vpop.f32.mrf.mxu0
        %v2235 = vadd.f32 0.0, %v2234
        %v2236 = vpop.f32.mrf.mxu0
        %2237 = vdwg.mxu0
        %v2238 = vadd.f32 %v2081, %v2235
        %v2239 = vld [vmem:[%s1275] sm:$0x1]
        %v2241 = vperm.slane %v2239, 0
        %v2243 = vadd.f32 %v2238, %v2241
        %2244 = vst.msk [vmem:[#allocation2] sm:$0xff] %vm1317, %v2243
        %p2245 = scmp.eq.s32.totalorder %s43, 1
        // Predicated region
        $region181: #{_lambda_.1} parent=131 // pred_check
          %p2246 = pneg %p2245
        $region182: #{_lambda_.1} parent=131 // pred_check_branch
          %2248 = sbr.rel (%p2246) target = $region184
        $region183: #{_lambda_.1} parent=131 // pred_region
          %v2249 = vld [vmem:[#allocation2] sm:$0xff]
          %v2250 = vld [vmem:[%s19] sm:$0x1]
          %v2251 = vld [vmem:[%s20] sm:$0x1]
          %v2252 = vsel %vm1317, %v2249, 0.0
          %2253 = vadd.xlane.f32.xlu0 %v2252
          %v2254 = vpop.xlane.xlu0 %2253
          %v2255 = vmul.f32 %v2254, %v1327
          %v2256 = vsub.f32 %v2249, %v2255
          %v2257 = vmul.f32 %v2256, %v2256
          %v2258 = vsel %vm1317, %v2257, 0.0
          %2259 = vadd.xlane.f32.xlu0 %v2258
          %v2260 = vpop.xlane.xlu0 %2259
          %v2261 = vmul.f32 %v2260, %v1327
          %v2262 = vadd.f32 %v2261, 1e-05
          %v2263 = vrsqrt.pop %v2262
          %v2264 = vmul.f32 %v2263, %v2262
          %v2265 = vmul.f32 %v2264, %v2263
          %v2266 = vmul.f32 0.5, %v2265
          %v2267 = vsub.f32 1.5, %v2266
          %v2268 = vmul.f32 %v2263, %v2267
          %vm2269 = vweird.f32 %v2262
          %vm2270 = vweird.f32 %v2263
          %vm2271 = vmor %vm2269, %vm2270
          %v2272 = vsel %vm2271, %v2263, %v2268
          %v2273 = vmul.f32 %v2256, %v2272
          %v2275 = vperm.slane %v2250, 0
          %v2277 = vmul.f32 %v2273, %v2275
          %v2279 = vperm.slane %v2251, 0
          %v2281 = vadd.f32 %v2277, %v2279
          %v2282 = vld [vmem:[#allocation14] sm:$0xf]
          %v2283 = vld [vmem:[#allocation14 + $0x4] sm:$0xf]
          %v2284 = vld [vmem:[#allocation14 + $0x8] sm:$0xf]
          %v2285 = vld [vmem:[#allocation14 + $0xc] sm:$0xf]
          %v2286 = vpack.c.bf16 %v2281, %v2281
          %v2287 = vld [vmem:[%s22] sm:$0x1]
          %v2289 = vperm.slane %v2287, 0
          %v2295 = vunpack.c.l.b16 %v2282
          %v2296 = vunpack.c.l.b16 %v2283
          %v2297 = vunpack.c.l.b16 %v2284
          %v2298 = vunpack.c.l.b16 %v2285
          %v2299 = vpack.c.b16 %v2296, %v2295
          %v2300 = vpack.c.b16 %v2298, %v2297
          %v2304 = vsel %vm1317, %v2286, 0
          %2306 = vmatpush.bf16.msra.mxu0 0
          %2307 = vmatpush.bf16.msra.mxu0 0
          %2308 = vmatpush.bf16.msra.mxu0 0
          %2309 = vmatpush.bf16.msra.mxu0 0
          %2310 = vmatpush.bf16.msra.mxu0 0
          %2311 = vmatpush.bf16.msra.mxu0 0
          %2312 = vmatpush.bf16.msra.mxu0 %v2300
          %2313 = vmatpush.bf16.msra.mxu0 %v2299
          %2314 = vmatmul.bf16.gmra.mxu0 %v2304
          %v2315 = vpop.f32.mrf.mxu0
          %v2316 = vadd.f32 %v2289, %v2315
          %v2317 = vpop.f32.mrf.mxu0
          %2318 = vdwg.mxu0
          %v2319 = vmul.f32 %v2316, %v2316
          %v2320 = vmul.f32 %v2316, %v2319
          %v2321 = vmul.f32 %v2320, 0.044715
          %v2322 = vadd.f32 %v2316, %v2321
          %v2323 = vmul.f32 %v2322, 0.7978846
          %v2324 = vtanh.pop %v2323
          %v2325 = vadd.f32 %v2324, 1.0
          %v2326 = vmul.f32 %v2325, 0.5
          %v2327 = vmul.f32 %v2316, %v2326
          %v2328 = vld [vmem:[#allocation15] sm:$0xf]
          %v2329 = vld [vmem:[#allocation15 + $0x4] sm:$0xf]
          %v2330 = vld [vmem:[#allocation15 + $0x8] sm:$0xf]
          %v2331 = vld [vmem:[#allocation15 + $0xc] sm:$0xf]
          %v2332 = vld [vmem:[#allocation15 + $0x10] sm:$0xf]
          %v2333 = vld [vmem:[#allocation15 + $0x14] sm:$0xf]
          %v2334 = vld [vmem:[#allocation15 + $0x18] sm:$0xf]
          %v2335 = vld [vmem:[#allocation15 + $0x1c] sm:$0xf]
          %v2336 = vpack.c.bf16 %v2327, %v2327
          %v2337 = vld [vmem:[%s24] sm:$0x1]
          %v2339 = vperm.slane %v2337, 0
          %v2349 = vunpack.c.l.b16 %v2328
          %v2350 = vunpack.c.l.b16 %v2329
          %v2351 = vunpack.c.l.b16 %v2330
          %v2352 = vunpack.c.l.b16 %v2331
          %v2353 = vunpack.c.l.b16 %v2332
          %v2354 = vunpack.c.l.b16 %v2333
          %v2355 = vunpack.c.l.b16 %v2334
          %v2356 = vunpack.c.l.b16 %v2335
          %v2357 = vpack.c.b16 %v2350, %v2349
          %v2358 = vpack.c.b16 %v2352, %v2351
          %v2359 = vpack.c.b16 %v2354, %v2353
          %v2360 = vpack.c.b16 %v2356, %v2355
          %vm2365 = vcmask 523264
          %v2367 = vsel %vm2365, %v2336, 0
          %2369 = vmatpush.bf16.msra.mxu0 0
          %2370 = vmatpush.bf16.msra.mxu0 0
          %2371 = vmatpush.bf16.msra.mxu0 0
          %2372 = vmatpush.bf16.msra.mxu0 0
          %2373 = vmatpush.bf16.msra.mxu0 %v2360
          %2374 = vmatpush.bf16.msra.mxu0 %v2359
          %2375 = vmatpush.bf16.msra.mxu0 %v2358
          %2376 = vmatpush.bf16.msra.mxu0 %v2357
          %2377 = vmatmul.bf16.gmra.mxu0 %v2367
          %v2378 = vpop.f32.mrf.mxu0
          %v2379 = vadd.f32 %v2339, %v2378
          %v2380 = vpop.f32.mrf.mxu0
          %2381 = vdwg.mxu0
          %v2382 = vmul.f32 %v2379, %v2379
          %v2383 = vmul.f32 %v2379, %v2382
          %v2384 = vmul.f32 %v2383, 0.044715
          %v2385 = vadd.f32 %v2379, %v2384
          %v2386 = vmul.f32 %v2385, 0.7978846
          %v2387 = vtanh.pop %v2386
          %v2388 = vadd.f32 %v2387, 1.0
          %v2389 = vmul.f32 %v2388, 0.5
          %v2390 = vmul.f32 %v2379, %v2389
          %v2391 = vld [vmem:[%s25] sm:$0xf]
          %v2392 = vld [vmem:[%s25 + $0x4] sm:$0xf]
          %v2393 = vld [vmem:[%s25 + $0x8] sm:$0xf]
          %v2394 = vld [vmem:[%s25 + $0xc] sm:$0xf]
          %v2395 = vld [vmem:[%s25 + $0x10] sm:$0xf]
          %v2396 = vld [vmem:[%s25 + $0x14] sm:$0xf]
          %v2397 = vld [vmem:[%s25 + $0x18] sm:$0xf]
          %v2398 = vld [vmem:[%s25 + $0x1c] sm:$0xf]
          %v2399 = vpack.c.bf16 %v2390, %v2390
          %v2400 = vld [vmem:[%s26] sm:$0x1]
          %v2402 = vperm.slane %v2400, 0
          %v2412 = vunpack.c.l.b16 %v2391
          %v2413 = vunpack.c.l.b16 %v2392
          %v2414 = vunpack.c.l.b16 %v2393
          %v2415 = vunpack.c.l.b16 %v2394
          %v2416 = vunpack.c.l.b16 %v2395
          %v2417 = vunpack.c.l.b16 %v2396
          %v2418 = vunpack.c.l.b16 %v2397
          %v2419 = vunpack.c.l.b16 %v2398
          %v2420 = vpack.c.b16 %v2413, %v2412
          %v2421 = vpack.c.b16 %v2415, %v2414
          %v2422 = vpack.c.b16 %v2417, %v2416
          %v2423 = vpack.c.b16 %v2419, %v2418
          %v2429 = vsel %vm2365, %v2399, 0
          %2431 = vmatpush.bf16.msra.mxu0 0
          %2432 = vmatpush.bf16.msra.mxu0 0
          %2433 = vmatpush.bf16.msra.mxu0 0
          %2434 = vmatpush.bf16.msra.mxu0 0
          %2435 = vmatpush.bf16.msra.mxu0 %v2423
          %2436 = vmatpush.bf16.msra.mxu0 %v2422
          %2437 = vmatpush.bf16.msra.mxu0 %v2421
          %2438 = vmatpush.bf16.msra.mxu0 %v2420
          %2439 = vmatmul.bf16.gmra.mxu0 %v2429
          %v2440 = vpop.f32.mrf.mxu0
          %v2441 = vadd.f32 %v2402, %v2440
          %v2442 = vpop.f32.mrf.mxu0
          %2443 = vdwg.mxu0
          %v2444 = vmul.f32 %v2441, %v2441
          %vm2445 = vcmask 130048
          %v2446 = vsel %vm2445, %v2444, 0.0
          %2447 = vadd.xlane.f32.xlu0 %v2446
          %v2448 = vpop.xlane.xlu0 %2447
          %v2449 = vmax.f32 %v2448, 1e-24
          %v2450 = vrsqrt.pop %v2449
          %v2451 = vmul.f32 %v2450, %v2449
          %v2452 = vmul.f32 %v2451, %v2450
          %v2453 = vmul.f32 0.5, %v2452
          %v2454 = vsub.f32 1.5, %v2453
          %v2455 = vmul.f32 %v2450, %v2454
          %vm2456 = vweird.f32 %v2449
          %vm2457 = vweird.f32 %v2450
          %vm2458 = vmor %vm2456, %vm2457
          %v2459 = vsel %vm2458, %v2450, %v2455
          %v2460 = vmul.f32 %v2441, %v2459
          %v2461 = vld [vmem:[#allocation17] sm:$0xf]
          %v2462 = vld [vmem:[#allocation17 + $0x4] sm:$0xf]
          %v2463 = vpack.c.bf16 %v2460, %v2460
          %v2466 = vunpack.c.l.b16 %v2461
          %v2467 = vunpack.c.l.b16 %v2462
          %v2468 = vpack.c.b16 %v2467, %v2466
          %v2471 = vsel %vm2445, %v2463, 0
          %2473 = vmatpush.bf16.msra.mxu0 0
          %2474 = vmatpush.bf16.msra.mxu0 0
          %2475 = vmatpush.bf16.msra.mxu0 0
          %2476 = vmatpush.bf16.msra.mxu0 0
          %2477 = vmatpush.bf16.msra.mxu0 0
          %2478 = vmatpush.bf16.msra.mxu0 0
          %2479 = vmatpush.bf16.msra.mxu0 0
          %2480 = vmatpush.bf16.msra.mxu0 %v2468
          %2481 = vmatmul.bf16.gmra.mxu0 %v2471
          %v2482 = vpop.f32.mrf.mxu0
          %v2483 = vadd.f32 0.0, %v2482
          %v2484 = vpop.f32.mrf.mxu0
          %2485 = vdwg.mxu0
          %2486 = vst.msk [vmem:[#allocation18] sm:$0xff] %vm2365, %v2483
        $region184: #{_lambda_.1} parent=131 // pred_fallthru
          _
        // Predicated region
        $region185: #{_lambda_.1} parent=131 // pred_check
          %p2487 = pneg %p724
        $region186: #{_lambda_.1} parent=131 // pred_check_branch
          %2489 = sbr.rel (%p2487) target = $region188
        $region187: #{_lambda_.1} parent=131 // pred_region
          %2491 = vsyncadd [#allocation5], 0
          %s2493 = sshll.u32 [#allocation18], 4
          %s2494 = int_to_ptr.vmem [resolvable:$true] %s2493
          %s2495 = sshll.u32 %s28, 4
          %s2496 = int_to_ptr.hbm [resolvable:$true] %s2495
          %2498 = dma.vmem_to_hbm [thread:$0]  %s2494, 128, %s2496, [#allocation5]
        $region188: #{_lambda_.1} parent=131 // pred_fallthru
          _
        // Predicated region
        $region189: #{_lambda_.1} parent=131 // pred_check
          %p2499 = pneg %p724
        $region190: #{_lambda_.1} parent=131 // pred_check_branch
          %2501 = sbr.rel (%p2499) target = $region192
        $region191: #{_lambda_.1} parent=131 // pred_region
          %2503 = dma.done [#allocation5], 128
        $region192: #{_lambda_.1} parent=131 // pred_fallthru
          _
      $region132: #{_lambda_.1} parent=5 // pred_fallthru
        _
      %p2504 = scmp.le.s32.totalorder 2, %s38
      // Predicated region
      $region193: #{_lambda_.1} parent=5 // pred_check
        %p2505 = pneg %p2504
      $region194: #{_lambda_.1} parent=5 // pred_check_branch
        %2507 = sbr.rel (%p2505) target = $region196
      $region195: #{_lambda_.1} parent=5 // pred_region
        %s2508 = ssub.s32 %s38, 2
      $region196: #{_lambda_.1} parent=5 // pred_fallthru
        _
    $region6: #{_lambda_.1} parent=1 // loop_footer
      %s42 = sadd.s32 1, %s38
    $region7: #{_lambda_.1} parent=1 // loop_footer_branch
      %37 = sbr.rel target = $region3
    $region8: #{_lambda_.1} parent=1 // loop_exit
      _
    %2509 = vsyncpa [#allocation4], 1
    %s2510 = scalar_lea.sflag [#allocation4], 1
    %2511 = vsyncpa %s2510, 1
    %2512 = vsyncpa [#allocation7], 1
    %2513 = vsyncpa [#allocation16], 1
    %2514 = vsyncpa [#allocation5], 1
    %s2515 = scalar_lea.sflag [#allocation5], 1
    %2516 = vsyncpa %s2515, 1

</llo_original>
